<compile_context>
chip_gen: v5e
topology: v5e:2x2
jax: 0.10.0
libtpu: 0.0.40
codegen_flags: <defaults>
</compile_context>

<pallas_src>
import functools

import numpy as np
import jax
import jax.numpy as jnp
from jax.experimental import pallas as pl
from jax.experimental.pallas import tpu as pltpu


# ------------------------------ in-kernel math helpers ------------------------------ #

def _erf(x):
    # TODO(synk): lax.erf has no guaranteed Mosaic lowering; use the Abramowitz &
    # Stegun 7.1.26 rational approximation (|err| < 1.5e-7 — at f32 working
    # precision for the exact-GELU used by torch nn.GELU()).
    a1 = 0.254829592
    a2 = -0.284496736
    a3 = 1.421413741
    a4 = -1.453152027
    a5 = 1.061405429
    p = 0.3275911
    sign = jnp.where(x >= 0.0, 1.0, -1.0)
    ax = jnp.abs(x)
    t = 1.0 / (1.0 + p * ax)
    poly = t * (a1 + t * (a2 + t * (a3 + t * (a4 + t * a5))))
    return sign * (1.0 - poly * jnp.exp(-ax * ax))


def _gelu(x):
    # torch nn.GELU() default: exact erf-based GELU.
    return 0.5 * x * (1.0 + _erf(x * 0.7071067811865476))


def _ln(x, g, b, eps):
    # LayerNorm over the last dim (biased variance, like torch).
    mu = jnp.mean(x, axis=-1, keepdims=True)
    xc = x - mu
    var = jnp.mean(xc * xc, axis=-1, keepdims=True)
    return xc * jax.lax.rsqrt(var + eps) * g + b


def _make_sel(Lin, K, stride):
    """Host-side constant 0/1 stride-selection masks: sel[k, t, l] = (l == stride*t + k)."""
    Tout = (Lin - K) // stride + 1
    rows = np.arange(Tout, dtype=np.int64)[:, None]
    cols = np.arange(Lin, dtype=np.int64)[None, :]
    sel = np.stack([(cols == stride * rows + k) for k in range(K)]).astype(np.float32)
    return jnp.asarray(sel)                              # (K, Tout, Lin)


# ------------------------------ kernel 1: frontend ------------------------------ #

def _frontend_kernel(x_ref, sel0_ref, w0_ref, b0_ref, gng_ref, gnb_ref,
                     sel1_ref, w1_ref, b1_ref, lng_ref, lnb_ref, fpw_ref,
                     posb_ref, elng_ref, elnb_ref,
                     h0_ref, nf_ref, *, k0, k1, eps, gn_eps):
    x = x_ref[0]                                         # (L, Cin), time-major

    def strided_conv(inp, sel_ref, w_ref, b_ref, K):
        # PyTorch Conv1d (valid padding, stride) as K shifted matmuls; the stride
        # selection is a precomputed constant 0/1 matrix streamed in from HBM, so
        # the conv is pure MXU work (no iota / compare / select on the VPU).
        Cout = w_ref.shape[2]
        Tout = sel_ref.shape[1]
        acc = jnp.zeros((Tout, Cout), jnp.float32)
        for k in range(K):                               # statically unrolled taps
            tap = jnp.dot(inp, w_ref[k], preferred_element_type=jnp.float32)      # (Lin, Cout)
            acc = acc + jnp.dot(sel_ref[k], tap, preferred_element_type=jnp.float32)
        return acc + b_ref[...]

    # conv0 -> GroupNorm(num_groups == channels, normalize over time) -> GELU
    h = strided_conv(x, sel0_ref, w0_ref, b0_ref, k0)    # (T1, C0)
    mu = jnp.mean(h, axis=0, keepdims=True)
    xc = h - mu
    var = jnp.mean(xc * xc, axis=0, keepdims=True)
    h = xc * jax.lax.rsqrt(var + gn_eps) * gng_ref[...] + gnb_ref[...]
    h = _gelu(h)

    # conv1 -> GELU   (== torch extract_features.transpose(1, 2), time-major)
    h = strided_conv(h, sel1_ref, w1_ref, b1_ref, k1)    # (T, C1)
    h = _gelu(h)

    # FeatureProjection: LayerNorm + Linear (projection bias pre-folded into posb)
    nf = _ln(h, lng_ref[...], lnb_ref[...], eps)
    nf_ref[...] = nf
    hid = jnp.dot(nf, fpw_ref[...], preferred_element_type=jnp.float32) + posb_ref[...]

    # Encoder prologue: (+ position embeddings already folded), pre-LayerNorm
    h0_ref[...] = _ln(hid, elng_ref[...], elnb_ref[...], eps)


def _frontend(x_t, p, cfg):
    B, L, Cin = x_t.shape
    k0, k1 = cfg["conv_kernel"]
    s0, s1 = cfg["conv_stride"]
    C0, C1 = cfg["conv_dim"]
    H = cfg["hidden_size"]
    T1 = (L - k0) // s0 + 1
    T = (T1 - k1) // s1 + 1
    sel0 = _make_sel(L, k0, s0)                          # (k0, T1, L)  host constants
    sel1 = _make_sel(T1, k1, s1)                         # (k1, T, T1)
    kern = functools.partial(_frontend_kernel, k0=k0, k1=k1,
                             eps=cfg["layer_norm_eps"], gn_eps=1e-5)
    h0, nf = pl.pallas_call(
        kern,
        grid=(B,),
        out_shape=(jax.ShapeDtypeStruct((B * T, H), jnp.float32),
                   jax.ShapeDtypeStruct((B * T, C1), jnp.float32)),
        in_specs=[
            pl.BlockSpec((1, L, Cin), lambda b: (b, 0, 0)),     # input (per batch)
            pl.BlockSpec((k0, T1, L), lambda b: (0, 0, 0)),     # conv0 stride-selection
            pl.BlockSpec((k0, Cin, C0), lambda b: (0, 0, 0)),   # conv0 weight (K,Cin,C0)
            pl.BlockSpec((1, C0), lambda b: (0, 0)),            # conv0 bias
            pl.BlockSpec((1, C0), lambda b: (0, 0)),            # groupnorm gamma
            pl.BlockSpec((1, C0), lambda b: (0, 0)),            # groupnorm beta
            pl.BlockSpec((k1, T, T1), lambda b: (0, 0, 0)),     # conv1 stride-selection
            pl.BlockSpec((k1, C0, C1), lambda b: (0, 0, 0)),    # conv1 weight (K,C0,C1)
            pl.BlockSpec((1, C1), lambda b: (0, 0)),            # conv1 bias
            pl.BlockSpec((1, C1), lambda b: (0, 0)),            # fp layernorm gamma
            pl.BlockSpec((1, C1), lambda b: (0, 0)),            # fp layernorm beta
            pl.BlockSpec((C1, H), lambda b: (0, 0)),            # fp weight (in,out)
            pl.BlockSpec((T, H), lambda b: (0, 0)),             # pos emb + fp bias (folded)
            pl.BlockSpec((1, H), lambda b: (0, 0)),             # encoder ln gamma
            pl.BlockSpec((1, H), lambda b: (0, 0)),             # encoder ln beta
        ],
        out_specs=(pl.BlockSpec((T, H), lambda b: (b, 0)),
                   pl.BlockSpec((T, C1), lambda b: (b, 0))),
        compiler_params=pltpu.CompilerParams(dimension_semantics=("parallel",)),
    )(x_t, sel0, p["conv0_w"], p["conv0_b"], p["gn_g"], p["gn_b"],
      sel1, p["conv1_w"], p["conv1_b"], p["fp_ln_g"], p["fp_ln_b"],
      p["fp_w"], p["pos_plus_b"], p["enc_ln_g"], p["enc_ln_b"])
    return h0, nf, T


# ------------------------------ kernel 2: encoder stack ------------------------------ #

def _encoder_kernel(h0_ref, wqkv_ref, bqkv_ref, wo_ref, bo_ref,
                    ln1g_ref, ln1b_ref, w1_ref, b1_ref, w2_ref, b2_ref,
                    ln2g_ref, ln2b_ref, out_ref, attn_scr,
                    *, B, T, nH, d, eps):
    # The (B*T, H) activation stays resident in the revisited output block across
    # the layer grid; per-layer weights stream in each grid step (DMA overlapped
    # with the previous layer's compute by the Pallas pipeline).
    @pl.when(pl.program_id(0) == 0)
    def _():
        out_ref[...] = h0_ref[...]

    h = out_ref[...]                                    # (B*T, H)
    H = h.shape[1]

    # ---- self attention: fused QKV (scaling pre-folded into the Q weights/bias) ----
    qkv = jnp.dot(h, wqkv_ref[0], preferred_element_type=jnp.float32) + bqkv_ref[0]
    wo = wo_ref[0]                                      # (H, H)
    for b in range(B):                                  # statically unrolled
        r0, r1 = b * T, (b + 1) * T
        acc = jnp.zeros((T, H), jnp.float32)
        for hh in range(nH):
            c0, c1 = hh * d, (hh + 1) * d
            q = qkv[r0:r1, c0:c1]                       # (T, d)  (already scaled)
            k = qkv[r0:r1, H + c0:H + c1]               # (T, d)
            v = qkv[r0:r1, 2 * H + c0:2 * H + c1]       # (T, d)
            s = jax.lax.dot_general(q, k, (((1,), (1,)), ((), ())),
                                    preferred_element_type=jnp.float32)   # (T, T)
            m = jnp.max(s, axis=-1, keepdims=True)
            e = jnp.exp(s - m)
            a = e / jnp.sum(e, axis=-1, keepdims=True)
            o = jnp.dot(a, v, preferred_element_type=jnp.float32)         # (T, d)
            # out-proj folded per head: concat(heads) @ Wo == sum_h o_h @ Wo[h-rows]
            acc = acc + jnp.dot(o, wo[c0:c1, :], preferred_element_type=jnp.float32)
        attn_scr[r0:r1, :] = acc                        # full-lane-width row store

    attn = attn_scr[...] + bo_ref[0]
    h = _ln(h + attn, ln1g_ref[0], ln1b_ref[0], eps)    # residual fused into LN

    # ---- feed forward (GELU fused into the same kernel) ----
    ff = _gelu(jnp.dot(h, w1_ref[0], preferred_element_type=jnp.float32) + b1_ref[0])
    ff = jnp.dot(ff, w2_ref[0], preferred_element_type=jnp.float32) + b2_ref[0]
    h = _ln(h + ff, ln2g_ref[0], ln2b_ref[0], eps)

    out_ref[...] = h


def _encoder(h0, p, cfg, B, T):
    BT, H = h0.shape
    nL = cfg["num_hidden_layers"]
    I = cfg["intermediate_size"]
    nH = cfg["num_attention_heads"]
    d = H // nH
    kern = functools.partial(_encoder_kernel, B=B, T=T, nH=nH, d=d,
                             eps=cfg["layer_norm_eps"])
    return pl.pallas_call(
        kern,
        grid=(nL,),
        out_shape=jax.ShapeDtypeStruct((BT, H), jnp.float32),
        in_specs=[
            pl.BlockSpec((BT, H), lambda l: (0, 0)),            # initial hidden states
            pl.BlockSpec((1, H, 3 * H), lambda l: (l, 0, 0)),   # fused QKV weight
            pl.BlockSpec((1, 1, 3 * H), lambda l: (l, 0, 0)),   # fused QKV bias
            pl.BlockSpec((1, H, H), lambda l: (l, 0, 0)),       # out-proj weight
            pl.BlockSpec((1, 1, H), lambda l: (l, 0, 0)),       # out-proj bias
            pl.BlockSpec((1, 1, H), lambda l: (l, 0, 0)),       # ln1 gamma
            pl.BlockSpec((1, 1, H), lambda l: (l, 0, 0)),       # ln1 beta
            pl.BlockSpec((1, H, I), lambda l: (l, 0, 0)),       # ffn1 weight
            pl.BlockSpec((1, 1, I), lambda l: (l, 0, 0)),       # ffn1 bias
            pl.BlockSpec((1, I, H), lambda l: (l, 0, 0)),       # ffn2 weight
            pl.BlockSpec((1, 1, H), lambda l: (l, 0, 0)),       # ffn2 bias
            pl.BlockSpec((1, 1, H), lambda l: (l, 0, 0)),       # ln2 gamma
            pl.BlockSpec((1, 1, H), lambda l: (l, 0, 0)),       # ln2 beta
        ],
        out_specs=pl.BlockSpec((BT, H), lambda l: (0, 0)),       # resident accumulator
        scratch_shapes=[pltpu.VMEM((BT, H), jnp.float32)],
        compiler_params=pltpu.CompilerParams(dimension_semantics=("arbitrary",)),
    )(h0, p["wqkv"], p["bqkv"], p["wo"], p["bo"], p["ln1_g"], p["ln1_b"],
      p["w1"], p["b1"], p["w2"], p["b2"], p["ln2_g"], p["ln2_b"])


# ------------------------------ parameters ------------------------------------------ #

def make_params(key, cfg):
    """Random params in the original torch layouts (Linear: (out,in), Conv1d: (Cout,Cin,K))."""
    ks = iter(jax.random.split(key, 128))

    def rnd(shape, scale=0.05):
        return scale * jax.random.normal(next(ks), shape, dtype=jnp.float32)

    H = cfg["hidden_size"]
    p = {
        "conv0_w": rnd((cfg["conv_dim"][0], cfg["num_neuron"], cfg["conv_kernel"][0])),
        "conv0_b": rnd((cfg["conv_dim"][0],)),
        "gn_g": 1.0 + rnd((cfg["conv_dim"][0],)),
        "gn_b": rnd((cfg["conv_dim"][0],)),
        "conv1_w": rnd((cfg["conv_dim"][1], cfg["conv_dim"][0], cfg["conv_kernel"][1])),
        "conv1_b": rnd((cfg["conv_dim"][1],)),
        "fp_ln_g": 1.0 + rnd((cfg["conv_dim"][-1],)),
        "fp_ln_b": rnd((cfg["conv_dim"][-1],)),
        "fp_w": rnd((H, cfg["conv_dim"][-1])),
        "fp_b": rnd((H,)),
        "pos_emb": rnd((1, 2 * cfg["num_frame"], H)),     # nn.Parameter shape
        "enc_ln_g": 1.0 + rnd((H,)),
        "enc_ln_b": rnd((H,)),
        "layers": [],
    }
    for _ in range(cfg["num_hidden_layers"]):
        p["layers"].append({
            "q_w": rnd((H, H)), "q_b": rnd((H,)),
            "k_w": rnd((H, H)), "k_b": rnd((H,)),
            "v_w": rnd((H, H)), "v_b": rnd((H,)),
            "o_w": rnd((H, H)), "o_b": rnd((H,)),
            "ln1_g": 1.0 + rnd((H,)), "ln1_b": rnd((H,)),
            "ff1_w": rnd((cfg["intermediate_size"], H)), "ff1_b": rnd((cfg["intermediate_size"],)),
            "ff2_w": rnd((H, cfg["intermediate_size"])), "ff2_b": rnd((H,)),
            "ln2_g": 1.0 + rnd((H,)), "ln2_b": rnd((H,)),
        })
    return p


def prep_params(p, cfg):
    """One-time conversion of torch-layout params into kernel-ready layouts:
    weights pre-transposed to (in, out), conv weights to (K, Cin, Cout), encoder
    weights stacked along a leading layer axis, attention scaling folded into Q,
    FeatureProjection bias folded into the position-embedding slab."""
    H = cfg["hidden_size"]
    nH = cfg["num_attention_heads"]
    d = H // nH
    scaling = d ** (-0.5)
    T = 2 * cfg["num_frame"]
    layers = p["layers"]

    frontend = {
        "conv0_w": jnp.transpose(p["conv0_w"], (2, 1, 0)),   # (K, Cin, C0)
        "conv0_b": p["conv0_b"][None, :],
        "gn_g": p["gn_g"][None, :],
        "gn_b": p["gn_b"][None, :],
        "conv1_w": jnp.transpose(p["conv1_w"], (2, 1, 0)),   # (K, C0, C1)
        "conv1_b": p["conv1_b"][None, :],
        "fp_ln_g": p["fp_ln_g"][None, :],
        "fp_ln_b": p["fp_ln_b"][None, :],
        "fp_w": p["fp_w"].T,                                 # (C1, H)
        "pos_plus_b": p["pos_emb"].reshape(T, H) + p["fp_b"][None, :],
        "enc_ln_g": p["enc_ln_g"][None, :],
        "enc_ln_b": p["enc_ln_b"][None, :],
    }
    encoder = {
        "wqkv": jnp.stack([jnp.concatenate(
            [l["q_w"].T * scaling, l["k_w"].T, l["v_w"].T], axis=1) for l in layers]),
        "bqkv": jnp.stack([jnp.concatenate(
            [l["q_b"] * scaling, l["k_b"], l["v_b"]])[None, :] for l in layers]),
        "wo": jnp.stack([l["o_w"].T for l in layers]),
        "bo": jnp.stack([l["o_b"][None, :] for l in layers]),
        "ln1_g": jnp.stack([l["ln1_g"][None, :] for l in layers]),
        "ln1_b": jnp.stack([l["ln1_b"][None, :] for l in layers]),
        "w1": jnp.stack([l["ff1_w"].T for l in layers]),
        "b1": jnp.stack([l["ff1_b"][None, :] for l in layers]),
        "w2": jnp.stack([l["ff2_w"].T for l in layers]),
        "b2": jnp.stack([l["ff2_b"][None, :] for l in layers]),
        "ln2_g": jnp.stack([l["ln2_g"][None, :] for l in layers]),
        "ln2_b": jnp.stack([l["ln2_b"][None, :] for l in layers]),
    }
    return {"frontend": frontend, "encoder": encoder}


# ------------------------------ forward ---------------------------------------------- #

def wav2vec2_forward(prepped, cfg, inputs):
    """inputs: (B, num_neuron, L) -> (last_hidden_state (B,T,H), extract_feature (B,T,conv_dim[-1]))
    extract_feature matches the reference: FeatureProjection's post-LayerNorm features."""
    B = inputs.shape[0]
    H = cfg["hidden_size"]
    C1 = cfg["conv_dim"][-1]
    # One cheap, one-time layout change of the raw input to time-major.
    x_t = jnp.transpose(inputs, (0, 2, 1))                # (B, L, Cin)
    h0, nf, T = _frontend(x_t, prepped["frontend"], cfg)
    assert T == 2 * cfg["num_frame"], "encoder sequence length must equal 2*num_frame"
    last = _encoder(h0, prepped["encoder"], cfg, B, T)
    # TODO(synk): pos_conv_embed exists in the reference Encoder but is never used
    # in its forward(); adapter disabled (add_adapter=False); dropout is a no-op.
    return last.reshape(B, T, H), nf.reshape(B, T, C1)


# ------------------------------ main -------------------------------------------------- #

if __name__ == "__main__":
    cfg = dict(
        num_neuron=4,
        conv_dim=(8, 16),
        conv_kernel=(3, 3),
        conv_stride=(2, 2),
        num_feat_extract_layers=2,
        conv_bias=True,
        hidden_size=32,
        num_attention_heads=4,
        intermediate_size=64,
        num_hidden_layers=2,
        num_frame=8,              # encoder seq len must equal 2*num_frame = 16
        layer_norm_eps=1e-5,
        add_adapter=False,
        mask_time_prob=0.0,
        mask_feature_prob=0.0,
    )

    key = jax.random.PRNGKey(0)
    pkey, xkey = jax.random.split(key)
    torch_layout_params = make_params(pkey, cfg)
    prepped = prep_params(torch_layout_params, cfg)       # one-time layout prep

    # L = 67:  (67-3)//2+1 = 33,  (33-3)//2+1 = 16 = 2*num_frame
    B, L = 2, 67
    x = jax.random.normal(xkey, (B, cfg["num_neuron"], L), dtype=jnp.float32)

    fwd = jax.jit(functools.partial(wav2vec2_forward, prepped, cfg))
    last_hidden, extract_feature = fwd(x)
    jax.block_until_ready(last_hidden)
    jax.block_until_ready(extract_feature)

    assert last_hidden.shape == (B, 2 * cfg["num_frame"], cfg["hidden_size"])
    assert extract_feature.shape == (B, 2 * cfg["num_frame"], cfg["conv_dim"][-1])
    assert bool(jnp.all(jnp.isfinite(last_hidden)))
    assert bool(jnp.all(jnp.isfinite(extract_feature)))
    print("KERNEL_OK")
</pallas_src>

<mosaic_0001>
module attributes {stable_mosaic.version = 11 : i64} {
  func.func @_encoder_kernel(%arg0: i32, %arg1: memref<32x32xf32, #tpu.memory_space<vmem>>, %arg2: memref<1x32x96xf32, #tpu.memory_space<vmem>>, %arg3: memref<1x1x96xf32, #tpu.memory_space<vmem>>, %arg4: memref<1x32x32xf32, #tpu.memory_space<vmem>>, %arg5: memref<1x1x32xf32, #tpu.memory_space<vmem>>, %arg6: memref<1x1x32xf32, #tpu.memory_space<vmem>>, %arg7: memref<1x1x32xf32, #tpu.memory_space<vmem>>, %arg8: memref<1x32x64xf32, #tpu.memory_space<vmem>>, %arg9: memref<1x1x64xf32, #tpu.memory_space<vmem>>, %arg10: memref<1x64x32xf32, #tpu.memory_space<vmem>>, %arg11: memref<1x1x32xf32, #tpu.memory_space<vmem>>, %arg12: memref<1x1x32xf32, #tpu.memory_space<vmem>>, %arg13: memref<1x1x32xf32, #tpu.memory_space<vmem>>, %arg14: memref<32x32xf32, #tpu.memory_space<vmem>>, %arg15: memref<32x32xf32, #tpu.memory_space<vmem>>) attributes {dimension_semantics = [#tpu.dimension_semantics<arbitrary>], iteration_bounds = array<i64: 2>, scalar_prefetch = 0 : i64, scratch_operands = 1 : i64, tpu.core_type = #tpu.core_type<tc>, window_params = [{pipeline_mode = #tpu.pipeline_mode<synchronous>, transform_indices = @transform_0, window_bounds = array<i64: 32, 32>}, {transform_indices = @transform_1, window_bounds = array<i64: 1, 32, 96>}, {transform_indices = @transform_2, window_bounds = array<i64: 1, 1, 96>}, {transform_indices = @transform_3, window_bounds = array<i64: 1, 32, 32>}, {transform_indices = @transform_4, window_bounds = array<i64: 1, 1, 32>}, {transform_indices = @transform_5, window_bounds = array<i64: 1, 1, 32>}, {transform_indices = @transform_6, window_bounds = array<i64: 1, 1, 32>}, {transform_indices = @transform_7, window_bounds = array<i64: 1, 32, 64>}, {transform_indices = @transform_8, window_bounds = array<i64: 1, 1, 64>}, {transform_indices = @transform_9, window_bounds = array<i64: 1, 64, 32>}, {transform_indices = @transform_10, window_bounds = array<i64: 1, 1, 32>}, {transform_indices = @transform_11, window_bounds = array<i64: 1, 1, 32>}, {transform_indices = @transform_12, window_bounds = array<i64: 1, 1, 32>}, {pipeline_mode = #tpu.pipeline_mode<synchronous>, transform_indices = @transform_13, window_bounds = array<i64: 32, 32>}]} {
    %c0_i32 = arith.constant 0 : i32
    %0 = arith.cmpi eq, %arg0, %c0_i32 : i32
    %1 = arith.extui %0 : i1 to i32
    %c0_i32_0 = arith.constant 0 : i32
    %2 = arith.cmpi ne, %1, %c0_i32_0 : i32
    scf.if %2 {
      %c0_115 = arith.constant 0 : index
      %c0_116 = arith.constant 0 : index
      %264 = vector.load %arg1[%c0_115, %c0_116] : memref<32x32xf32, #tpu.memory_space<vmem>>, vector<32x32xf32>
      %c0_117 = arith.constant 0 : index
      %c0_118 = arith.constant 0 : index
      %265 = vector.load %arg14[%c0_117, %c0_118] : memref<32x32xf32, #tpu.memory_space<vmem>>, vector<32x32xf32>
      tpu.vector_store %arg14[%c0_117, %c0_118], %264 {strides = array<i32>} : memref<32x32xf32, #tpu.memory_space<vmem>>, vector<32x32xf32>,
    } else {
    }
    %c0 = arith.constant 0 : index
    %c0_1 = arith.constant 0 : index
    %3 = vector.load %arg14[%c0, %c0_1] : memref<32x32xf32, #tpu.memory_space<vmem>>, vector<32x32xf32>
    %c0_2 = arith.constant 0 : index
    %c0_3 = arith.constant 0 : index
    %c0_4 = arith.constant 0 : index
    %4 = vector.load %arg2[%c0_2, %c0_3, %c0_4] : memref<1x32x96xf32, #tpu.memory_space<vmem>>, vector<1x32x96xf32>
    %5 = vector.shape_cast %4 : vector<1x32x96xf32> to vector<32x96xf32>
    %cst = arith.constant dense<0.000000e+00> : vector<32x96xf32>
    %6 = tpu.matmul %3, %5, %cst {dimension_numbers = #tpu.dot_dimension_numbers<[1], [0], [0], [1], [0, 0, 1, 1], [], []>} : vector<32x32xf32>, vector<32x96xf32>, vector<32x96xf32> -> vector<32x96xf32>
    %c0_5 = arith.constant 0 : index
    %c0_6 = arith.constant 0 : index
    %c0_7 = arith.constant 0 : index
    %7 = vector.load %arg3[%c0_5, %c0_6, %c0_7] : memref<1x1x96xf32, #tpu.memory_space<vmem>>, vector<1x1x96xf32>
    %8 = vector.shape_cast %7 : vector<1x1x96xf32> to vector<1x96xf32>
    %9 = vector.broadcast %8 : vector<1x96xf32> to vector<32x96xf32>
    %10 = arith.addf %6, %9 : vector<32x96xf32>
    %c0_8 = arith.constant 0 : index
    %c0_9 = arith.constant 0 : index
    %c0_10 = arith.constant 0 : index
    %11 = vector.load %arg4[%c0_8, %c0_9, %c0_10] : memref<1x32x32xf32, #tpu.memory_space<vmem>>, vector<1x32x32xf32>
    %12 = vector.shape_cast %11 : vector<1x32x32xf32> to vector<32x32xf32>
    %cst_11 = arith.constant 0.000000e+00 : f32
    %13 = vector.broadcast %cst_11 : f32 to vector<16x32xf32>
    %14 = vector.extract_strided_slice %10 {offsets = [0, 0], sizes = [16, 8], strides = [1, 1]} : vector<32x96xf32> to vector<16x8xf32>
    %15 = vector.extract_strided_slice %10 {offsets = [0, 32], sizes = [16, 8], strides = [1, 1]} : vector<32x96xf32> to vector<16x8xf32>
    %16 = vector.extract_strided_slice %10 {offsets = [0, 64], sizes = [16, 8], strides = [1, 1]} : vector<32x96xf32> to vector<16x8xf32>
    %cst_12 = arith.constant dense<0.000000e+00> : vector<16x16xf32>
    %17 = tpu.matmul %14, %15, %cst_12 {dimension_numbers = #tpu.dot_dimension_numbers<[1], [1], [0], [0], [0, 0, 1, 0], [], []>} : vector<16x8xf32>, vector<16x8xf32>, vector<16x16xf32> -> vector<16x16xf32>
    %cst_13 = arith.constant dense<0xFF800000> : vector<16xf32>
    %18 = vector.multi_reduction <maximumf>, %17, %cst_13 [1] : vector<16x16xf32> to vector<16xf32>
    %19 = vector.shape_cast %18 : vector<16xf32> to vector<16x1xf32>
    %20 = vector.broadcast %19 : vector<16x1xf32> to vector<16x16xf32>
    %21 = arith.subf %17, %20 : vector<16x16xf32>
    %22 = math.exp %21 : vector<16x16xf32>
    %cst_14 = arith.constant dense<0.000000e+00> : vector<16xf32>
    %23 = vector.multi_reduction <add>, %22, %cst_14 [1] : vector<16x16xf32> to vector<16xf32>
    %24 = vector.shape_cast %23 : vector<16xf32> to vector<16x1xf32>
    %25 = vector.broadcast %24 : vector<16x1xf32> to vector<16x16xf32>
    %26 = arith.divf %22, %25 : vector<16x16xf32>
    %cst_15 = arith.constant dense<0.000000e+00> : vector<16x8xf32>
    %27 = tpu.matmul %26, %16, %cst_15 {dimension_numbers = #tpu.dot_dimension_numbers<[1], [0], [0], [1], [0, 0, 1, 1], [], []>} : vector<16x16xf32>, vector<16x8xf32>, vector<16x8xf32> -> vector<16x8xf32>
    %28 = vector.extract_strided_slice %12 {offsets = [0, 0], sizes = [8, 32], strides = [1, 1]} : vector<32x32xf32> to vector<8x32xf32>
    %cst_16 = arith.constant dense<0.000000e+00> : vector<16x32xf32>
    %29 = tpu.matmul %27, %28, %cst_16 {dimension_numbers = #tpu.dot_dimension_numbers<[1], [0], [0], [1], [0, 0, 1, 1], [], []>} : vector<16x8xf32>, vector<8x32xf32>, vector<16x32xf32> -> vector<16x32xf32>
    %30 = arith.addf %13, %29 : vector<16x32xf32>
    %31 = vector.extract_strided_slice %10 {offsets = [0, 8], sizes = [16, 8], strides = [1, 1]} : vector<32x96xf32> to vector<16x8xf32>
    %32 = vector.extract_strided_slice %10 {offsets = [0, 40], sizes = [16, 8], strides = [1, 1]} : vector<32x96xf32> to vector<16x8xf32>
    %33 = vector.extract_strided_slice %10 {offsets = [0, 72], sizes = [16, 8], strides = [1, 1]} : vector<32x96xf32> to vector<16x8xf32>
    %cst_17 = arith.constant dense<0.000000e+00> : vector<16x16xf32>
    %34 = tpu.matmul %31, %32, %cst_17 {dimension_numbers = #tpu.dot_dimension_numbers<[1], [1], [0], [0], [0, 0, 1, 0], [], []>} : vector<16x8xf32>, vector<16x8xf32>, vector<16x16xf32> -> vector<16x16xf32>
    %cst_18 = arith.constant dense<0xFF800000> : vector<16xf32>
    %35 = vector.multi_reduction <maximumf>, %34, %cst_18 [1] : vector<16x16xf32> to vector<16xf32>
    %36 = vector.shape_cast %35 : vector<16xf32> to vector<16x1xf32>
    %37 = vector.broadcast %36 : vector<16x1xf32> to vector<16x16xf32>
    %38 = arith.subf %34, %37 : vector<16x16xf32>
    %39 = math.exp %38 : vector<16x16xf32>
    %cst_19 = arith.constant dense<0.000000e+00> : vector<16xf32>
    %40 = vector.multi_reduction <add>, %39, %cst_19 [1] : vector<16x16xf32> to vector<16xf32>
    %41 = vector.shape_cast %40 : vector<16xf32> to vector<16x1xf32>
    %42 = vector.broadcast %41 : vector<16x1xf32> to vector<16x16xf32>
    %43 = arith.divf %39, %42 : vector<16x16xf32>
    %cst_20 = arith.constant dense<0.000000e+00> : vector<16x8xf32>
    %44 = tpu.matmul %43, %33, %cst_20 {dimension_numbers = #tpu.dot_dimension_numbers<[1], [0], [0], [1], [0, 0, 1, 1], [], []>} : vector<16x16xf32>, vector<16x8xf32>, vector<16x8xf32> -> vector<16x8xf32>
    %45 = vector.extract_strided_slice %12 {offsets = [8, 0], sizes = [8, 32], strides = [1, 1]} : vector<32x32xf32> to vector<8x32xf32>
    %cst_21 = arith.constant dense<0.000000e+00> : vector<16x32xf32>
    %46 = tpu.matmul %44, %45, %cst_21 {dimension_numbers = #tpu.dot_dimension_numbers<[1], [0], [0], [1], [0, 0, 1, 1], [], []>} : vector<16x8xf32>, vector<8x32xf32>, vector<16x32xf32> -> vector<16x32xf32>
    %47 = arith.addf %30, %46 : vector<16x32xf32>
    %48 = vector.extract_strided_slice %10 {offsets = [0, 16], sizes = [16, 8], strides = [1, 1]} : vector<32x96xf32> to vector<16x8xf32>
    %49 = vector.extract_strided_slice %10 {offsets = [0, 48], sizes = [16, 8], strides = [1, 1]} : vector<32x96xf32> to vector<16x8xf32>
    %50 = vector.extract_strided_slice %10 {offsets = [0, 80], sizes = [16, 8], strides = [1, 1]} : vector<32x96xf32> to vector<16x8xf32>
    %cst_22 = arith.constant dense<0.000000e+00> : vector<16x16xf32>
    %51 = tpu.matmul %48, %49, %cst_22 {dimension_numbers = #tpu.dot_dimension_numbers<[1], [1], [0], [0], [0, 0, 1, 0], [], []>} : vector<16x8xf32>, vector<16x8xf32>, vector<16x16xf32> -> vector<16x16xf32>
    %cst_23 = arith.constant dense<0xFF800000> : vector<16xf32>
    %52 = vector.multi_reduction <maximumf>, %51, %cst_23 [1] : vector<16x16xf32> to vector<16xf32>
    %53 = vector.shape_cast %52 : vector<16xf32> to vector<16x1xf32>
    %54 = vector.broadcast %53 : vector<16x1xf32> to vector<16x16xf32>
    %55 = arith.subf %51, %54 : vector<16x16xf32>
    %56 = math.exp %55 : vector<16x16xf32>
    %cst_24 = arith.constant dense<0.000000e+00> : vector<16xf32>
    %57 = vector.multi_reduction <add>, %56, %cst_24 [1] : vector<16x16xf32> to vector<16xf32>
    %58 = vector.shape_cast %57 : vector<16xf32> to vector<16x1xf32>
    %59 = vector.broadcast %58 : vector<16x1xf32> to vector<16x16xf32>
    %60 = arith.divf %56, %59 : vector<16x16xf32>
    %cst_25 = arith.constant dense<0.000000e+00> : vector<16x8xf32>
    %61 = tpu.matmul %60, %50, %cst_25 {dimension_numbers = #tpu.dot_dimension_numbers<[1], [0], [0], [1], [0, 0, 1, 1], [], []>} : vector<16x16xf32>, vector<16x8xf32>, vector<16x8xf32> -> vector<16x8xf32>
    %62 = vector.extract_strided_slice %12 {offsets = [16, 0], sizes = [8, 32], strides = [1, 1]} : vector<32x32xf32> to vector<8x32xf32>
    %cst_26 = arith.constant dense<0.000000e+00> : vector<16x32xf32>
    %63 = tpu.matmul %61, %62, %cst_26 {dimension_numbers = #tpu.dot_dimension_numbers<[1], [0], [0], [1], [0, 0, 1, 1], [], []>} : vector<16x8xf32>, vector<8x32xf32>, vector<16x32xf32> -> vector<16x32xf32>
    %64 = arith.addf %47, %63 : vector<16x32xf32>
    %65 = vector.extract_strided_slice %10 {offsets = [0, 24], sizes = [16, 8], strides = [1, 1]} : vector<32x96xf32> to vector<16x8xf32>
    %66 = vector.extract_strided_slice %10 {offsets = [0, 56], sizes = [16, 8], strides = [1, 1]} : vector<32x96xf32> to vector<16x8xf32>
    %67 = vector.extract_strided_slice %10 {offsets = [0, 88], sizes = [16, 8], strides = [1, 1]} : vector<32x96xf32> to vector<16x8xf32>
    %cst_27 = arith.constant dense<0.000000e+00> : vector<16x16xf32>
    %68 = tpu.matmul %65, %66, %cst_27 {dimension_numbers = #tpu.dot_dimension_numbers<[1], [1], [0], [0], [0, 0, 1, 0], [], []>} : vector<16x8xf32>, vector<16x8xf32>, vector<16x16xf32> -> vector<16x16xf32>
    %cst_28 = arith.constant dense<0xFF800000> : vector<16xf32>
    %69 = vector.multi_reduction <maximumf>, %68, %cst_28 [1] : vector<16x16xf32> to vector<16xf32>
    %70 = vector.shape_cast %69 : vector<16xf32> to vector<16x1xf32>
    %71 = vector.broadcast %70 : vector<16x1xf32> to vector<16x16xf32>
    %72 = arith.subf %68, %71 : vector<16x16xf32>
    %73 = math.exp %72 : vector<16x16xf32>
    %cst_29 = arith.constant dense<0.000000e+00> : vector<16xf32>
    %74 = vector.multi_reduction <add>, %73, %cst_29 [1] : vector<16x16xf32> to vector<16xf32>
    %75 = vector.shape_cast %74 : vector<16xf32> to vector<16x1xf32>
    %76 = vector.broadcast %75 : vector<16x1xf32> to vector<16x16xf32>
    %77 = arith.divf %73, %76 : vector<16x16xf32>
    %cst_30 = arith.constant dense<0.000000e+00> : vector<16x8xf32>
    %78 = tpu.matmul %77, %67, %cst_30 {dimension_numbers = #tpu.dot_dimension_numbers<[1], [0], [0], [1], [0, 0, 1, 1], [], []>} : vector<16x16xf32>, vector<16x8xf32>, vector<16x8xf32> -> vector<16x8xf32>
    %79 = vector.extract_strided_slice %12 {offsets = [24, 0], sizes = [8, 32], strides = [1, 1]} : vector<32x32xf32> to vector<8x32xf32>
    %cst_31 = arith.constant dense<0.000000e+00> : vector<16x32xf32>
    %80 = tpu.matmul %78, %79, %cst_31 {dimension_numbers = #tpu.dot_dimension_numbers<[1], [0], [0], [1], [0, 0, 1, 1], [], []>} : vector<16x8xf32>, vector<8x32xf32>, vector<16x32xf32> -> vector<16x32xf32>
    %81 = arith.addf %64, %80 : vector<16x32xf32>
    %c0_32 = arith.constant 0 : index
    %c0_33 = arith.constant 0 : index
    %82 = vector.load %arg15[%c0_32, %c0_33] : memref<32x32xf32, #tpu.memory_space<vmem>>, vector<16x32xf32>
    tpu.vector_store %arg15[%c0_32, %c0_33], %81 {strides = array<i32>} : memref<32x32xf32, #tpu.memory_space<vmem>>, vector<16x32xf32>,
    %cst_34 = arith.constant 0.000000e+00 : f32
    %83 = vector.broadcast %cst_34 : f32 to vector<16x32xf32>
    %84 = vector.extract_strided_slice %10 {offsets = [16, 0], sizes = [16, 8], strides = [1, 1]} : vector<32x96xf32> to vector<16x8xf32>
    %85 = vector.extract_strided_slice %10 {offsets = [16, 32], sizes = [16, 8], strides = [1, 1]} : vector<32x96xf32> to vector<16x8xf32>
    %86 = vector.extract_strided_slice %10 {offsets = [16, 64], sizes = [16, 8], strides = [1, 1]} : vector<32x96xf32> to vector<16x8xf32>
    %cst_35 = arith.constant dense<0.000000e+00> : vector<16x16xf32>
    %87 = tpu.matmul %84, %85, %cst_35 {dimension_numbers = #tpu.dot_dimension_numbers<[1], [1], [0], [0], [0, 0, 1, 0], [], []>} : vector<16x8xf32>, vector<16x8xf32>, vector<16x16xf32> -> vector<16x16xf32>
    %cst_36 = arith.constant dense<0xFF800000> : vector<16xf32>
    %88 = vector.multi_reduction <maximumf>, %87, %cst_36 [1] : vector<16x16xf32> to vector<16xf32>
    %89 = vector.shape_cast %88 : vector<16xf32> to vector<16x1xf32>
    %90 = vector.broadcast %89 : vector<16x1xf32> to vector<16x16xf32>
    %91 = arith.subf %87, %90 : vector<16x16xf32>
    %92 = math.exp %91 : vector<16x16xf32>
    %cst_37 = arith.constant dense<0.000000e+00> : vector<16xf32>
    %93 = vector.multi_reduction <add>, %92, %cst_37 [1] : vector<16x16xf32> to vector<16xf32>
    %94 = vector.shape_cast %93 : vector<16xf32> to vector<16x1xf32>
    %95 = vector.broadcast %94 : vector<16x1xf32> to vector<16x16xf32>
    %96 = arith.divf %92, %95 : vector<16x16xf32>
    %cst_38 = arith.constant dense<0.000000e+00> : vector<16x8xf32>
    %97 = tpu.matmul %96, %86, %cst_38 {dimension_numbers = #tpu.dot_dimension_numbers<[1], [0], [0], [1], [0, 0, 1, 1], [], []>} : vector<16x16xf32>, vector<16x8xf32>, vector<16x8xf32> -> vector<16x8xf32>
    %98 = vector.extract_strided_slice %12 {offsets = [0, 0], sizes = [8, 32], strides = [1, 1]} : vector<32x32xf32> to vector<8x32xf32>
    %cst_39 = arith.constant dense<0.000000e+00> : vector<16x32xf32>
    %99 = tpu.matmul %97, %98, %cst_39 {dimension_numbers = #tpu.dot_dimension_numbers<[1], [0], [0], [1], [0, 0, 1, 1], [], []>} : vector<16x8xf32>, vector<8x32xf32>, vector<16x32xf32> -> vector<16x32xf32>
    %100 = arith.addf %83, %99 : vector<16x32xf32>
    %101 = vector.extract_strided_slice %10 {offsets = [16, 8], sizes = [16, 8], strides = [1, 1]} : vector<32x96xf32> to vector<16x8xf32>
    %102 = vector.extract_strided_slice %10 {offsets = [16, 40], sizes = [16, 8], strides = [1, 1]} : vector<32x96xf32> to vector<16x8xf32>
    %103 = vector.extract_strided_slice %10 {offsets = [16, 72], sizes = [16, 8], strides = [1, 1]} : vector<32x96xf32> to vector<16x8xf32>
    %cst_40 = arith.constant dense<0.000000e+00> : vector<16x16xf32>
    %104 = tpu.matmul %101, %102, %cst_40 {dimension_numbers = #tpu.dot_dimension_numbers<[1], [1], [0], [0], [0, 0, 1, 0], [], []>} : vector<16x8xf32>, vector<16x8xf32>, vector<16x16xf32> -> vector<16x16xf32>
    %cst_41 = arith.constant dense<0xFF800000> : vector<16xf32>
    %105 = vector.multi_reduction <maximumf>, %104, %cst_41 [1] : vector<16x16xf32> to vector<16xf32>
    %106 = vector.shape_cast %105 : vector<16xf32> to vector<16x1xf32>
    %107 = vector.broadcast %106 : vector<16x1xf32> to vector<16x16xf32>
    %108 = arith.subf %104, %107 : vector<16x16xf32>
    %109 = math.exp %108 : vector<16x16xf32>
    %cst_42 = arith.constant dense<0.000000e+00> : vector<16xf32>
    %110 = vector.multi_reduction <add>, %109, %cst_42 [1] : vector<16x16xf32> to vector<16xf32>
    %111 = vector.shape_cast %110 : vector<16xf32> to vector<16x1xf32>
    %112 = vector.broadcast %111 : vector<16x1xf32> to vector<16x16xf32>
    %113 = arith.divf %109, %112 : vector<16x16xf32>
    %cst_43 = arith.constant dense<0.000000e+00> : vector<16x8xf32>
    %114 = tpu.matmul %113, %103, %cst_43 {dimension_numbers = #tpu.dot_dimension_numbers<[1], [0], [0], [1], [0, 0, 1, 1], [], []>} : vector<16x16xf32>, vector<16x8xf32>, vector<16x8xf32> -> vector<16x8xf32>
    %115 = vector.extract_strided_slice %12 {offsets = [8, 0], sizes = [8, 32], strides = [1, 1]} : vector<32x32xf32> to vector<8x32xf32>
    %cst_44 = arith.constant dense<0.000000e+00> : vector<16x32xf32>
    %116 = tpu.matmul %114, %115, %cst_44 {dimension_numbers = #tpu.dot_dimension_numbers<[1], [0], [0], [1], [0, 0, 1, 1], [], []>} : vector<16x8xf32>, vector<8x32xf32>, vector<16x32xf32> -> vector<16x32xf32>
    %117 = arith.addf %100, %116 : vector<16x32xf32>
    %118 = vector.extract_strided_slice %10 {offsets = [16, 16], sizes = [16, 8], strides = [1, 1]} : vector<32x96xf32> to vector<16x8xf32>
    %119 = vector.extract_strided_slice %10 {offsets = [16, 48], sizes = [16, 8], strides = [1, 1]} : vector<32x96xf32> to vector<16x8xf32>
    %120 = vector.extract_strided_slice %10 {offsets = [16, 80], sizes = [16, 8], strides = [1, 1]} : vector<32x96xf32> to vector<16x8xf32>
    %cst_45 = arith.constant dense<0.000000e+00> : vector<16x16xf32>
    %121 = tpu.matmul %118, %119, %cst_45 {dimension_numbers = #tpu.dot_dimension_numbers<[1], [1], [0], [0], [0, 0, 1, 0], [], []>} : vector<16x8xf32>, vector<16x8xf32>, vector<16x16xf32> -> vector<16x16xf32>
    %cst_46 = arith.constant dense<0xFF800000> : vector<16xf32>
    %122 = vector.multi_reduction <maximumf>, %121, %cst_46 [1] : vector<16x16xf32> to vector<16xf32>
    %123 = vector.shape_cast %122 : vector<16xf32> to vector<16x1xf32>
    %124 = vector.broadcast %123 : vector<16x1xf32> to vector<16x16xf32>
    %125 = arith.subf %121, %124 : vector<16x16xf32>
    %126 = math.exp %125 : vector<16x16xf32>
    %cst_47 = arith.constant dense<0.000000e+00> : vector<16xf32>
    %127 = vector.multi_reduction <add>, %126, %cst_47 [1] : vector<16x16xf32> to vector<16xf32>
    %128 = vector.shape_cast %127 : vector<16xf32> to vector<16x1xf32>
    %129 = vector.broadcast %128 : vector<16x1xf32> to vector<16x16xf32>
    %130 = arith.divf %126, %129 : vector<16x16xf32>
    %cst_48 = arith.constant dense<0.000000e+00> : vector<16x8xf32>
    %131 = tpu.matmul %130, %120, %cst_48 {dimension_numbers = #tpu.dot_dimension_numbers<[1], [0], [0], [1], [0, 0, 1, 1], [], []>} : vector<16x16xf32>, vector<16x8xf32>, vector<16x8xf32> -> vector<16x8xf32>
    %132 = vector.extract_strided_slice %12 {offsets = [16, 0], sizes = [8, 32], strides = [1, 1]} : vector<32x32xf32> to vector<8x32xf32>
    %cst_49 = arith.constant dense<0.000000e+00> : vector<16x32xf32>
    %133 = tpu.matmul %131, %132, %cst_49 {dimension_numbers = #tpu.dot_dimension_numbers<[1], [0], [0], [1], [0, 0, 1, 1], [], []>} : vector<16x8xf32>, vector<8x32xf32>, vector<16x32xf32> -> vector<16x32xf32>
    %134 = arith.addf %117, %133 : vector<16x32xf32>
    %135 = vector.extract_strided_slice %10 {offsets = [16, 24], sizes = [16, 8], strides = [1, 1]} : vector<32x96xf32> to vector<16x8xf32>
    %136 = vector.extract_strided_slice %10 {offsets = [16, 56], sizes = [16, 8], strides = [1, 1]} : vector<32x96xf32> to vector<16x8xf32>
    %137 = vector.extract_strided_slice %10 {offsets = [16, 88], sizes = [16, 8], strides = [1, 1]} : vector<32x96xf32> to vector<16x8xf32>
    %cst_50 = arith.constant dense<0.000000e+00> : vector<16x16xf32>
    %138 = tpu.matmul %135, %136, %cst_50 {dimension_numbers = #tpu.dot_dimension_numbers<[1], [1], [0], [0], [0, 0, 1, 0], [], []>} : vector<16x8xf32>, vector<16x8xf32>, vector<16x16xf32> -> vector<16x16xf32>
    %cst_51 = arith.constant dense<0xFF800000> : vector<16xf32>
    %139 = vector.multi_reduction <maximumf>, %138, %cst_51 [1] : vector<16x16xf32> to vector<16xf32>
    %140 = vector.shape_cast %139 : vector<16xf32> to vector<16x1xf32>
    %141 = vector.broadcast %140 : vector<16x1xf32> to vector<16x16xf32>
    %142 = arith.subf %138, %141 : vector<16x16xf32>
    %143 = math.exp %142 : vector<16x16xf32>
    %cst_52 = arith.constant dense<0.000000e+00> : vector<16xf32>
    %144 = vector.multi_reduction <add>, %143, %cst_52 [1] : vector<16x16xf32> to vector<16xf32>
    %145 = vector.shape_cast %144 : vector<16xf32> to vector<16x1xf32>
    %146 = vector.broadcast %145 : vector<16x1xf32> to vector<16x16xf32>
    %147 = arith.divf %143, %146 : vector<16x16xf32>
    %cst_53 = arith.constant dense<0.000000e+00> : vector<16x8xf32>
    %148 = tpu.matmul %147, %137, %cst_53 {dimension_numbers = #tpu.dot_dimension_numbers<[1], [0], [0], [1], [0, 0, 1, 1], [], []>} : vector<16x16xf32>, vector<16x8xf32>, vector<16x8xf32> -> vector<16x8xf32>
    %149 = vector.extract_strided_slice %12 {offsets = [24, 0], sizes = [8, 32], strides = [1, 1]} : vector<32x32xf32> to vector<8x32xf32>
    %cst_54 = arith.constant dense<0.000000e+00> : vector<16x32xf32>
    %150 = tpu.matmul %148, %149, %cst_54 {dimension_numbers = #tpu.dot_dimension_numbers<[1], [0], [0], [1], [0, 0, 1, 1], [], []>} : vector<16x8xf32>, vector<8x32xf32>, vector<16x32xf32> -> vector<16x32xf32>
    %151 = arith.addf %134, %150 : vector<16x32xf32>
    %c16 = arith.constant 16 : index
    %c0_55 = arith.constant 0 : index
    %152 = vector.load %arg15[%c16, %c0_55] : memref<32x32xf32, #tpu.memory_space<vmem>>, vector<16x32xf32>
    tpu.vector_store %arg15[%c16, %c0_55], %151 {strides = array<i32>} : memref<32x32xf32, #tpu.memory_space<vmem>>, vector<16x32xf32>,
    %c0_56 = arith.constant 0 : index
    %c0_57 = arith.constant 0 : index
    %153 = vector.load %arg15[%c0_56, %c0_57] : memref<32x32xf32, #tpu.memory_space<vmem>>, vector<32x32xf32>
    %c0_58 = arith.constant 0 : index
    %c0_59 = arith.constant 0 : index
    %c0_60 = arith.constant 0 : index
    %154 = vector.load %arg5[%c0_58, %c0_59, %c0_60] : memref<1x1x32xf32, #tpu.memory_space<vmem>>, vector<1x1x32xf32>
    %155 = vector.shape_cast %154 : vector<1x1x32xf32> to vector<1x32xf32>
    %156 = vector.broadcast %155 : vector<1x32xf32> to vector<32x32xf32>
    %157 = arith.addf %153, %156 : vector<32x32xf32>
    %158 = arith.addf %3, %157 : vector<32x32xf32>
    %c0_61 = arith.constant 0 : index
    %c0_62 = arith.constant 0 : index
    %c0_63 = arith.constant 0 : index
    %159 = vector.load %arg6[%c0_61, %c0_62, %c0_63] : memref<1x1x32xf32, #tpu.memory_space<vmem>>, vector<1x1x32xf32>
    %160 = vector.shape_cast %159 : vector<1x1x32xf32> to vector<1x32xf32>
    %c0_64 = arith.constant 0 : index
    %c0_65 = arith.constant 0 : index
    %c0_66 = arith.constant 0 : index
    %161 = vector.load %arg7[%c0_64, %c0_65, %c0_66] : memref<1x1x32xf32, #tpu.memory_space<vmem>>, vector<1x1x32xf32>
    %162 = vector.shape_cast %161 : vector<1x1x32xf32> to vector<1x32xf32>
    %cst_67 = arith.constant dense<0.000000e+00> : vector<32xf32>
    %163 = vector.multi_reduction <add>, %158, %cst_67 [1] : vector<32x32xf32> to vector<32xf32>
    %164 = vector.shape_cast %163 : vector<32xf32> to vector<32x1xf32>
    %cst_68 = arith.constant 3.200000e+01 : f32
    %165 = vector.broadcast %cst_68 : f32 to vector<32x1xf32>
    %166 = arith.divf %164, %165 : vector<32x1xf32>
    %167 = vector.broadcast %166 : vector<32x1xf32> to vector<32x32xf32>
    %168 = arith.subf %158, %167 : vector<32x32xf32>
    %169 = arith.mulf %168, %168 : vector<32x32xf32>
    %cst_69 = arith.constant dense<0.000000e+00> : vector<32xf32>
    %170 = vector.multi_reduction <add>, %169, %cst_69 [1] : vector<32x32xf32> to vector<32xf32>
    %171 = vector.shape_cast %170 : vector<32xf32> to vector<32x1xf32>
    %cst_70 = arith.constant 3.200000e+01 : f32
    %172 = vector.broadcast %cst_70 : f32 to vector<32x1xf32>
    %173 = arith.divf %171, %172 : vector<32x1xf32>
    %cst_71 = arith.constant 9.99999974E-6 : f32
    %174 = vector.broadcast %cst_71 : f32 to vector<32x1xf32>
    %175 = arith.addf %173, %174 : vector<32x1xf32>
    %176 = math.rsqrt %175 : vector<32x1xf32>
    %177 = vector.broadcast %176 : vector<32x1xf32> to vector<32x32xf32>
    %178 = arith.mulf %168, %177 : vector<32x32xf32>
    %179 = vector.broadcast %160 : vector<1x32xf32> to vector<32x32xf32>
    %180 = arith.mulf %178, %179 : vector<32x32xf32>
    %181 = vector.broadcast %162 : vector<1x32xf32> to vector<32x32xf32>
    %182 = arith.addf %180, %181 : vector<32x32xf32>
    %c0_72 = arith.constant 0 : index
    %c0_73 = arith.constant 0 : index
    %c0_74 = arith.constant 0 : index
    %183 = vector.load %arg8[%c0_72, %c0_73, %c0_74] : memref<1x32x64xf32, #tpu.memory_space<vmem>>, vector<1x32x64xf32>
    %184 = vector.shape_cast %183 : vector<1x32x64xf32> to vector<32x64xf32>
    %cst_75 = arith.constant dense<0.000000e+00> : vector<32x64xf32>
    %185 = tpu.matmul %182, %184, %cst_75 {dimension_numbers = #tpu.dot_dimension_numbers<[1], [0], [0], [1], [0, 0, 1, 1], [], []>} : vector<32x32xf32>, vector<32x64xf32>, vector<32x64xf32> -> vector<32x64xf32>
    %c0_76 = arith.constant 0 : index
    %c0_77 = arith.constant 0 : index
    %c0_78 = arith.constant 0 : index
    %186 = vector.load %arg9[%c0_76, %c0_77, %c0_78] : memref<1x1x64xf32, #tpu.memory_space<vmem>>, vector<1x1x64xf32>
    %187 = vector.shape_cast %186 : vector<1x1x64xf32> to vector<1x64xf32>
    %188 = vector.broadcast %187 : vector<1x64xf32> to vector<32x64xf32>
    %189 = arith.addf %185, %188 : vector<32x64xf32>
    %cst_79 = arith.constant 5.000000e-01 : f32
    %190 = vector.broadcast %cst_79 : f32 to vector<32x64xf32>
    %191 = arith.mulf %190, %189 : vector<32x64xf32>
    %cst_80 = arith.constant 0.707106769 : f32
    %192 = vector.broadcast %cst_80 : f32 to vector<32x64xf32>
    %193 = arith.mulf %189, %192 : vector<32x64xf32>
    %cst_81 = arith.constant 0.000000e+00 : f32
    %194 = vector.broadcast %cst_81 : f32 to vector<32x64xf32>
    %195 = arith.cmpf oge, %193, %194 : vector<32x64xf32>
    %cst_82 = arith.constant 1.000000e+00 : f32
    %cst_83 = arith.constant -1.000000e+00 : f32
    %196 = vector.broadcast %cst_82 : f32 to vector<32x64xf32>
    %197 = vector.broadcast %cst_83 : f32 to vector<32x64xf32>
    %198 = arith.select %195, %196, %197 : vector<32x64xi1>, vector<32x64xf32>
    %199 = math.absf %193 : vector<32x64xf32>
    %cst_84 = arith.constant 0.327591091 : f32
    %200 = vector.broadcast %cst_84 : f32 to vector<32x64xf32>
    %201 = arith.mulf %200, %199 : vector<32x64xf32>
    %cst_85 = arith.constant 1.000000e+00 : f32
    %202 = vector.broadcast %cst_85 : f32 to vector<32x64xf32>
    %203 = arith.addf %202, %201 : vector<32x64xf32>
    %cst_86 = arith.constant 1.000000e+00 : f32
    %204 = vector.broadcast %cst_86 : f32 to vector<32x64xf32>
    %205 = arith.divf %204, %203 : vector<32x64xf32>
    %cst_87 = arith.constant 1.06140542 : f32
    %206 = vector.broadcast %cst_87 : f32 to vector<32x64xf32>
    %207 = arith.mulf %205, %206 : vector<32x64xf32>
    %cst_88 = arith.constant -1.45315206 : f32
    %208 = vector.broadcast %cst_88 : f32 to vector<32x64xf32>
    %209 = arith.addf %208, %207 : vector<32x64xf32>
    %210 = arith.mulf %205, %209 : vector<32x64xf32>
    %cst_89 = arith.constant 1.42141378 : f32
    %211 = vector.broadcast %cst_89 : f32 to vector<32x64xf32>
    %212 = arith.addf %211, %210 : vector<32x64xf32>
    %213 = arith.mulf %205, %212 : vector<32x64xf32>
    %cst_90 = arith.constant -0.284496725 : f32
    %214 = vector.broadcast %cst_90 : f32 to vector<32x64xf32>
    %215 = arith.addf %214, %213 : vector<32x64xf32>
    %216 = arith.mulf %205, %215 : vector<32x64xf32>
    %cst_91 = arith.constant 0.254829586 : f32
    %217 = vector.broadcast %cst_91 : f32 to vector<32x64xf32>
    %218 = arith.addf %217, %216 : vector<32x64xf32>
    %219 = arith.mulf %205, %218 : vector<32x64xf32>
    %cst_92 = arith.constant 0.000000e+00 : f32
    %220 = vector.broadcast %cst_92 : f32 to vector<32x64xf32>
    %221 = arith.subf %220, %199 : vector<32x64xf32>
    %222 = arith.mulf %221, %199 : vector<32x64xf32>
    %223 = math.exp %222 : vector<32x64xf32>
    %224 = arith.mulf %219, %223 : vector<32x64xf32>
    %cst_93 = arith.constant 1.000000e+00 : f32
    %225 = vector.broadcast %cst_93 : f32 to vector<32x64xf32>
    %226 = arith.subf %225, %224 : vector<32x64xf32>
    %227 = arith.mulf %198, %226 : vector<32x64xf32>
    %cst_94 = arith.constant 1.000000e+00 : f32
    %228 = vector.broadcast %cst_94 : f32 to vector<32x64xf32>
    %229 = arith.addf %228, %227 : vector<32x64xf32>
    %230 = arith.mulf %191, %229 : vector<32x64xf32>
    %c0_95 = arith.constant 0 : index
    %c0_96 = arith.constant 0 : index
    %c0_97 = arith.constant 0 : index
    %231 = vector.load %arg10[%c0_95, %c0_96, %c0_97] : memref<1x64x32xf32, #tpu.memory_space<vmem>>, vector<1x64x32xf32>
    %232 = vector.shape_cast %231 : vector<1x64x32xf32> to vector<64x32xf32>
    %cst_98 = arith.constant dense<0.000000e+00> : vector<32x32xf32>
    %233 = tpu.matmul %230, %232, %cst_98 {dimension_numbers = #tpu.dot_dimension_numbers<[1], [0], [0], [1], [0, 0, 1, 1], [], []>} : vector<32x64xf32>, vector<64x32xf32>, vector<32x32xf32> -> vector<32x32xf32>
    %c0_99 = arith.constant 0 : index
    %c0_100 = arith.constant 0 : index
    %c0_101 = arith.constant 0 : index
    %234 = vector.load %arg11[%c0_99, %c0_100, %c0_101] : memref<1x1x32xf32, #tpu.memory_space<vmem>>, vector<1x1x32xf32>
    %235 = vector.shape_cast %234 : vector<1x1x32xf32> to vector<1x32xf32>
    %236 = vector.broadcast %235 : vector<1x32xf32> to vector<32x32xf32>
    %237 = arith.addf %233, %236 : vector<32x32xf32>
    %238 = arith.addf %182, %237 : vector<32x32xf32>
    %c0_102 = arith.constant 0 : index
    %c0_103 = arith.constant 0 : index
    %c0_104 = arith.constant 0 : index
    %239 = vector.load %arg12[%c0_102, %c0_103, %c0_104] : memref<1x1x32xf32, #tpu.memory_space<vmem>>, vector<1x1x32xf32>
    %240 = vector.shape_cast %239 : vector<1x1x32xf32> to vector<1x32xf32>
    %c0_105 = arith.constant 0 : index
    %c0_106 = arith.constant 0 : index
    %c0_107 = arith.constant 0 : index
    %241 = vector.load %arg13[%c0_105, %c0_106, %c0_107] : memref<1x1x32xf32, #tpu.memory_space<vmem>>, vector<1x1x32xf32>
    %242 = vector.shape_cast %241 : vector<1x1x32xf32> to vector<1x32xf32>
    %cst_108 = arith.constant dense<0.000000e+00> : vector<32xf32>
    %243 = vector.multi_reduction <add>, %238, %cst_108 [1] : vector<32x32xf32> to vector<32xf32>
    %244 = vector.shape_cast %243 : vector<32xf32> to vector<32x1xf32>
    %cst_109 = arith.constant 3.200000e+01 : f32
    %245 = vector.broadcast %cst_109 : f32 to vector<32x1xf32>
    %246 = arith.divf %244, %245 : vector<32x1xf32>
    %247 = vector.broadcast %246 : vector<32x1xf32> to vector<32x32xf32>
    %248 = arith.subf %238, %247 : vector<32x32xf32>
    %249 = arith.mulf %248, %248 : vector<32x32xf32>
    %cst_110 = arith.constant dense<0.000000e+00> : vector<32xf32>
    %250 = vector.multi_reduction <add>, %249, %cst_110 [1] : vector<32x32xf32> to vector<32xf32>
    %251 = vector.shape_cast %250 : vector<32xf32> to vector<32x1xf32>
    %cst_111 = arith.constant 3.200000e+01 : f32
    %252 = vector.broadcast %cst_111 : f32 to vector<32x1xf32>
    %253 = arith.divf %251, %252 : vector<32x1xf32>
    %cst_112 = arith.constant 9.99999974E-6 : f32
    %254 = vector.broadcast %cst_112 : f32 to vector<32x1xf32>
    %255 = arith.addf %253, %254 : vector<32x1xf32>
    %256 = math.rsqrt %255 : vector<32x1xf32>
    %257 = vector.broadcast %256 : vector<32x1xf32> to vector<32x32xf32>
    %258 = arith.mulf %248, %257 : vector<32x32xf32>
    %259 = vector.broadcast %240 : vector<1x32xf32> to vector<32x32xf32>
    %260 = arith.mulf %258, %259 : vector<32x32xf32>
    %261 = vector.broadcast %242 : vector<1x32xf32> to vector<32x32xf32>
    %262 = arith.addf %260, %261 : vector<32x32xf32>
    %c0_113 = arith.constant 0 : index
    %c0_114 = arith.constant 0 : index
    %263 = vector.load %arg14[%c0_113, %c0_114] : memref<32x32xf32, #tpu.memory_space<vmem>>, vector<32x32xf32>
    tpu.vector_store %arg14[%c0_113, %c0_114], %262 {strides = array<i32>} : memref<32x32xf32, #tpu.memory_space<vmem>>, vector<32x32xf32>,
    return
  }
  func.func @transform_0(%arg0: i32) -> (i32, i32) {
    %c0_i32 = arith.constant 0 : i32
    %c0_i32_0 = arith.constant 0 : i32
    %c0_i32_1 = arith.constant 0 : i32
    return %c0_i32, %c0_i32_0 : i32, i32
  }
  func.func @transform_1(%arg0: i32) -> (i32, i32, i32) {
    %c0_i32 = arith.constant 0 : i32
    %c0_i32_0 = arith.constant 0 : i32
    %c0_i32_1 = arith.constant 0 : i32
    return %arg0, %c0_i32, %c0_i32_0 : i32, i32, i32
  }
  func.func @transform_2(%arg0: i32) -> (i32, i32, i32) {
    %c0_i32 = arith.constant 0 : i32
    %c0_i32_0 = arith.constant 0 : i32
    %c0_i32_1 = arith.constant 0 : i32
    return %arg0, %c0_i32, %c0_i32_0 : i32, i32, i32
  }
  func.func @transform_3(%arg0: i32) -> (i32, i32, i32) {
    %c0_i32 = arith.constant 0 : i32
    %c0_i32_0 = arith.constant 0 : i32
    %c0_i32_1 = arith.constant 0 : i32
    return %arg0, %c0_i32, %c0_i32_0 : i32, i32, i32
  }
  func.func @transform_4(%arg0: i32) -> (i32, i32, i32) {
    %c0_i32 = arith.constant 0 : i32
    %c0_i32_0 = arith.constant 0 : i32
    %c0_i32_1 = arith.constant 0 : i32
    return %arg0, %c0_i32, %c0_i32_0 : i32, i32, i32
  }
  func.func @transform_5(%arg0: i32) -> (i32, i32, i32) {
    %c0_i32 = arith.constant 0 : i32
    %c0_i32_0 = arith.constant 0 : i32
    %c0_i32_1 = arith.constant 0 : i32
    return %arg0, %c0_i32, %c0_i32_0 : i32, i32, i32
  }
  func.func @transform_6(%arg0: i32) -> (i32, i32, i32) {
    %c0_i32 = arith.constant 0 : i32
    %c0_i32_0 = arith.constant 0 : i32
    %c0_i32_1 = arith.constant 0 : i32
    return %arg0, %c0_i32, %c0_i32_0 : i32, i32, i32
  }
  func.func @transform_7(%arg0: i32) -> (i32, i32, i32) {
    %c0_i32 = arith.constant 0 : i32
    %c0_i32_0 = arith.constant 0 : i32
    %c0_i32_1 = arith.constant 0 : i32
    return %arg0, %c0_i32, %c0_i32_0 : i32, i32, i32
  }
  func.func @transform_8(%arg0: i32) -> (i32, i32, i32) {
    %c0_i32 = arith.constant 0 : i32
    %c0_i32_0 = arith.constant 0 : i32
    %c0_i32_1 = arith.constant 0 : i32
    return %arg0, %c0_i32, %c0_i32_0 : i32, i32, i32
  }
  func.func @transform_9(%arg0: i32) -> (i32, i32, i32) {
    %c0_i32 = arith.constant 0 : i32
    %c0_i32_0 = arith.constant 0 : i32
    %c0_i32_1 = arith.constant 0 : i32
    return %arg0, %c0_i32, %c0_i32_0 : i32, i32, i32
  }
  func.func @transform_10(%arg0: i32) -> (i32, i32, i32) {
    %c0_i32 = arith.constant 0 : i32
    %c0_i32_0 = arith.constant 0 : i32
    %c0_i32_1 = arith.constant 0 : i32
    return %arg0, %c0_i32, %c0_i32_0 : i32, i32, i32
  }
  func.func @transform_11(%arg0: i32) -> (i32, i32, i32) {
    %c0_i32 = arith.constant 0 : i32
    %c0_i32_0 = arith.constant 0 : i32
    %c0_i32_1 = arith.constant 0 : i32
    return %arg0, %c0_i32, %c0_i32_0 : i32, i32, i32
  }
  func.func @transform_12(%arg0: i32) -> (i32, i32, i32) {
    %c0_i32 = arith.constant 0 : i32
    %c0_i32_0 = arith.constant 0 : i32
    %c0_i32_1 = arith.constant 0 : i32
    return %arg0, %c0_i32, %c0_i32_0 : i32, i32, i32
  }
  func.func @transform_13(%arg0: i32) -> (i32, i32) {
    %c0_i32 = arith.constant 0 : i32
    %c0_i32_0 = arith.constant 0 : i32
    %c0_i32_1 = arith.constant 0 : i32
    return %c0_i32, %c0_i32_0 : i32, i32
  }
}

module attributes {stable_mosaic.version = 11 : i64} {
  func.func @_frontend_kernel(%arg0: i32, %arg1: memref<1x67x4xf32, #tpu.memory_space<vmem>>, %arg2: memref<3x33x67xf32, #tpu.memory_space<vmem>>, %arg3: memref<3x4x8xf32, #tpu.memory_space<vmem>>, %arg4: memref<1x8xf32, #tpu.memory_space<vmem>>, %arg5: memref<1x8xf32, #tpu.memory_space<vmem>>, %arg6: memref<1x8xf32, #tpu.memory_space<vmem>>, %arg7: memref<3x16x33xf32, #tpu.memory_space<vmem>>, %arg8: memref<3x8x16xf32, #tpu.memory_space<vmem>>, %arg9: memref<1x16xf32, #tpu.memory_space<vmem>>, %arg10: memref<1x16xf32, #tpu.memory_space<vmem>>, %arg11: memref<1x16xf32, #tpu.memory_space<vmem>>, %arg12: memref<16x32xf32, #tpu.memory_space<vmem>>, %arg13: memref<16x32xf32, #tpu.memory_space<vmem>>, %arg14: memref<1x32xf32, #tpu.memory_space<vmem>>, %arg15: memref<1x32xf32, #tpu.memory_space<vmem>>, %arg16: memref<16x32xf32, #tpu.memory_space<vmem>>, %arg17: memref<16x16xf32, #tpu.memory_space<vmem>>) attributes {dimension_semantics = [#tpu.dimension_semantics<parallel>], iteration_bounds = array<i64: 2>, scalar_prefetch = 0 : i64, scratch_operands = 0 : i64, tpu.core_type = #tpu.core_type<tc>, window_params = [{transform_indices = @transform_0, window_bounds = array<i64: 1, 67, 4>}, {pipeline_mode = #tpu.pipeline_mode<synchronous>, transform_indices = @transform_1, window_bounds = array<i64: 3, 33, 67>}, {pipeline_mode = #tpu.pipeline_mode<synchronous>, transform_indices = @transform_2, window_bounds = array<i64: 3, 4, 8>}, {pipeline_mode = #tpu.pipeline_mode<synchronous>, transform_indices = @transform_3, window_bounds = array<i64: 1, 8>}, {pipeline_mode = #tpu.pipeline_mode<synchronous>, transform_indices = @transform_4, window_bounds = array<i64: 1, 8>}, {pipeline_mode = #tpu.pipeline_mode<synchronous>, transform_indices = @transform_5, window_bounds = array<i64: 1, 8>}, {pipeline_mode = #tpu.pipeline_mode<synchronous>, transform_indices = @transform_6, window_bounds = array<i64: 3, 16, 33>}, {pipeline_mode = #tpu.pipeline_mode<synchronous>, transform_indices = @transform_7, window_bounds = array<i64: 3, 8, 16>}, {pipeline_mode = #tpu.pipeline_mode<synchronous>, transform_indices = @transform_8, window_bounds = array<i64: 1, 16>}, {pipeline_mode = #tpu.pipeline_mode<synchronous>, transform_indices = @transform_9, window_bounds = array<i64: 1, 16>}, {pipeline_mode = #tpu.pipeline_mode<synchronous>, transform_indices = @transform_10, window_bounds = array<i64: 1, 16>}, {pipeline_mode = #tpu.pipeline_mode<synchronous>, transform_indices = @transform_11, window_bounds = array<i64: 16, 32>}, {pipeline_mode = #tpu.pipeline_mode<synchronous>, transform_indices = @transform_12, window_bounds = array<i64: 16, 32>}, {pipeline_mode = #tpu.pipeline_mode<synchronous>, transform_indices = @transform_13, window_bounds = array<i64: 1, 32>}, {pipeline_mode = #tpu.pipeline_mode<synchronous>, transform_indices = @transform_14, window_bounds = array<i64: 1, 32>}, {transform_indices = @transform_15, window_bounds = array<i64: 16, 32>}, {transform_indices = @transform_16, window_bounds = array<i64: 16, 16>}]} {
    %c0 = arith.constant 0 : index
    %c0_0 = arith.constant 0 : index
    %c0_1 = arith.constant 0 : index
    %0 = vector.load %arg1[%c0, %c0_0, %c0_1] : memref<1x67x4xf32, #tpu.memory_space<vmem>>, vector<1x67x4xf32>
    %1 = vector.shape_cast %0 : vector<1x67x4xf32> to vector<67x4xf32>
    %cst = arith.constant 0.000000e+00 : f32
    %2 = vector.broadcast %cst : f32 to vector<33x8xf32>
    %c0_2 = arith.constant 0 : index
    %c0_3 = arith.constant 0 : index
    %c0_4 = arith.constant 0 : index
    %3 = vector.load %arg3[%c0_2, %c0_3, %c0_4] : memref<3x4x8xf32, #tpu.memory_space<vmem>>, vector<1x4x8xf32>
    %4 = vector.shape_cast %3 : vector<1x4x8xf32> to vector<4x8xf32>
    %cst_5 = arith.constant dense<0.000000e+00> : vector<67x8xf32>
    %5 = tpu.matmul %1, %4, %cst_5 {dimension_numbers = #tpu.dot_dimension_numbers<[1], [0], [0], [1], [0, 0, 1, 1], [], []>} : vector<67x4xf32>, vector<4x8xf32>, vector<67x8xf32> -> vector<67x8xf32>
    %c0_6 = arith.constant 0 : index
    %c0_7 = arith.constant 0 : index
    %c0_8 = arith.constant 0 : index
    %6 = vector.load %arg2[%c0_6, %c0_7, %c0_8] : memref<3x33x67xf32, #tpu.memory_space<vmem>>, vector<1x33x67xf32>
    %7 = vector.shape_cast %6 : vector<1x33x67xf32> to vector<33x67xf32>
    %cst_9 = arith.constant dense<0.000000e+00> : vector<33x8xf32>
    %8 = tpu.matmul %7, %5, %cst_9 {dimension_numbers = #tpu.dot_dimension_numbers<[1], [0], [0], [1], [0, 0, 1, 1], [], []>} : vector<33x67xf32>, vector<67x8xf32>, vector<33x8xf32> -> vector<33x8xf32>
    %9 = arith.addf %2, %8 : vector<33x8xf32>
    %c1 = arith.constant 1 : index
    %c0_10 = arith.constant 0 : index
    %c0_11 = arith.constant 0 : index
    %10 = vector.load %arg3[%c1, %c0_10, %c0_11] : memref<3x4x8xf32, #tpu.memory_space<vmem>>, vector<1x4x8xf32>
    %11 = vector.shape_cast %10 : vector<1x4x8xf32> to vector<4x8xf32>
    %cst_12 = arith.constant dense<0.000000e+00> : vector<67x8xf32>
    %12 = tpu.matmul %1, %11, %cst_12 {dimension_numbers = #tpu.dot_dimension_numbers<[1], [0], [0], [1], [0, 0, 1, 1], [], []>} : vector<67x4xf32>, vector<4x8xf32>, vector<67x8xf32> -> vector<67x8xf32>
    %c1_13 = arith.constant 1 : index
    %c0_14 = arith.constant 0 : index
    %c0_15 = arith.constant 0 : index
    %13 = vector.load %arg2[%c1_13, %c0_14, %c0_15] : memref<3x33x67xf32, #tpu.memory_space<vmem>>, vector<1x33x67xf32>
    %14 = vector.shape_cast %13 : vector<1x33x67xf32> to vector<33x67xf32>
    %cst_16 = arith.constant dense<0.000000e+00> : vector<33x8xf32>
    %15 = tpu.matmul %14, %12, %cst_16 {dimension_numbers = #tpu.dot_dimension_numbers<[1], [0], [0], [1], [0, 0, 1, 1], [], []>} : vector<33x67xf32>, vector<67x8xf32>, vector<33x8xf32> -> vector<33x8xf32>
    %16 = arith.addf %9, %15 : vector<33x8xf32>
    %c2 = arith.constant 2 : index
    %c0_17 = arith.constant 0 : index
    %c0_18 = arith.constant 0 : index
    %17 = vector.load %arg3[%c2, %c0_17, %c0_18] : memref<3x4x8xf32, #tpu.memory_space<vmem>>, vector<1x4x8xf32>
    %18 = vector.shape_cast %17 : vector<1x4x8xf32> to vector<4x8xf32>
    %cst_19 = arith.constant dense<0.000000e+00> : vector<67x8xf32>
    %19 = tpu.matmul %1, %18, %cst_19 {dimension_numbers = #tpu.dot_dimension_numbers<[1], [0], [0], [1], [0, 0, 1, 1], [], []>} : vector<67x4xf32>, vector<4x8xf32>, vector<67x8xf32> -> vector<67x8xf32>
    %c2_20 = arith.constant 2 : index
    %c0_21 = arith.constant 0 : index
    %c0_22 = arith.constant 0 : index
    %20 = vector.load %arg2[%c2_20, %c0_21, %c0_22] : memref<3x33x67xf32, #tpu.memory_space<vmem>>, vector<1x33x67xf32>
    %21 = vector.shape_cast %20 : vector<1x33x67xf32> to vector<33x67xf32>
    %cst_23 = arith.constant dense<0.000000e+00> : vector<33x8xf32>
    %22 = tpu.matmul %21, %19, %cst_23 {dimension_numbers = #tpu.dot_dimension_numbers<[1], [0], [0], [1], [0, 0, 1, 1], [], []>} : vector<33x67xf32>, vector<67x8xf32>, vector<33x8xf32> -> vector<33x8xf32>
    %23 = arith.addf %16, %22 : vector<33x8xf32>
    %c0_24 = arith.constant 0 : index
    %c0_25 = arith.constant 0 : index
    %24 = vector.load %arg4[%c0_24, %c0_25] : memref<1x8xf32, #tpu.memory_space<vmem>>, vector<1x8xf32>
    %25 = vector.broadcast %24 : vector<1x8xf32> to vector<33x8xf32>
    %26 = arith.addf %23, %25 : vector<33x8xf32>
    %cst_26 = arith.constant dense<0.000000e+00> : vector<8xf32>
    %27 = vector.multi_reduction <add>, %26, %cst_26 [0] : vector<33x8xf32> to vector<8xf32>
    %28 = vector.shape_cast %27 : vector<8xf32> to vector<1x8xf32>
    %cst_27 = arith.constant 3.300000e+01 : f32
    %29 = vector.broadcast %cst_27 : f32 to vector<1x8xf32>
    %30 = arith.divf %28, %29 : vector<1x8xf32>
    %31 = vector.broadcast %30 : vector<1x8xf32> to vector<33x8xf32>
    %32 = arith.subf %26, %31 : vector<33x8xf32>
    %33 = arith.mulf %32, %32 : vector<33x8xf32>
    %cst_28 = arith.constant dense<0.000000e+00> : vector<8xf32>
    %34 = vector.multi_reduction <add>, %33, %cst_28 [0] : vector<33x8xf32> to vector<8xf32>
    %35 = vector.shape_cast %34 : vector<8xf32> to vector<1x8xf32>
    %cst_29 = arith.constant 3.300000e+01 : f32
    %36 = vector.broadcast %cst_29 : f32 to vector<1x8xf32>
    %37 = arith.divf %35, %36 : vector<1x8xf32>
    %cst_30 = arith.constant 9.99999974E-6 : f32
    %38 = vector.broadcast %cst_30 : f32 to vector<1x8xf32>
    %39 = arith.addf %37, %38 : vector<1x8xf32>
    %40 = math.rsqrt %39 : vector<1x8xf32>
    %41 = vector.broadcast %40 : vector<1x8xf32> to vector<33x8xf32>
    %42 = arith.mulf %32, %41 : vector<33x8xf32>
    %c0_31 = arith.constant 0 : index
    %c0_32 = arith.constant 0 : index
    %43 = vector.load %arg5[%c0_31, %c0_32] : memref<1x8xf32, #tpu.memory_space<vmem>>, vector<1x8xf32>
    %44 = vector.broadcast %43 : vector<1x8xf32> to vector<33x8xf32>
    %45 = arith.mulf %42, %44 : vector<33x8xf32>
    %c0_33 = arith.constant 0 : index
    %c0_34 = arith.constant 0 : index
    %46 = vector.load %arg6[%c0_33, %c0_34] : memref<1x8xf32, #tpu.memory_space<vmem>>, vector<1x8xf32>
    %47 = vector.broadcast %46 : vector<1x8xf32> to vector<33x8xf32>
    %48 = arith.addf %45, %47 : vector<33x8xf32>
    %cst_35 = arith.constant 5.000000e-01 : f32
    %49 = vector.broadcast %cst_35 : f32 to vector<33x8xf32>
    %50 = arith.mulf %49, %48 : vector<33x8xf32>
    %cst_36 = arith.constant 0.707106769 : f32
    %51 = vector.broadcast %cst_36 : f32 to vector<33x8xf32>
    %52 = arith.mulf %48, %51 : vector<33x8xf32>
    %cst_37 = arith.constant 0.000000e+00 : f32
    %53 = vector.broadcast %cst_37 : f32 to vector<33x8xf32>
    %54 = arith.cmpf oge, %52, %53 : vector<33x8xf32>
    %cst_38 = arith.constant 1.000000e+00 : f32
    %cst_39 = arith.constant -1.000000e+00 : f32
    %55 = vector.broadcast %cst_38 : f32 to vector<33x8xf32>
    %56 = vector.broadcast %cst_39 : f32 to vector<33x8xf32>
    %57 = arith.select %54, %55, %56 : vector<33x8xi1>, vector<33x8xf32>
    %58 = math.absf %52 : vector<33x8xf32>
    %cst_40 = arith.constant 0.327591091 : f32
    %59 = vector.broadcast %cst_40 : f32 to vector<33x8xf32>
    %60 = arith.mulf %59, %58 : vector<33x8xf32>
    %cst_41 = arith.constant 1.000000e+00 : f32
    %61 = vector.broadcast %cst_41 : f32 to vector<33x8xf32>
    %62 = arith.addf %61, %60 : vector<33x8xf32>
    %cst_42 = arith.constant 1.000000e+00 : f32
    %63 = vector.broadcast %cst_42 : f32 to vector<33x8xf32>
    %64 = arith.divf %63, %62 : vector<33x8xf32>
    %cst_43 = arith.constant 1.06140542 : f32
    %65 = vector.broadcast %cst_43 : f32 to vector<33x8xf32>
    %66 = arith.mulf %64, %65 : vector<33x8xf32>
    %cst_44 = arith.constant -1.45315206 : f32
    %67 = vector.broadcast %cst_44 : f32 to vector<33x8xf32>
    %68 = arith.addf %67, %66 : vector<33x8xf32>
    %69 = arith.mulf %64, %68 : vector<33x8xf32>
    %cst_45 = arith.constant 1.42141378 : f32
    %70 = vector.broadcast %cst_45 : f32 to vector<33x8xf32>
    %71 = arith.addf %70, %69 : vector<33x8xf32>
    %72 = arith.mulf %64, %71 : vector<33x8xf32>
    %cst_46 = arith.constant -0.284496725 : f32
    %73 = vector.broadcast %cst_46 : f32 to vector<33x8xf32>
    %74 = arith.addf %73, %72 : vector<33x8xf32>
    %75 = arith.mulf %64, %74 : vector<33x8xf32>
    %cst_47 = arith.constant 0.254829586 : f32
    %76 = vector.broadcast %cst_47 : f32 to vector<33x8xf32>
    %77 = arith.addf %76, %75 : vector<33x8xf32>
    %78 = arith.mulf %64, %77 : vector<33x8xf32>
    %cst_48 = arith.constant 0.000000e+00 : f32
    %79 = vector.broadcast %cst_48 : f32 to vector<33x8xf32>
    %80 = arith.subf %79, %58 : vector<33x8xf32>
    %81 = arith.mulf %80, %58 : vector<33x8xf32>
    %82 = math.exp %81 : vector<33x8xf32>
    %83 = arith.mulf %78, %82 : vector<33x8xf32>
    %cst_49 = arith.constant 1.000000e+00 : f32
    %84 = vector.broadcast %cst_49 : f32 to vector<33x8xf32>
    %85 = arith.subf %84, %83 : vector<33x8xf32>
    %86 = arith.mulf %57, %85 : vector<33x8xf32>
    %cst_50 = arith.constant 1.000000e+00 : f32
    %87 = vector.broadcast %cst_50 : f32 to vector<33x8xf32>
    %88 = arith.addf %87, %86 : vector<33x8xf32>
    %89 = arith.mulf %50, %88 : vector<33x8xf32>
    %cst_51 = arith.constant 0.000000e+00 : f32
    %90 = vector.broadcast %cst_51 : f32 to vector<16x16xf32>
    %c0_52 = arith.constant 0 : index
    %c0_53 = arith.constant 0 : index
    %c0_54 = arith.constant 0 : index
    %91 = vector.load %arg8[%c0_52, %c0_53, %c0_54] : memref<3x8x16xf32, #tpu.memory_space<vmem>>, vector<1x8x16xf32>
    %92 = vector.shape_cast %91 : vector<1x8x16xf32> to vector<8x16xf32>
    %cst_55 = arith.constant dense<0.000000e+00> : vector<33x16xf32>
    %93 = tpu.matmul %89, %92, %cst_55 {dimension_numbers = #tpu.dot_dimension_numbers<[1], [0], [0], [1], [0, 0, 1, 1], [], []>} : vector<33x8xf32>, vector<8x16xf32>, vector<33x16xf32> -> vector<33x16xf32>
    %c0_56 = arith.constant 0 : index
    %c0_57 = arith.constant 0 : index
    %c0_58 = arith.constant 0 : index
    %94 = vector.load %arg7[%c0_56, %c0_57, %c0_58] : memref<3x16x33xf32, #tpu.memory_space<vmem>>, vector<1x16x33xf32>
    %95 = vector.shape_cast %94 : vector<1x16x33xf32> to vector<16x33xf32>
    %cst_59 = arith.constant dense<0.000000e+00> : vector<16x16xf32>
    %96 = tpu.matmul %95, %93, %cst_59 {dimension_numbers = #tpu.dot_dimension_numbers<[1], [0], [0], [1], [0, 0, 1, 1], [], []>} : vector<16x33xf32>, vector<33x16xf32>, vector<16x16xf32> -> vector<16x16xf32>
    %97 = arith.addf %90, %96 : vector<16x16xf32>
    %c1_60 = arith.constant 1 : index
    %c0_61 = arith.constant 0 : index
    %c0_62 = arith.constant 0 : index
    %98 = vector.load %arg8[%c1_60, %c0_61, %c0_62] : memref<3x8x16xf32, #tpu.memory_space<vmem>>, vector<1x8x16xf32>
    %99 = vector.shape_cast %98 : vector<1x8x16xf32> to vector<8x16xf32>
    %cst_63 = arith.constant dense<0.000000e+00> : vector<33x16xf32>
    %100 = tpu.matmul %89, %99, %cst_63 {dimension_numbers = #tpu.dot_dimension_numbers<[1], [0], [0], [1], [0, 0, 1, 1], [], []>} : vector<33x8xf32>, vector<8x16xf32>, vector<33x16xf32> -> vector<33x16xf32>
    %c1_64 = arith.constant 1 : index
    %c0_65 = arith.constant 0 : index
    %c0_66 = arith.constant 0 : index
    %101 = vector.load %arg7[%c1_64, %c0_65, %c0_66] : memref<3x16x33xf32, #tpu.memory_space<vmem>>, vector<1x16x33xf32>
    %102 = vector.shape_cast %101 : vector<1x16x33xf32> to vector<16x33xf32>
    %cst_67 = arith.constant dense<0.000000e+00> : vector<16x16xf32>
    %103 = tpu.matmul %102, %100, %cst_67 {dimension_numbers = #tpu.dot_dimension_numbers<[1], [0], [0], [1], [0, 0, 1, 1], [], []>} : vector<16x33xf32>, vector<33x16xf32>, vector<16x16xf32> -> vector<16x16xf32>
    %104 = arith.addf %97, %103 : vector<16x16xf32>
    %c2_68 = arith.constant 2 : index
    %c0_69 = arith.constant 0 : index
    %c0_70 = arith.constant 0 : index
    %105 = vector.load %arg8[%c2_68, %c0_69, %c0_70] : memref<3x8x16xf32, #tpu.memory_space<vmem>>, vector<1x8x16xf32>
    %106 = vector.shape_cast %105 : vector<1x8x16xf32> to vector<8x16xf32>
    %cst_71 = arith.constant dense<0.000000e+00> : vector<33x16xf32>
    %107 = tpu.matmul %89, %106, %cst_71 {dimension_numbers = #tpu.dot_dimension_numbers<[1], [0], [0], [1], [0, 0, 1, 1], [], []>} : vector<33x8xf32>, vector<8x16xf32>, vector<33x16xf32> -> vector<33x16xf32>
    %c2_72 = arith.constant 2 : index
    %c0_73 = arith.constant 0 : index
    %c0_74 = arith.constant 0 : index
    %108 = vector.load %arg7[%c2_72, %c0_73, %c0_74] : memref<3x16x33xf32, #tpu.memory_space<vmem>>, vector<1x16x33xf32>
    %109 = vector.shape_cast %108 : vector<1x16x33xf32> to vector<16x33xf32>
    %cst_75 = arith.constant dense<0.000000e+00> : vector<16x16xf32>
    %110 = tpu.matmul %109, %107, %cst_75 {dimension_numbers = #tpu.dot_dimension_numbers<[1], [0], [0], [1], [0, 0, 1, 1], [], []>} : vector<16x33xf32>, vector<33x16xf32>, vector<16x16xf32> -> vector<16x16xf32>
    %111 = arith.addf %104, %110 : vector<16x16xf32>
    %c0_76 = arith.constant 0 : index
    %c0_77 = arith.constant 0 : index
    %112 = vector.load %arg9[%c0_76, %c0_77] : memref<1x16xf32, #tpu.memory_space<vmem>>, vector<1x16xf32>
    %113 = vector.broadcast %112 : vector<1x16xf32> to vector<16x16xf32>
    %114 = arith.addf %111, %113 : vector<16x16xf32>
    %cst_78 = arith.constant 5.000000e-01 : f32
    %115 = vector.broadcast %cst_78 : f32 to vector<16x16xf32>
    %116 = arith.mulf %115, %114 : vector<16x16xf32>
    %cst_79 = arith.constant 0.707106769 : f32
    %117 = vector.broadcast %cst_79 : f32 to vector<16x16xf32>
    %118 = arith.mulf %114, %117 : vector<16x16xf32>
    %cst_80 = arith.constant 0.000000e+00 : f32
    %119 = vector.broadcast %cst_80 : f32 to vector<16x16xf32>
    %120 = arith.cmpf oge, %118, %119 : vector<16x16xf32>
    %cst_81 = arith.constant 1.000000e+00 : f32
    %cst_82 = arith.constant -1.000000e+00 : f32
    %121 = vector.broadcast %cst_81 : f32 to vector<16x16xf32>
    %122 = vector.broadcast %cst_82 : f32 to vector<16x16xf32>
    %123 = arith.select %120, %121, %122 : vector<16x16xi1>, vector<16x16xf32>
    %124 = math.absf %118 : vector<16x16xf32>
    %cst_83 = arith.constant 0.327591091 : f32
    %125 = vector.broadcast %cst_83 : f32 to vector<16x16xf32>
    %126 = arith.mulf %125, %124 : vector<16x16xf32>
    %cst_84 = arith.constant 1.000000e+00 : f32
    %127 = vector.broadcast %cst_84 : f32 to vector<16x16xf32>
    %128 = arith.addf %127, %126 : vector<16x16xf32>
    %cst_85 = arith.constant 1.000000e+00 : f32
    %129 = vector.broadcast %cst_85 : f32 to vector<16x16xf32>
    %130 = arith.divf %129, %128 : vector<16x16xf32>
    %cst_86 = arith.constant 1.06140542 : f32
    %131 = vector.broadcast %cst_86 : f32 to vector<16x16xf32>
    %132 = arith.mulf %130, %131 : vector<16x16xf32>
    %cst_87 = arith.constant -1.45315206 : f32
    %133 = vector.broadcast %cst_87 : f32 to vector<16x16xf32>
    %134 = arith.addf %133, %132 : vector<16x16xf32>
    %135 = arith.mulf %130, %134 : vector<16x16xf32>
    %cst_88 = arith.constant 1.42141378 : f32
    %136 = vector.broadcast %cst_88 : f32 to vector<16x16xf32>
    %137 = arith.addf %136, %135 : vector<16x16xf32>
    %138 = arith.mulf %130, %137 : vector<16x16xf32>
    %cst_89 = arith.constant -0.284496725 : f32
    %139 = vector.broadcast %cst_89 : f32 to vector<16x16xf32>
    %140 = arith.addf %139, %138 : vector<16x16xf32>
    %141 = arith.mulf %130, %140 : vector<16x16xf32>
    %cst_90 = arith.constant 0.254829586 : f32
    %142 = vector.broadcast %cst_90 : f32 to vector<16x16xf32>
    %143 = arith.addf %142, %141 : vector<16x16xf32>
    %144 = arith.mulf %130, %143 : vector<16x16xf32>
    %cst_91 = arith.constant 0.000000e+00 : f32
    %145 = vector.broadcast %cst_91 : f32 to vector<16x16xf32>
    %146 = arith.subf %145, %124 : vector<16x16xf32>
    %147 = arith.mulf %146, %124 : vector<16x16xf32>
    %148 = math.exp %147 : vector<16x16xf32>
    %149 = arith.mulf %144, %148 : vector<16x16xf32>
    %cst_92 = arith.constant 1.000000e+00 : f32
    %150 = vector.broadcast %cst_92 : f32 to vector<16x16xf32>
    %151 = arith.subf %150, %149 : vector<16x16xf32>
    %152 = arith.mulf %123, %151 : vector<16x16xf32>
    %cst_93 = arith.constant 1.000000e+00 : f32
    %153 = vector.broadcast %cst_93 : f32 to vector<16x16xf32>
    %154 = arith.addf %153, %152 : vector<16x16xf32>
    %155 = arith.mulf %116, %154 : vector<16x16xf32>
    %c0_94 = arith.constant 0 : index
    %c0_95 = arith.constant 0 : index
    %156 = vector.load %arg10[%c0_94, %c0_95] : memref<1x16xf32, #tpu.memory_space<vmem>>, vector<1x16xf32>
    %c0_96 = arith.constant 0 : index
    %c0_97 = arith.constant 0 : index
    %157 = vector.load %arg11[%c0_96, %c0_97] : memref<1x16xf32, #tpu.memory_space<vmem>>, vector<1x16xf32>
    %cst_98 = arith.constant dense<0.000000e+00> : vector<16xf32>
    %158 = vector.multi_reduction <add>, %155, %cst_98 [1] : vector<16x16xf32> to vector<16xf32>
    %159 = vector.shape_cast %158 : vector<16xf32> to vector<16x1xf32>
    %cst_99 = arith.constant 1.600000e+01 : f32
    %160 = vector.broadcast %cst_99 : f32 to vector<16x1xf32>
    %161 = arith.divf %159, %160 : vector<16x1xf32>
    %162 = vector.broadcast %161 : vector<16x1xf32> to vector<16x16xf32>
    %163 = arith.subf %155, %162 : vector<16x16xf32>
    %164 = arith.mulf %163, %163 : vector<16x16xf32>
    %cst_100 = arith.constant dense<0.000000e+00> : vector<16xf32>
    %165 = vector.multi_reduction <add>, %164, %cst_100 [1] : vector<16x16xf32> to vector<16xf32>
    %166 = vector.shape_cast %165 : vector<16xf32> to vector<16x1xf32>
    %cst_101 = arith.constant 1.600000e+01 : f32
    %167 = vector.broadcast %cst_101 : f32 to vector<16x1xf32>
    %168 = arith.divf %166, %167 : vector<16x1xf32>
    %cst_102 = arith.constant 9.99999974E-6 : f32
    %169 = vector.broadcast %cst_102 : f32 to vector<16x1xf32>
    %170 = arith.addf %168, %169 : vector<16x1xf32>
    %171 = math.rsqrt %170 : vector<16x1xf32>
    %172 = vector.broadcast %171 : vector<16x1xf32> to vector<16x16xf32>
    %173 = arith.mulf %163, %172 : vector<16x16xf32>
    %174 = vector.broadcast %156 : vector<1x16xf32> to vector<16x16xf32>
    %175 = arith.mulf %173, %174 : vector<16x16xf32>
    %176 = vector.broadcast %157 : vector<1x16xf32> to vector<16x16xf32>
    %177 = arith.addf %175, %176 : vector<16x16xf32>
    %c0_103 = arith.constant 0 : index
    %c0_104 = arith.constant 0 : index
    %178 = vector.load %arg17[%c0_103, %c0_104] : memref<16x16xf32, #tpu.memory_space<vmem>>, vector<16x16xf32>
    tpu.vector_store %arg17[%c0_103, %c0_104], %177 {strides = array<i32>} : memref<16x16xf32, #tpu.memory_space<vmem>>, vector<16x16xf32>,
    %c0_105 = arith.constant 0 : index
    %c0_106 = arith.constant 0 : index
    %179 = vector.load %arg12[%c0_105, %c0_106] : memref<16x32xf32, #tpu.memory_space<vmem>>, vector<16x32xf32>
    %cst_107 = arith.constant dense<0.000000e+00> : vector<16x32xf32>
    %180 = tpu.matmul %177, %179, %cst_107 {dimension_numbers = #tpu.dot_dimension_numbers<[1], [0], [0], [1], [0, 0, 1, 1], [], []>} : vector<16x16xf32>, vector<16x32xf32>, vector<16x32xf32> -> vector<16x32xf32>
    %c0_108 = arith.constant 0 : index
    %c0_109 = arith.constant 0 : index
    %181 = vector.load %arg13[%c0_108, %c0_109] : memref<16x32xf32, #tpu.memory_space<vmem>>, vector<16x32xf32>
    %182 = arith.addf %180, %181 : vector<16x32xf32>
    %c0_110 = arith.constant 0 : index
    %c0_111 = arith.constant 0 : index
    %183 = vector.load %arg14[%c0_110, %c0_111] : memref<1x32xf32, #tpu.memory_space<vmem>>, vector<1x32xf32>
    %c0_112 = arith.constant 0 : index
    %c0_113 = arith.constant 0 : index
    %184 = vector.load %arg15[%c0_112, %c0_113] : memref<1x32xf32, #tpu.memory_space<vmem>>, vector<1x32xf32>
    %cst_114 = arith.constant dense<0.000000e+00> : vector<16xf32>
    %185 = vector.multi_reduction <add>, %182, %cst_114 [1] : vector<16x32xf32> to vector<16xf32>
    %186 = vector.shape_cast %185 : vector<16xf32> to vector<16x1xf32>
    %cst_115 = arith.constant 3.200000e+01 : f32
    %187 = vector.broadcast %cst_115 : f32 to vector<16x1xf32>
    %188 = arith.divf %186, %187 : vector<16x1xf32>
    %189 = vector.broadcast %188 : vector<16x1xf32> to vector<16x32xf32>
    %190 = arith.subf %182, %189 : vector<16x32xf32>
    %191 = arith.mulf %190, %190 : vector<16x32xf32>
    %cst_116 = arith.constant dense<0.000000e+00> : vector<16xf32>
    %192 = vector.multi_reduction <add>, %191, %cst_116 [1] : vector<16x32xf32> to vector<16xf32>
    %193 = vector.shape_cast %192 : vector<16xf32> to vector<16x1xf32>
    %cst_117 = arith.constant 3.200000e+01 : f32
    %194 = vector.broadcast %cst_117 : f32 to vector<16x1xf32>
    %195 = arith.divf %193, %194 : vector<16x1xf32>
    %cst_118 = arith.constant 9.99999974E-6 : f32
    %196 = vector.broadcast %cst_118 : f32 to vector<16x1xf32>
    %197 = arith.addf %195, %196 : vector<16x1xf32>
    %198 = math.rsqrt %197 : vector<16x1xf32>
    %199 = vector.broadcast %198 : vector<16x1xf32> to vector<16x32xf32>
    %200 = arith.mulf %190, %199 : vector<16x32xf32>
    %201 = vector.broadcast %183 : vector<1x32xf32> to vector<16x32xf32>
    %202 = arith.mulf %200, %201 : vector<16x32xf32>
    %203 = vector.broadcast %184 : vector<1x32xf32> to vector<16x32xf32>
    %204 = arith.addf %202, %203 : vector<16x32xf32>
    %c0_119 = arith.constant 0 : index
    %c0_120 = arith.constant 0 : index
    %205 = vector.load %arg16[%c0_119, %c0_120] : memref<16x32xf32, #tpu.memory_space<vmem>>, vector<16x32xf32>
    tpu.vector_store %arg16[%c0_119, %c0_120], %204 {strides = array<i32>} : memref<16x32xf32, #tpu.memory_space<vmem>>, vector<16x32xf32>,
    return
  }
  func.func @transform_0(%arg0: i32) -> (i32, i32, i32) {
    %c0_i32 = arith.constant 0 : i32
    %c0_i32_0 = arith.constant 0 : i32
    %c0_i32_1 = arith.constant 0 : i32
    return %arg0, %c0_i32, %c0_i32_0 : i32, i32, i32
  }
  func.func @transform_1(%arg0: i32) -> (i32, i32, i32) {
    %c0_i32 = arith.constant 0 : i32
    %c0_i32_0 = arith.constant 0 : i32
    %c0_i32_1 = arith.constant 0 : i32
    %c0_i32_2 = arith.constant 0 : i32
    return %c0_i32, %c0_i32_0, %c0_i32_1 : i32, i32, i32
  }
  func.func @transform_2(%arg0: i32) -> (i32, i32, i32) {
    %c0_i32 = arith.constant 0 : i32
    %c0_i32_0 = arith.constant 0 : i32
    %c0_i32_1 = arith.constant 0 : i32
    %c0_i32_2 = arith.constant 0 : i32
    return %c0_i32, %c0_i32_0, %c0_i32_1 : i32, i32, i32
  }
  func.func @transform_3(%arg0: i32) -> (i32, i32) {
    %c0_i32 = arith.constant 0 : i32
    %c0_i32_0 = arith.constant 0 : i32
    %c0_i32_1 = arith.constant 0 : i32
    return %c0_i32, %c0_i32_0 : i32, i32
  }
  func.func @transform_4(%arg0: i32) -> (i32, i32) {
    %c0_i32 = arith.constant 0 : i32
    %c0_i32_0 = arith.constant 0 : i32
    %c0_i32_1 = arith.constant 0 : i32
    return %c0_i32, %c0_i32_0 : i32, i32
  }
  func.func @transform_5(%arg0: i32) -> (i32, i32) {
    %c0_i32 = arith.constant 0 : i32
    %c0_i32_0 = arith.constant 0 : i32
    %c0_i32_1 = arith.constant 0 : i32
    return %c0_i32, %c0_i32_0 : i32, i32
  }
  func.func @transform_6(%arg0: i32) -> (i32, i32, i32) {
    %c0_i32 = arith.constant 0 : i32
    %c0_i32_0 = arith.constant 0 : i32
    %c0_i32_1 = arith.constant 0 : i32
    %c0_i32_2 = arith.constant 0 : i32
    return %c0_i32, %c0_i32_0, %c0_i32_1 : i32, i32, i32
  }
  func.func @transform_7(%arg0: i32) -> (i32, i32, i32) {
    %c0_i32 = arith.constant 0 : i32
    %c0_i32_0 = arith.constant 0 : i32
    %c0_i32_1 = arith.constant 0 : i32
    %c0_i32_2 = arith.constant 0 : i32
    return %c0_i32, %c0_i32_0, %c0_i32_1 : i32, i32, i32
  }
  func.func @transform_8(%arg0: i32) -> (i32, i32) {
    %c0_i32 = arith.constant 0 : i32
    %c0_i32_0 = arith.constant 0 : i32
    %c0_i32_1 = arith.constant 0 : i32
    return %c0_i32, %c0_i32_0 : i32, i32
  }
  func.func @transform_9(%arg0: i32) -> (i32, i32) {
    %c0_i32 = arith.constant 0 : i32
    %c0_i32_0 = arith.constant 0 : i32
    %c0_i32_1 = arith.constant 0 : i32
    return %c0_i32, %c0_i32_0 : i32, i32
  }
  func.func @transform_10(%arg0: i32) -> (i32, i32) {
    %c0_i32 = arith.constant 0 : i32
    %c0_i32_0 = arith.constant 0 : i32
    %c0_i32_1 = arith.constant 0 : i32
    return %c0_i32, %c0_i32_0 : i32, i32
  }
  func.func @transform_11(%arg0: i32) -> (i32, i32) {
    %c0_i32 = arith.constant 0 : i32
    %c0_i32_0 = arith.constant 0 : i32
    %c0_i32_1 = arith.constant 0 : i32
    return %c0_i32, %c0_i32_0 : i32, i32
  }
  func.func @transform_12(%arg0: i32) -> (i32, i32) {
    %c0_i32 = arith.constant 0 : i32
    %c0_i32_0 = arith.constant 0 : i32
    %c0_i32_1 = arith.constant 0 : i32
    return %c0_i32, %c0_i32_0 : i32, i32
  }
  func.func @transform_13(%arg0: i32) -> (i32, i32) {
    %c0_i32 = arith.constant 0 : i32
    %c0_i32_0 = arith.constant 0 : i32
    %c0_i32_1 = arith.constant 0 : i32
    return %c0_i32, %c0_i32_0 : i32, i32
  }
  func.func @transform_14(%arg0: i32) -> (i32, i32) {
    %c0_i32 = arith.constant 0 : i32
    %c0_i32_0 = arith.constant 0 : i32
    %c0_i32_1 = arith.constant 0 : i32
    return %c0_i32, %c0_i32_0 : i32, i32
  }
  func.func @transform_15(%arg0: i32) -> (i32, i32) {
    %c0_i32 = arith.constant 0 : i32
    %c0_i32_0 = arith.constant 0 : i32
    return %arg0, %c0_i32 : i32, i32
  }
  func.func @transform_16(%arg0: i32) -> (i32, i32) {
    %c0_i32 = arith.constant 0 : i32
    %c0_i32_0 = arith.constant 0 : i32
    return %arg0, %c0_i32 : i32, i32
  }
}

</mosaic_0001>

<llo_original>
// kernel: wav2vec2_forward.2
$region0: #{wav2vec2_forward.2}
  #allocation0 [shape = 'u32[]', space=smem, size = 0x4, offset = 0x4, fixed_abs, tag = 'smem constant byte address 0x4 - core index']
  #allocation1 [shape = 'u32[72,128]{1,0:T(1,128)}', space=vmem, size = 0x9000, scoped, tag = 'internal scratch']
  %s0 = inlined_call_operand.vmem [shape: f32[2,67,4], index: 0, kind: input, shape index: {}]
  %s1 = inlined_call_operand.hbm [shape: f32[3,33,67], index: 1, kind: input, shape index: {}]
  %s2 = inlined_call_operand.hbm [shape: f32[3,4,8], index: 2, kind: input, shape index: {}]
  %s3 = inlined_call_operand.hbm [shape: f32[1,8], index: 3, kind: input, shape index: {}]
  %s4 = inlined_call_operand.hbm [shape: f32[1,8], index: 4, kind: input, shape index: {}]
  %s5 = inlined_call_operand.hbm [shape: f32[1,8], index: 5, kind: input, shape index: {}]
  %s6 = inlined_call_operand.hbm [shape: f32[3,16,33], index: 6, kind: input, shape index: {}]
  %s7 = inlined_call_operand.vmem [shape: f32[3,8,16], index: 7, kind: input, shape index: {}]
  %s8 = inlined_call_operand.hbm [shape: f32[1,16], index: 8, kind: input, shape index: {}]
  %s9 = inlined_call_operand.vmem [shape: f32[1,16], index: 9, kind: input, shape index: {}]
  %s10 = inlined_call_operand.vmem [shape: f32[1,16], index: 10, kind: input, shape index: {}]
  %s11 = inlined_call_operand.hbm [shape: f32[16,32], index: 11, kind: input, shape index: {}]
  %s12 = inlined_call_operand.vmem [shape: f32[16,32], index: 12, kind: input, shape index: {}]
  %s13 = inlined_call_operand.vmem [shape: f32[1,32], index: 13, kind: input, shape index: {}]
  %s14 = inlined_call_operand.vmem [shape: f32[1,32], index: 14, kind: input, shape index: {}]
  %s15 = inlined_call_operand.vmem [shape: f32[32,32], index: 15, kind: output, shape index: {0}]
  %s16 = inlined_call_operand.hbm [shape: f32[32,16], index: 16, kind: output, shape index: {1}]
  %17 = xla_tuple %s15, %s16
  %s18 = sld [smem:[#allocation0]]
  $region133: #{wav2vec2_forward.2} parent=0
    _
  %s20 = ssub.s32 1, %s18
  %s21 = scalar_select 0, %s20, %s18
  $region1: #{wav2vec2_forward.2} parent=0
    #allocation2 [shape = 'u8[61440]{0}', space=vmem, size = 0xf000, scoped, tag = 'input window, operand 1, single buffered']
    #allocation3 [shape = 's32[2]{0}', space=sflag, size = 0x8, scoped, tag = 'scoped memory for wav2vec2_forward.2']
    #allocation4 [shape = 's32[2]{0}', space=sflag, size = 0x8, scoped, tag = 'scoped memory for wav2vec2_forward.2']
    #allocation5 [shape = 'u8[6144]{0}', space=vmem, size = 0x1800, scoped, tag = 'input window, operand 2, single buffered']
    #allocation6 [shape = 's32[1]{0}', space=sflag, size = 0x4, scoped, tag = 'scoped memory for wav2vec2_forward.2']
    #allocation7 [shape = 'u8[512]{0}', space=vmem, size = 0x400, scoped, tag = 'input window, operand 3, single buffered']
    #allocation8 [shape = 'u8[512]{0}', space=vmem, size = 0x400, scoped, tag = 'input window, operand 4, single buffered']
    #allocation9 [shape = 's32[1]{0}', space=sflag, size = 0x4, scoped, tag = 'scoped memory for wav2vec2_forward.2']
    #allocation10 [shape = 'u8[512]{0}', space=vmem, size = 0x400, scoped, tag = 'input window, operand 5, single buffered']
    #allocation11 [shape = 'u8[24576]{0}', space=vmem, size = 0x6000, scoped, tag = 'input window, operand 6, single buffered']
    #allocation12 [shape = 's32[1]{0}', space=sflag, size = 0x4, scoped, tag = 'scoped memory for wav2vec2_forward.2']
    #allocation13 [shape = 'u8[512]{0}', space=vmem, size = 0x400, scoped, tag = 'input window, operand 8, single buffered']
    #allocation14 [shape = 'u8[8192]{0}', space=vmem, size = 0x2000, scoped, tag = 'input window, operand 11, single buffered']
    #allocation15 [shape = 's32[1]{0}', space=sflag, size = 0x4, scoped, tag = 'scoped memory for wav2vec2_forward.2']
    #allocation16 [shape = 'u8[16384]{0}', space=vmem, size = 0x4000, scoped, tag = 'output window, operand 1']
    %22 = vsyncpa [#allocation3], 0
    %23 = vsyncpa [#allocation6], 0
    %24 = vsyncpa [#allocation9], 0
    %25 = vsyncpa [#allocation12], 0
    %26 = vsyncpa [#allocation15], 0
    %27 = vsyncpa [#allocation4], 0
    %s28 = scalar_lea.sflag [#allocation4], 1
    %29 = vsyncpa %s28, 0
    loop: start=0, step=1, limit=4
    $region2: #{wav2vec2_forward.2} parent=1 // loop_pre_header
      _
    $region3: #{wav2vec2_forward.2} parent=1 // loop_header
      %s31 = sphi 0, %s35
      %p32 = scmp.ge.s32.totalorder %s31, 4
      %s41 = sphi 0, %s43
      %s44 = sphi 0, %s41
      %s45 = sphi 0, %s44
      %s61 = sphi 0, %s45
      %s65 = sphi 0, %s65
      %s67 = sphi 0, %s65
      %s68 = sphi 0, %s67
      %s82 = sphi 0, %s68
      %s86 = sphi 0, %s86
      %s88 = sphi 0, %s86
      %s89 = sphi 0, %s88
      %s103 = sphi 0, %s89
      %s107 = sphi 0, %s107
      %s109 = sphi 0, %s107
      %s110 = sphi 0, %s109
      %s124 = sphi 0, %s110
      %s128 = sphi 0, %s128
      %s130 = sphi 0, %s128
      %s131 = sphi 0, %s130
      %s145 = sphi 0, %s131
      %s149 = sphi 0, %s149
      %s151 = sphi 0, %s149
      %s152 = sphi 0, %s151
      %s166 = sphi 0, %s152
      %s170 = sphi 0, %s170
      %s172 = sphi 0, %s170
      %s173 = sphi 0, %s172
      %s187 = sphi 0, %s173
      %s191 = sphi 0, %s191
      %s193 = sphi 0, %s191
      %s194 = sphi 0, %s193
      %s208 = sphi 0, %s194
      %s212 = sphi 0, %s212
      %s214 = sphi 0, %s212
      %s215 = sphi 0, %s214
      %s229 = sphi 0, %s215
      %s233 = sphi 0, %s233
      %s235 = sphi 0, %s233
      %s236 = sphi 0, %s235
      %s250 = sphi 0, %s236
      %s254 = sphi 0, %s254
      %s256 = sphi 0, %s254
      %s257 = sphi 0, %s256
      %s271 = sphi 0, %s257
      %s275 = sphi 0, %s275
      %s277 = sphi 0, %s275
      %s278 = sphi 0, %s277
      %s292 = sphi 0, %s278
      %s296 = sphi 0, %s296
      %s298 = sphi 0, %s296
      %s299 = sphi 0, %s298
      %s313 = sphi 0, %s299
      %s317 = sphi 0, %s317
      %s319 = sphi 0, %s317
      %s320 = sphi 0, %s319
      %s334 = sphi 0, %s320
      %s338 = sphi 0, %s338
      %s340 = sphi 0, %s338
      %s341 = sphi 0, %s340
      %s355 = sphi 0, %s341
      %s361 = sphi 0, %s363
      %s364 = sphi 0, %s361
      %s365 = sphi 0, %s364
      %s381 = sphi 0, %s365
      %s387 = sphi 0, %s389
      %s390 = sphi 0, %s387
      %s391 = sphi 0, %s390
      %s407 = sphi 0, %s391
    $region4: #{wav2vec2_forward.2} parent=1 // loop_header_branch
      %34 = sbr.rel (%p32) target = $region8
    $region5: #{wav2vec2_forward.2} parent=1 // loop_body
      %s36 = ssub.s32 %s31, 1
      %s37 = ssub.s32 %s31, 2
      %s38 = sadd.s32 %s31, 1
      %s39 = ssub.s32 %s31, %s38
      %p40 = scmp.eq.s32.totalorder %s39, 0
      %s42 = sadd.s32 %s41, 1
      %s43 = scalar_select %p40, %s41, %s42
      %p46 = pneg %p40
      %p47 = scmp.eq.s32.totalorder %s31, 1
      %p48 = por %p46, %p47
      %p49 = scmp.ne.s32.totalorder %s41, %s44
      %p50 = scmp.eq.s32.totalorder %s31, 0
      %p51 = por %p49, %p50
      %p52 = scmp.ne.s32.totalorder %s41, %s44
      %p53 = scmp.eq.s32.totalorder %s36, 1
      %p54 = por %p52, %p53
      %p55 = scmp.ne.s32.totalorder %s44, %s45
      %p56 = scmp.eq.s32.totalorder %s36, 0
      %p57 = por %p55, %p56
      %p58 = scmp.ne.s32.totalorder %s44, %s45
      %p59 = scmp.eq.s32.totalorder %s37, 1
      %p60 = por %p58, %p59
      %p62 = scmp.ne.s32.totalorder %s45, %s61
      %p63 = scmp.eq.s32.totalorder %s37, 0
      %p64 = por %p62, %p63
      %s66 = sadd.s32 %s65, 1
      %p69 = scmp.eq.s32.totalorder %s31, 1
      %p70 = scmp.ne.s32.totalorder %s65, %s67
      %p71 = scmp.eq.s32.totalorder %s31, 0
      %p72 = por %p70, %p71
      %p73 = scmp.ne.s32.totalorder %s65, %s67
      %p74 = scmp.eq.s32.totalorder %s36, 1
      %p75 = por %p73, %p74
      %p76 = scmp.ne.s32.totalorder %s67, %s68
      %p77 = scmp.eq.s32.totalorder %s36, 0
      %p78 = por %p76, %p77
      %p79 = scmp.ne.s32.totalorder %s67, %s68
      %p80 = scmp.eq.s32.totalorder %s37, 1
      %p81 = por %p79, %p80
      %p83 = scmp.ne.s32.totalorder %s68, %s82
      %p84 = scmp.eq.s32.totalorder %s37, 0
      %p85 = por %p83, %p84
      %s87 = sadd.s32 %s86, 1
      %p90 = scmp.eq.s32.totalorder %s31, 1
      %p91 = scmp.ne.s32.totalorder %s86, %s88
      %p92 = scmp.eq.s32.totalorder %s31, 0
      %p93 = por %p91, %p92
      %p94 = scmp.ne.s32.totalorder %s86, %s88
      %p95 = scmp.eq.s32.totalorder %s36, 1
      %p96 = por %p94, %p95
      %p97 = scmp.ne.s32.totalorder %s88, %s89
      %p98 = scmp.eq.s32.totalorder %s36, 0
      %p99 = por %p97, %p98
      %p100 = scmp.ne.s32.totalorder %s88, %s89
      %p101 = scmp.eq.s32.totalorder %s37, 1
      %p102 = por %p100, %p101
      %p104 = scmp.ne.s32.totalorder %s89, %s103
      %p105 = scmp.eq.s32.totalorder %s37, 0
      %p106 = por %p104, %p105
      %s108 = sadd.s32 %s107, 1
      %p111 = scmp.eq.s32.totalorder %s31, 1
      %p112 = scmp.ne.s32.totalorder %s107, %s109
      %p113 = scmp.eq.s32.totalorder %s31, 0
      %p114 = por %p112, %p113
      %p115 = scmp.ne.s32.totalorder %s107, %s109
      %p116 = scmp.eq.s32.totalorder %s36, 1
      %p117 = por %p115, %p116
      %p118 = scmp.ne.s32.totalorder %s109, %s110
      %p119 = scmp.eq.s32.totalorder %s36, 0
      %p120 = por %p118, %p119
      %p121 = scmp.ne.s32.totalorder %s109, %s110
      %p122 = scmp.eq.s32.totalorder %s37, 1
      %p123 = por %p121, %p122
      %p125 = scmp.ne.s32.totalorder %s110, %s124
      %p126 = scmp.eq.s32.totalorder %s37, 0
      %p127 = por %p125, %p126
      %s129 = sadd.s32 %s128, 1
      %p132 = scmp.eq.s32.totalorder %s31, 1
      %p133 = scmp.ne.s32.totalorder %s128, %s130
      %p134 = scmp.eq.s32.totalorder %s31, 0
      %p135 = por %p133, %p134
      %p136 = scmp.ne.s32.totalorder %s128, %s130
      %p137 = scmp.eq.s32.totalorder %s36, 1
      %p138 = por %p136, %p137
      %p139 = scmp.ne.s32.totalorder %s130, %s131
      %p140 = scmp.eq.s32.totalorder %s36, 0
      %p141 = por %p139, %p140
      %p142 = scmp.ne.s32.totalorder %s130, %s131
      %p143 = scmp.eq.s32.totalorder %s37, 1
      %p144 = por %p142, %p143
      %p146 = scmp.ne.s32.totalorder %s131, %s145
      %p147 = scmp.eq.s32.totalorder %s37, 0
      %p148 = por %p146, %p147
      %s150 = sadd.s32 %s149, 1
      %p153 = scmp.eq.s32.totalorder %s31, 1
      %p154 = scmp.ne.s32.totalorder %s149, %s151
      %p155 = scmp.eq.s32.totalorder %s31, 0
      %p156 = por %p154, %p155
      %p157 = scmp.ne.s32.totalorder %s149, %s151
      %p158 = scmp.eq.s32.totalorder %s36, 1
      %p159 = por %p157, %p158
      %p160 = scmp.ne.s32.totalorder %s151, %s152
      %p161 = scmp.eq.s32.totalorder %s36, 0
      %p162 = por %p160, %p161
      %p163 = scmp.ne.s32.totalorder %s151, %s152
      %p164 = scmp.eq.s32.totalorder %s37, 1
      %p165 = por %p163, %p164
      %p167 = scmp.ne.s32.totalorder %s152, %s166
      %p168 = scmp.eq.s32.totalorder %s37, 0
      %p169 = por %p167, %p168
      %s171 = sadd.s32 %s170, 1
      %p174 = scmp.eq.s32.totalorder %s31, 1
      %p175 = scmp.ne.s32.totalorder %s170, %s172
      %p176 = scmp.eq.s32.totalorder %s31, 0
      %p177 = por %p175, %p176
      %p178 = scmp.ne.s32.totalorder %s170, %s172
      %p179 = scmp.eq.s32.totalorder %s36, 1
      %p180 = por %p178, %p179
      %p181 = scmp.ne.s32.totalorder %s172, %s173
      %p182 = scmp.eq.s32.totalorder %s36, 0
      %p183 = por %p181, %p182
      %p184 = scmp.ne.s32.totalorder %s172, %s173
      %p185 = scmp.eq.s32.totalorder %s37, 1
      %p186 = por %p184, %p185
      %p188 = scmp.ne.s32.totalorder %s173, %s187
      %p189 = scmp.eq.s32.totalorder %s37, 0
      %p190 = por %p188, %p189
      %s192 = sadd.s32 %s191, 1
      %p195 = scmp.eq.s32.totalorder %s31, 1
      %p196 = scmp.ne.s32.totalorder %s191, %s193
      %p197 = scmp.eq.s32.totalorder %s31, 0
      %p198 = por %p196, %p197
      %p199 = scmp.ne.s32.totalorder %s191, %s193
      %p200 = scmp.eq.s32.totalorder %s36, 1
      %p201 = por %p199, %p200
      %p202 = scmp.ne.s32.totalorder %s193, %s194
      %p203 = scmp.eq.s32.totalorder %s36, 0
      %p204 = por %p202, %p203
      %p205 = scmp.ne.s32.totalorder %s193, %s194
      %p206 = scmp.eq.s32.totalorder %s37, 1
      %p207 = por %p205, %p206
      %p209 = scmp.ne.s32.totalorder %s194, %s208
      %p210 = scmp.eq.s32.totalorder %s37, 0
      %p211 = por %p209, %p210
      %s213 = sadd.s32 %s212, 1
      %p216 = scmp.eq.s32.totalorder %s31, 1
      %p217 = scmp.ne.s32.totalorder %s212, %s214
      %p218 = scmp.eq.s32.totalorder %s31, 0
      %p219 = por %p217, %p218
      %p220 = scmp.ne.s32.totalorder %s212, %s214
      %p221 = scmp.eq.s32.totalorder %s36, 1
      %p222 = por %p220, %p221
      %p223 = scmp.ne.s32.totalorder %s214, %s215
      %p224 = scmp.eq.s32.totalorder %s36, 0
      %p225 = por %p223, %p224
      %p226 = scmp.ne.s32.totalorder %s214, %s215
      %p227 = scmp.eq.s32.totalorder %s37, 1
      %p228 = por %p226, %p227
      %p230 = scmp.ne.s32.totalorder %s215, %s229
      %p231 = scmp.eq.s32.totalorder %s37, 0
      %p232 = por %p230, %p231
      %s234 = sadd.s32 %s233, 1
      %p237 = scmp.eq.s32.totalorder %s31, 1
      %p238 = scmp.ne.s32.totalorder %s233, %s235
      %p239 = scmp.eq.s32.totalorder %s31, 0
      %p240 = por %p238, %p239
      %p241 = scmp.ne.s32.totalorder %s233, %s235
      %p242 = scmp.eq.s32.totalorder %s36, 1
      %p243 = por %p241, %p242
      %p244 = scmp.ne.s32.totalorder %s235, %s236
      %p245 = scmp.eq.s32.totalorder %s36, 0
      %p246 = por %p244, %p245
      %p247 = scmp.ne.s32.totalorder %s235, %s236
      %p248 = scmp.eq.s32.totalorder %s37, 1
      %p249 = por %p247, %p248
      %p251 = scmp.ne.s32.totalorder %s236, %s250
      %p252 = scmp.eq.s32.totalorder %s37, 0
      %p253 = por %p251, %p252
      %s255 = sadd.s32 %s254, 1
      %p258 = scmp.eq.s32.totalorder %s31, 1
      %p259 = scmp.ne.s32.totalorder %s254, %s256
      %p260 = scmp.eq.s32.totalorder %s31, 0
      %p261 = por %p259, %p260
      %p262 = scmp.ne.s32.totalorder %s254, %s256
      %p263 = scmp.eq.s32.totalorder %s36, 1
      %p264 = por %p262, %p263
      %p265 = scmp.ne.s32.totalorder %s256, %s257
      %p266 = scmp.eq.s32.totalorder %s36, 0
      %p267 = por %p265, %p266
      %p268 = scmp.ne.s32.totalorder %s256, %s257
      %p269 = scmp.eq.s32.totalorder %s37, 1
      %p270 = por %p268, %p269
      %p272 = scmp.ne.s32.totalorder %s257, %s271
      %p273 = scmp.eq.s32.totalorder %s37, 0
      %p274 = por %p272, %p273
      %s276 = sadd.s32 %s275, 1
      %p279 = scmp.eq.s32.totalorder %s31, 1
      %p280 = scmp.ne.s32.totalorder %s275, %s277
      %p281 = scmp.eq.s32.totalorder %s31, 0
      %p282 = por %p280, %p281
      %p283 = scmp.ne.s32.totalorder %s275, %s277
      %p284 = scmp.eq.s32.totalorder %s36, 1
      %p285 = por %p283, %p284
      %p286 = scmp.ne.s32.totalorder %s277, %s278
      %p287 = scmp.eq.s32.totalorder %s36, 0
      %p288 = por %p286, %p287
      %p289 = scmp.ne.s32.totalorder %s277, %s278
      %p290 = scmp.eq.s32.totalorder %s37, 1
      %p291 = por %p289, %p290
      %p293 = scmp.ne.s32.totalorder %s278, %s292
      %p294 = scmp.eq.s32.totalorder %s37, 0
      %p295 = por %p293, %p294
      %s297 = sadd.s32 %s296, 1
      %p300 = scmp.eq.s32.totalorder %s31, 1
      %p301 = scmp.ne.s32.totalorder %s296, %s298
      %p302 = scmp.eq.s32.totalorder %s31, 0
      %p303 = por %p301, %p302
      %p304 = scmp.ne.s32.totalorder %s296, %s298
      %p305 = scmp.eq.s32.totalorder %s36, 1
      %p306 = por %p304, %p305
      %p307 = scmp.ne.s32.totalorder %s298, %s299
      %p308 = scmp.eq.s32.totalorder %s36, 0
      %p309 = por %p307, %p308
      %p310 = scmp.ne.s32.totalorder %s298, %s299
      %p311 = scmp.eq.s32.totalorder %s37, 1
      %p312 = por %p310, %p311
      %p314 = scmp.ne.s32.totalorder %s299, %s313
      %p315 = scmp.eq.s32.totalorder %s37, 0
      %p316 = por %p314, %p315
      %s318 = sadd.s32 %s317, 1
      %p321 = scmp.eq.s32.totalorder %s31, 1
      %p322 = scmp.ne.s32.totalorder %s317, %s319
      %p323 = scmp.eq.s32.totalorder %s31, 0
      %p324 = por %p322, %p323
      %p325 = scmp.ne.s32.totalorder %s317, %s319
      %p326 = scmp.eq.s32.totalorder %s36, 1
      %p327 = por %p325, %p326
      %p328 = scmp.ne.s32.totalorder %s319, %s320
      %p329 = scmp.eq.s32.totalorder %s36, 0
      %p330 = por %p328, %p329
      %p331 = scmp.ne.s32.totalorder %s319, %s320
      %p332 = scmp.eq.s32.totalorder %s37, 1
      %p333 = por %p331, %p332
      %p335 = scmp.ne.s32.totalorder %s320, %s334
      %p336 = scmp.eq.s32.totalorder %s37, 0
      %p337 = por %p335, %p336
      %s339 = sadd.s32 %s338, 1
      %p342 = scmp.eq.s32.totalorder %s31, 1
      %p343 = scmp.ne.s32.totalorder %s338, %s340
      %p344 = scmp.eq.s32.totalorder %s31, 0
      %p345 = por %p343, %p344
      %p346 = scmp.ne.s32.totalorder %s338, %s340
      %p347 = scmp.eq.s32.totalorder %s36, 1
      %p348 = por %p346, %p347
      %p349 = scmp.ne.s32.totalorder %s340, %s341
      %p350 = scmp.eq.s32.totalorder %s36, 0
      %p351 = por %p349, %p350
      %p352 = scmp.ne.s32.totalorder %s340, %s341
      %p353 = scmp.eq.s32.totalorder %s37, 1
      %p354 = por %p352, %p353
      %p356 = scmp.ne.s32.totalorder %s341, %s355
      %p357 = scmp.eq.s32.totalorder %s37, 0
      %p358 = por %p356, %p357
      %s359 = ssub.s32 %s31, %s38
      %p360 = scmp.eq.s32.totalorder %s359, 0
      %s362 = sadd.s32 %s361, 1
      %s363 = scalar_select %p360, %s361, %s362
      %p366 = pneg %p360
      %p367 = scmp.eq.s32.totalorder %s31, 1
      %p368 = por %p366, %p367
      %p369 = scmp.ne.s32.totalorder %s361, %s364
      %p370 = scmp.eq.s32.totalorder %s31, 0
      %p371 = por %p369, %p370
      %p372 = scmp.ne.s32.totalorder %s361, %s364
      %p373 = scmp.eq.s32.totalorder %s36, 1
      %p374 = por %p372, %p373
      %p375 = scmp.ne.s32.totalorder %s364, %s365
      %p376 = scmp.eq.s32.totalorder %s36, 0
      %p377 = por %p375, %p376
      %p378 = scmp.ne.s32.totalorder %s364, %s365
      %p379 = scmp.eq.s32.totalorder %s37, 1
      %p380 = por %p378, %p379
      %p382 = scmp.ne.s32.totalorder %s365, %s381
      %p383 = scmp.eq.s32.totalorder %s37, 0
      %p384 = por %p382, %p383
      %s385 = ssub.s32 %s31, %s38
      %p386 = scmp.eq.s32.totalorder %s385, 0
      %s388 = sadd.s32 %s387, 1
      %s389 = scalar_select %p386, %s387, %s388
      %p392 = pneg %p386
      %p393 = scmp.eq.s32.totalorder %s31, 1
      %p394 = por %p392, %p393
      %p395 = scmp.ne.s32.totalorder %s387, %s390
      %p396 = scmp.eq.s32.totalorder %s31, 0
      %p397 = por %p395, %p396
      %p398 = scmp.ne.s32.totalorder %s387, %s390
      %p399 = scmp.eq.s32.totalorder %s36, 1
      %p400 = por %p398, %p399
      %p401 = scmp.ne.s32.totalorder %s390, %s391
      %p402 = scmp.eq.s32.totalorder %s36, 0
      %p403 = por %p401, %p402
      %p404 = scmp.ne.s32.totalorder %s390, %s391
      %p405 = scmp.eq.s32.totalorder %s37, 1
      %p406 = por %p404, %p405
      %p408 = scmp.ne.s32.totalorder %s391, %s407
      %p409 = scmp.eq.s32.totalorder %s37, 0
      %p410 = por %p408, %p409
      %p411 = scmp.le.s32.totalorder 1, %s31
      %p412 = scmp.lt.s32.totalorder %s31, 3
      %p413 = pnand %p411, %p412
      %p414 = pneg %p413
      // Predicated region
      $region9: #{wav2vec2_forward.2} parent=5 // pred_check
        _
      $region10: #{wav2vec2_forward.2} parent=5 // pred_check_branch
        %416 = sbr.rel (%p413) target = $region12
      $region11: #{wav2vec2_forward.2} parent=5 // pred_region
        %s417 = ssub.s32 %s31, 1
        // Predicated region
        $region13: #{wav2vec2_forward.2} parent=11 // pred_check
          %p418 = pneg %p78
        $region14: #{wav2vec2_forward.2} parent=11 // pred_check_branch
          %420 = sbr.rel (%p418) target = $region16
        $region15: #{wav2vec2_forward.2} parent=11 // pred_region
          %422 = vsyncadd [#allocation3], 0
          %s423 = sshll.u32 %s1, 4
          %s424 = int_to_ptr.hbm [resolvable:$true] %s423
          %s425 = sshll.u32 [#allocation2], 4
          %s426 = int_to_ptr.vmem [resolvable:$true] %s425
          %431 = dma.hbm_to_vmem [thread:$0]  %s424, 1920, %s426, [#allocation3], 128, 128, 8
        $region16: #{wav2vec2_forward.2} parent=11 // pred_fallthru
          _
        // Predicated region
        $region17: #{wav2vec2_forward.2} parent=11 // pred_check
          %p432 = pneg %p99
        $region18: #{wav2vec2_forward.2} parent=11 // pred_check_branch
          %434 = sbr.rel (%p432) target = $region20
        $region19: #{wav2vec2_forward.2} parent=11 // pred_region
          %436 = vsyncadd [#allocation6], 0
          %s437 = sshll.u32 %s2, 4
          %s438 = int_to_ptr.hbm [resolvable:$true] %s437
          %s439 = sshll.u32 [#allocation5], 4
          %s440 = int_to_ptr.vmem [resolvable:$true] %s439
          %445 = dma.hbm_to_vmem [thread:$0]  %s438, 192, %s440, [#allocation6], 64, 64, 4
        $region20: #{wav2vec2_forward.2} parent=11 // pred_fallthru
          _
        // Predicated region
        $region21: #{wav2vec2_forward.2} parent=11 // pred_check
          %p446 = pneg %p120
        $region22: #{wav2vec2_forward.2} parent=11 // pred_check_branch
          %448 = sbr.rel (%p446) target = $region24
        $region23: #{wav2vec2_forward.2} parent=11 // pred_region
          %450 = vsyncadd [#allocation6], 0
          %s452 = sshll.u32 %s3, 4
          %s453 = int_to_ptr.hbm [resolvable:$true] %s452
          %s454 = sshll.u32 [#allocation7], 4
          %s455 = int_to_ptr.vmem [resolvable:$true] %s454
          %457 = dma.hbm_to_vmem [thread:$0]  %s453, 16, %s455, [#allocation6]
        $region24: #{wav2vec2_forward.2} parent=11 // pred_fallthru
          _
        // Predicated region
        $region25: #{wav2vec2_forward.2} parent=11 // pred_check
          %p458 = pneg %p141
        $region26: #{wav2vec2_forward.2} parent=11 // pred_check_branch
          %460 = sbr.rel (%p458) target = $region28
        $region27: #{wav2vec2_forward.2} parent=11 // pred_region
          %462 = vsyncadd [#allocation9], 0
          %s464 = sshll.u32 %s4, 4
          %s465 = int_to_ptr.hbm [resolvable:$true] %s464
          %s466 = sshll.u32 [#allocation8], 4
          %s467 = int_to_ptr.vmem [resolvable:$true] %s466
          %469 = dma.hbm_to_vmem [thread:$0]  %s465, 16, %s467, [#allocation9]
        $region28: #{wav2vec2_forward.2} parent=11 // pred_fallthru
          _
        // Predicated region
        $region29: #{wav2vec2_forward.2} parent=11 // pred_check
          %p470 = pneg %p162
        $region30: #{wav2vec2_forward.2} parent=11 // pred_check_branch
          %472 = sbr.rel (%p470) target = $region32
        $region31: #{wav2vec2_forward.2} parent=11 // pred_region
          %474 = vsyncadd [#allocation9], 0
          %s476 = sshll.u32 %s5, 4
          %s477 = int_to_ptr.hbm [resolvable:$true] %s476
          %s478 = sshll.u32 [#allocation10], 4
          %s479 = int_to_ptr.vmem [resolvable:$true] %s478
          %481 = dma.hbm_to_vmem [thread:$0]  %s477, 16, %s479, [#allocation9]
        $region32: #{wav2vec2_forward.2} parent=11 // pred_fallthru
          _
        // Predicated region
        $region33: #{wav2vec2_forward.2} parent=11 // pred_check
          %p482 = pneg %p183
        $region34: #{wav2vec2_forward.2} parent=11 // pred_check_branch
          %484 = sbr.rel (%p482) target = $region36
        $region35: #{wav2vec2_forward.2} parent=11 // pred_region
          %486 = vsyncadd [#allocation12], 0
          %s487 = sshll.u32 %s6, 4
          %s488 = int_to_ptr.hbm [resolvable:$true] %s487
          %s489 = sshll.u32 [#allocation11], 4
          %s490 = int_to_ptr.vmem [resolvable:$true] %s489
          %495 = dma.hbm_to_vmem [thread:$0]  %s488, 768, %s490, [#allocation12], 128, 128, 8
        $region36: #{wav2vec2_forward.2} parent=11 // pred_fallthru
          _
        // Predicated region
        $region37: #{wav2vec2_forward.2} parent=11 // pred_check
          %p496 = pneg %p204
        $region38: #{wav2vec2_forward.2} parent=11 // pred_check_branch
          %498 = sbr.rel (%p496) target = $region40
        $region39: #{wav2vec2_forward.2} parent=11 // pred_region
          _
        $region40: #{wav2vec2_forward.2} parent=11 // pred_fallthru
          _
        // Predicated region
        $region41: #{wav2vec2_forward.2} parent=11 // pred_check
          %p499 = pneg %p225
        $region42: #{wav2vec2_forward.2} parent=11 // pred_check_branch
          %501 = sbr.rel (%p499) target = $region44
        $region43: #{wav2vec2_forward.2} parent=11 // pred_region
          %503 = vsyncadd [#allocation12], 0
          %s505 = sshll.u32 %s8, 4
          %s506 = int_to_ptr.hbm [resolvable:$true] %s505
          %s507 = sshll.u32 [#allocation13], 4
          %s508 = int_to_ptr.vmem [resolvable:$true] %s507
          %510 = dma.hbm_to_vmem [thread:$0]  %s506, 16, %s508, [#allocation12]
        $region44: #{wav2vec2_forward.2} parent=11 // pred_fallthru
          _
        // Predicated region
        $region45: #{wav2vec2_forward.2} parent=11 // pred_check
          %p511 = pneg %p246
        $region46: #{wav2vec2_forward.2} parent=11 // pred_check_branch
          %513 = sbr.rel (%p511) target = $region48
        $region47: #{wav2vec2_forward.2} parent=11 // pred_region
          _
        $region48: #{wav2vec2_forward.2} parent=11 // pred_fallthru
          _
        // Predicated region
        $region49: #{wav2vec2_forward.2} parent=11 // pred_check
          %p514 = pneg %p267
        $region50: #{wav2vec2_forward.2} parent=11 // pred_check_branch
          %516 = sbr.rel (%p514) target = $region52
        $region51: #{wav2vec2_forward.2} parent=11 // pred_region
          _
        $region52: #{wav2vec2_forward.2} parent=11 // pred_fallthru
          _
        // Predicated region
        $region53: #{wav2vec2_forward.2} parent=11 // pred_check
          %p517 = pneg %p288
        $region54: #{wav2vec2_forward.2} parent=11 // pred_check_branch
          %519 = sbr.rel (%p517) target = $region56
        $region55: #{wav2vec2_forward.2} parent=11 // pred_region
          %521 = vsyncadd [#allocation15], 0
          %s522 = sshll.u32 %s11, 4
          %s523 = int_to_ptr.hbm [resolvable:$true] %s522
          %s524 = sshll.u32 [#allocation14], 4
          %s525 = int_to_ptr.vmem [resolvable:$true] %s524
          %530 = dma.hbm_to_vmem [thread:$0]  %s523, 256, %s525, [#allocation15], 128, 128, 8
        $region56: #{wav2vec2_forward.2} parent=11 // pred_fallthru
          _
        // Predicated region
        $region57: #{wav2vec2_forward.2} parent=11 // pred_check
          %p531 = pneg %p309
        $region58: #{wav2vec2_forward.2} parent=11 // pred_check_branch
          %533 = sbr.rel (%p531) target = $region60
        $region59: #{wav2vec2_forward.2} parent=11 // pred_region
          _
        $region60: #{wav2vec2_forward.2} parent=11 // pred_fallthru
          _
        // Predicated region
        $region61: #{wav2vec2_forward.2} parent=11 // pred_check
          %p534 = pneg %p330
        $region62: #{wav2vec2_forward.2} parent=11 // pred_check_branch
          %536 = sbr.rel (%p534) target = $region64
        $region63: #{wav2vec2_forward.2} parent=11 // pred_region
          _
        $region64: #{wav2vec2_forward.2} parent=11 // pred_fallthru
          _
        // Predicated region
        $region65: #{wav2vec2_forward.2} parent=11 // pred_check
          %p537 = pneg %p351
        $region66: #{wav2vec2_forward.2} parent=11 // pred_check_branch
          %539 = sbr.rel (%p537) target = $region68
        $region67: #{wav2vec2_forward.2} parent=11 // pred_region
          _
        $region68: #{wav2vec2_forward.2} parent=11 // pred_fallthru
          _
      $region12: #{wav2vec2_forward.2} parent=5 // pred_fallthru
        _
      %p540 = scmp.lt.s32.totalorder %s31, 2
      // Predicated region
      $region69: #{wav2vec2_forward.2} parent=5 // pred_check
        %p541 = pneg %p540
      $region70: #{wav2vec2_forward.2} parent=5 // pred_check_branch
        %543 = sbr.rel (%p541) target = $region72
      $region71: #{wav2vec2_forward.2} parent=5 // pred_region
        // Predicated region
        $region73: #{wav2vec2_forward.2} parent=71 // pred_check
          %p544 = pneg %p51
        $region74: #{wav2vec2_forward.2} parent=71 // pred_check_branch
          %546 = sbr.rel (%p544) target = $region76
        $region75: #{wav2vec2_forward.2} parent=71 // pred_region
          %p547 = scmp.lt.s32.totalorder %s31, 1
          %s548 = scalar_select %p547, %s31, 1
          %s549 = smul.addr %s548, 9
          %s550 = smul.addr %s549, 8
          %s551 = scalar_lea.vmem %s0, %s550
        $region76: #{wav2vec2_forward.2} parent=71 // pred_fallthru
          _
      $region72: #{wav2vec2_forward.2} parent=5 // pred_fallthru
        _
      %p552 = scmp.le.s32.totalorder 1, %s31
      %p553 = scmp.lt.s32.totalorder %s31, 3
      %p554 = pnand %p552, %p553
      %p555 = pneg %p554
      // Predicated region
      $region77: #{wav2vec2_forward.2} parent=5 // pred_check
        _
      $region78: #{wav2vec2_forward.2} parent=5 // pred_check_branch
        %557 = sbr.rel (%p554) target = $region80
      $region79: #{wav2vec2_forward.2} parent=5 // pred_region
        %s558 = ssub.s32 %s31, 1
        // Predicated region
        $region81: #{wav2vec2_forward.2} parent=79 // pred_check
          %p559 = pneg %p78
        $region82: #{wav2vec2_forward.2} parent=79 // pred_check_branch
          %561 = sbr.rel (%p559) target = $region84
        $region83: #{wav2vec2_forward.2} parent=79 // pred_region
          %563 = dma.done [#allocation3], 1920
        $region84: #{wav2vec2_forward.2} parent=79 // pred_fallthru
          _
        // Predicated region
        $region85: #{wav2vec2_forward.2} parent=79 // pred_check
          %p564 = pneg %p99
        $region86: #{wav2vec2_forward.2} parent=79 // pred_check_branch
          %566 = sbr.rel (%p564) target = $region88
        $region87: #{wav2vec2_forward.2} parent=79 // pred_region
          %568 = dma.done [#allocation6], 192
        $region88: #{wav2vec2_forward.2} parent=79 // pred_fallthru
          _
        // Predicated region
        $region89: #{wav2vec2_forward.2} parent=79 // pred_check
          %p569 = pneg %p120
        $region90: #{wav2vec2_forward.2} parent=79 // pred_check_branch
          %571 = sbr.rel (%p569) target = $region92
        $region91: #{wav2vec2_forward.2} parent=79 // pred_region
          %573 = dma.done [#allocation6], 16
        $region92: #{wav2vec2_forward.2} parent=79 // pred_fallthru
          _
        // Predicated region
        $region93: #{wav2vec2_forward.2} parent=79 // pred_check
          %p574 = pneg %p141
        $region94: #{wav2vec2_forward.2} parent=79 // pred_check_branch
          %576 = sbr.rel (%p574) target = $region96
        $region95: #{wav2vec2_forward.2} parent=79 // pred_region
          %578 = dma.done [#allocation9], 16
        $region96: #{wav2vec2_forward.2} parent=79 // pred_fallthru
          _
        // Predicated region
        $region97: #{wav2vec2_forward.2} parent=79 // pred_check
          %p579 = pneg %p162
        $region98: #{wav2vec2_forward.2} parent=79 // pred_check_branch
          %581 = sbr.rel (%p579) target = $region100
        $region99: #{wav2vec2_forward.2} parent=79 // pred_region
          %583 = dma.done [#allocation9], 16
        $region100: #{wav2vec2_forward.2} parent=79 // pred_fallthru
          _
        // Predicated region
        $region101: #{wav2vec2_forward.2} parent=79 // pred_check
          %p584 = pneg %p183
        $region102: #{wav2vec2_forward.2} parent=79 // pred_check_branch
          %586 = sbr.rel (%p584) target = $region104
        $region103: #{wav2vec2_forward.2} parent=79 // pred_region
          %588 = dma.done [#allocation12], 768
        $region104: #{wav2vec2_forward.2} parent=79 // pred_fallthru
          _
        // Predicated region
        $region105: #{wav2vec2_forward.2} parent=79 // pred_check
          %p589 = pneg %p225
        $region106: #{wav2vec2_forward.2} parent=79 // pred_check_branch
          %591 = sbr.rel (%p589) target = $region108
        $region107: #{wav2vec2_forward.2} parent=79 // pred_region
          %593 = dma.done [#allocation12], 16
        $region108: #{wav2vec2_forward.2} parent=79 // pred_fallthru
          _
        // Predicated region
        $region109: #{wav2vec2_forward.2} parent=79 // pred_check
          %p594 = pneg %p288
        $region110: #{wav2vec2_forward.2} parent=79 // pred_check_branch
          %596 = sbr.rel (%p594) target = $region112
        $region111: #{wav2vec2_forward.2} parent=79 // pred_region
          %598 = dma.done [#allocation15], 256
        $region112: #{wav2vec2_forward.2} parent=79 // pred_fallthru
          _
        %p599 = scmp.lt.s32.totalorder %s36, 1
        %s600 = scalar_select %p599, %s36, 1
        %s601 = smul.addr %s600, 9
        %s602 = smul.addr %s601, 8
        %s603 = scalar_lea.vmem %s0, %s602
        %p604 = pneg %p57
        %p605 = pneg %p54
        %p606 = pneg %p78
        %p607 = pneg %p75
        %p608 = pneg %p99
        %p609 = pneg %p96
        %p610 = pneg %p120
        %p611 = pneg %p117
        %p612 = pneg %p141
        %p613 = pneg %p138
        %p614 = pneg %p162
        %p615 = pneg %p159
        %p616 = pneg %p183
        %p617 = pneg %p180
        %p618 = pneg %p204
        %p619 = pneg %p201
        %p620 = pneg %p225
        %p621 = pneg %p222
        %p622 = pneg %p246
        %p623 = pneg %p243
        %p624 = pneg %p267
        %p625 = pneg %p264
        %p626 = pneg %p288
        %p627 = pneg %p285
        %p628 = pneg %p309
        %p629 = pneg %p306
        %p630 = pneg %p330
        %p631 = pneg %p327
        %p632 = pneg %p351
        %p633 = pneg %p348
        %p634 = pneg %p377
        %p635 = pneg %p374
        %s636 = smul.u32 2, %s36
        %p637 = scmp.lt.s32.totalorder %s636, 3
        %s638 = scalar_select %p637, %s636, 3
        %s639 = smul.addr %s638, 8
        %s640 = scalar_lea.vmem %s15, %s639
        %p641 = pneg %p403
        %p642 = pneg %p400
        %s643 = sand.u32 %s390, 1
        %s644 = scalar_lea.sflag [#allocation4], %s643
        %s645 = sand.u32 %s390, 1
        %s646 = smul.addr %s645, 16
        %s647 = scalar_lea.vmem [#allocation16], %s646
        %p648 = scmp.lt.s32.totalorder %s36, 1
        %s649 = scalar_select %p648, %s36, 1
        %s650 = smul.addr %s649, 9
        %s651 = smul.addr %s650, 8
        %s652 = scalar_lea.vmem %s0, %s651
        %s653 = smul.u32 2, %s36
        %p654 = scmp.lt.s32.totalorder %s653, 3
        %s655 = scalar_select %p654, %s653, 3
        %s656 = smul.addr %s655, 8
        %s657 = scalar_lea.vmem %s15, %s656
        %s658 = smul.u32 2, %s36
        %s659 = smul.u32 2, %s36
        %v660 = vld [vmem:[%s652] sm:$0xff]
        %v661 = vld [vmem:[%s652 + $0x8] sm:$0xff]
        %v662 = vld [vmem:[%s652 + $0x10] sm:$0xff]
        %v663 = vld [vmem:[%s652 + $0x18] sm:$0xff]
        %v664 = vld [vmem:[%s652 + $0x20] sm:$0xff]
        %v665 = vld [vmem:[%s652 + $0x28] sm:$0xff]
        %v666 = vld [vmem:[%s652 + $0x30] sm:$0xff]
        %v667 = vld [vmem:[%s652 + $0x38] sm:$0xff]
        %v668 = vld [vmem:[%s652 + $0x40] sm:$0x7]
        %v669 = vld [vmem:[#allocation5] sm:$0xf]
        %vm670 = vcmask 31744
        %v672 = vsel %vm670, %v660, 0
        %v675 = vsel %vm670, %v661, 0
        %v678 = vsel %vm670, %v662, 0
        %v681 = vsel %vm670, %v663, 0
        %v684 = vsel %vm670, %v664, 0
        %v687 = vsel %vm670, %v665, 0
        %v690 = vsel %vm670, %v666, 0
        %v693 = vsel %vm670, %v667, 0
        %v696 = vsel %vm670, %v668, 0
        %vm698 = vcmask 1043456
        %v700 = vsel %vm698, %v669, 0
        %702 = vmatpush.msra.mxu0 0.0
        %703 = vmatpush.msra.mxu0 0.0
        %704 = vmatpush.msra.mxu0 0.0
        %705 = vmatpush.msra.mxu0 0.0
        %706 = vmatpush.msra.mxu0 0.0
        %707 = vmatpush.msra.mxu0 0.0
        %708 = vmatpush.msra.mxu0 0.0
        %709 = vmatpush.msra.mxu0 0.0
        %710 = vmatpush.msra.mxu0 0.0
        %711 = vmatpush.msra.mxu0 0.0
        %712 = vmatpush.msra.mxu0 0.0
        %713 = vmatpush.msra.mxu0 0.0
        %714 = vmatpush.msra.mxu0 0.0
        %715 = vmatpush.msra.mxu0 0.0
        %716 = vmatpush.msra.mxu0 0.0
        %717 = vmatpush.msra.mxu0 %v700
        %718 = vmatmul.f32.gmra.mxu0 %v672
        %v719 = vpop.f32.mrf.mxu0
        %v720 = vadd.f32 0.0, %v719
        %721 = vmatmul.f32.gmra.mxu0 %v675
        %v722 = vpop.f32.mrf.mxu0
        %v723 = vadd.f32 0.0, %v722
        %724 = vmatmul.f32.gmra.mxu0 %v678
        %v725 = vpop.f32.mrf.mxu0
        %v726 = vadd.f32 0.0, %v725
        %727 = vmatmul.f32.gmra.mxu0 %v681
        %v728 = vpop.f32.mrf.mxu0
        %v729 = vadd.f32 0.0, %v728
        %730 = vmatmul.f32.gmra.mxu0 %v684
        %v731 = vpop.f32.mrf.mxu0
        %v732 = vadd.f32 0.0, %v731
        %733 = vmatmul.f32.gmra.mxu0 %v687
        %v734 = vpop.f32.mrf.mxu0
        %v735 = vadd.f32 0.0, %v734
        %736 = vmatmul.f32.gmra.mxu0 %v690
        %v737 = vpop.f32.mrf.mxu0
        %v738 = vadd.f32 0.0, %v737
        %739 = vmatmul.f32.gmra.mxu0 %v693
        %v740 = vpop.f32.mrf.mxu0
        %v741 = vadd.f32 0.0, %v740
        %742 = vmatmul.f32.gmra.mxu0 %v696
        %v743 = vpop.f32.mrf.mxu0
        %v744 = vadd.f32 0.0, %v743
        %745 = vdwg.mxu0
        %v746 = vld [vmem:[#allocation2] sm:$0xff]
        %v747 = vld [vmem:[#allocation2 + $0x8] sm:$0xff]
        %v748 = vld [vmem:[#allocation2 + $0x10] sm:$0xff]
        %v749 = vld [vmem:[#allocation2 + $0x18] sm:$0xff]
        %v750 = vld [vmem:[#allocation2 + $0x20] sm:$0x1]
        %s751 = scalar_lea.vmem [#allocation5], 4
        %v752 = vld [vmem:[%s751] sm:$0xf]
        %v754 = vsel %vm698, %v752, 0
        %756 = vmatpush.msra.mxu0 0.0
        %757 = vmatpush.msra.mxu0 0.0
        %758 = vmatpush.msra.mxu0 0.0
        %759 = vmatpush.msra.mxu0 0.0
        %760 = vmatpush.msra.mxu0 0.0
        %761 = vmatpush.msra.mxu0 0.0
        %762 = vmatpush.msra.mxu0 0.0
        %763 = vmatpush.msra.mxu0 0.0
        %764 = vmatpush.msra.mxu0 0.0
        %765 = vmatpush.msra.mxu0 0.0
        %766 = vmatpush.msra.mxu0 0.0
        %767 = vmatpush.msra.mxu0 0.0
        %768 = vmatpush.msra.mxu0 0.0
        %769 = vmatpush.msra.mxu0 0.0
        %770 = vmatpush.msra.mxu0 0.0
        %771 = vmatpush.msra.mxu0 %v754
        %772 = vmatmul.f32.gmra.mxu0 %v672
        %v773 = vpop.f32.mrf.mxu0
        %v774 = vadd.f32 0.0, %v773
        %775 = vmatmul.f32.gmra.mxu0 %v675
        %v776 = vpop.f32.mrf.mxu0
        %v777 = vadd.f32 0.0, %v776
        %778 = vmatmul.f32.gmra.mxu0 %v678
        %v779 = vpop.f32.mrf.mxu0
        %v780 = vadd.f32 0.0, %v779
        %781 = vmatmul.f32.gmra.mxu0 %v681
        %v782 = vpop.f32.mrf.mxu0
        %v783 = vadd.f32 0.0, %v782
        %784 = vmatmul.f32.gmra.mxu0 %v684
        %v785 = vpop.f32.mrf.mxu0
        %v786 = vadd.f32 0.0, %v785
        %787 = vmatmul.f32.gmra.mxu0 %v687
        %v788 = vpop.f32.mrf.mxu0
        %v789 = vadd.f32 0.0, %v788
        %790 = vmatmul.f32.gmra.mxu0 %v690
        %v791 = vpop.f32.mrf.mxu0
        %v792 = vadd.f32 0.0, %v791
        %793 = vmatmul.f32.gmra.mxu0 %v693
        %v794 = vpop.f32.mrf.mxu0
        %v795 = vadd.f32 0.0, %v794
        %796 = vmatmul.f32.gmra.mxu0 %v696
        %v797 = vpop.f32.mrf.mxu0
        %v798 = vadd.f32 0.0, %v797
        %799 = vdwg.mxu0
        %s800 = scalar_lea.vmem [#allocation2], 40
        %v801 = vld [vmem:[%s800] sm:$0xff]
        %v802 = vld [vmem:[%s800 + $0x8] sm:$0xff]
        %v803 = vld [vmem:[%s800 + $0x10] sm:$0xff]
        %v804 = vld [vmem:[%s800 + $0x18] sm:$0xff]
        %v805 = vld [vmem:[%s800 + $0x20] sm:$0x1]
        %vm806 = vcmask 547840
        %v808 = vsel %vm806, %v801, 0
        %v811 = vsel %vm806, %v802, 0
        %v814 = vsel %vm806, %v803, 0
        %v817 = vsel %vm806, %v804, 0
        %v820 = vsel %vm806, %v805, 0
        %vm822 = vcmask 1042432
        %v824 = vsel %vm822, %v798, 0
        %826 = vmatpush.msra.mxu0 0.0
        %827 = vmatpush.msra.mxu0 0.0
        %828 = vmatpush.msra.mxu0 0.0
        %829 = vmatpush.msra.mxu0 0.0
        %830 = vmatpush.msra.mxu0 0.0
        %831 = vmatpush.msra.mxu0 0.0
        %832 = vmatpush.msra.mxu0 0.0
        %833 = vmatpush.msra.mxu0 %v824
        %834 = vmatpush.msra.mxu0 %v795
        %835 = vmatpush.msra.mxu0 %v792
        %836 = vmatpush.msra.mxu0 %v789
        %837 = vmatpush.msra.mxu0 %v786
        %838 = vmatpush.msra.mxu0 %v783
        %839 = vmatpush.msra.mxu0 %v780
        %840 = vmatpush.msra.mxu0 %v777
        %841 = vmatpush.msra.mxu0 %v774
        %842 = vmatmul.f32.gmra.mxu0 %v808
        %v843 = vpop.f32.mrf.mxu0
        %v844 = vadd.f32 0.0, %v843
        %845 = vmatmul.f32.gmra.mxu0 %v811
        %v846 = vpop.f32.mrf.mxu0
        %v847 = vadd.f32 0.0, %v846
        %848 = vmatmul.f32.gmra.mxu0 %v814
        %v849 = vpop.f32.mrf.mxu0
        %v850 = vadd.f32 0.0, %v849
        %851 = vmatmul.f32.gmra.mxu0 %v817
        %v852 = vpop.f32.mrf.mxu0
        %v853 = vadd.f32 0.0, %v852
        %854 = vmatmul.f32.gmra.mxu0 %v820
        %v855 = vpop.f32.mrf.mxu0
        %v856 = vadd.f32 0.0, %v855
        %857 = vdwg.mxu0
        %v859 = vsel %vm806, %v746, 0
        %v862 = vsel %vm806, %v747, 0
        %v865 = vsel %vm806, %v748, 0
        %v868 = vsel %vm806, %v749, 0
        %v871 = vsel %vm806, %v750, 0
        %v874 = vsel %vm822, %v744, 0
        %876 = vmatpush.msra.mxu0 0.0
        %877 = vmatpush.msra.mxu0 0.0
        %878 = vmatpush.msra.mxu0 0.0
        %879 = vmatpush.msra.mxu0 0.0
        %880 = vmatpush.msra.mxu0 0.0
        %881 = vmatpush.msra.mxu0 0.0
        %882 = vmatpush.msra.mxu0 0.0
        %883 = vmatpush.msra.mxu0 %v874
        %884 = vmatpush.msra.mxu0 %v741
        %885 = vmatpush.msra.mxu0 %v738
        %886 = vmatpush.msra.mxu0 %v735
        %887 = vmatpush.msra.mxu0 %v732
        %888 = vmatpush.msra.mxu0 %v729
        %889 = vmatpush.msra.mxu0 %v726
        %890 = vmatpush.msra.mxu0 %v723
        %891 = vmatpush.msra.mxu0 %v720
        %892 = vmatmul.f32.gmra.mxu0 %v859
        %v893 = vpop.f32.mrf.mxu0
        %v894 = vadd.f32 %v844, %v893
        %895 = vmatmul.f32.gmra.mxu0 %v862
        %v896 = vpop.f32.mrf.mxu0
        %v897 = vadd.f32 %v847, %v896
        %898 = vmatmul.f32.gmra.mxu0 %v865
        %v899 = vpop.f32.mrf.mxu0
        %v900 = vadd.f32 %v850, %v899
        %901 = vmatmul.f32.gmra.mxu0 %v868
        %v902 = vpop.f32.mrf.mxu0
        %v903 = vadd.f32 %v853, %v902
        %904 = vmatmul.f32.gmra.mxu0 %v871
        %v905 = vpop.f32.mrf.mxu0
        %v906 = vadd.f32 %v856, %v905
        %907 = vdwg.mxu0
        %s908 = scalar_lea.vmem [#allocation5], 8
        %v909 = vld [vmem:[%s908] sm:$0xf]
        %v911 = vsel %vm698, %v909, 0
        %913 = vmatpush.msra.mxu0 0.0
        %914 = vmatpush.msra.mxu0 0.0
        %915 = vmatpush.msra.mxu0 0.0
        %916 = vmatpush.msra.mxu0 0.0
        %917 = vmatpush.msra.mxu0 0.0
        %918 = vmatpush.msra.mxu0 0.0
        %919 = vmatpush.msra.mxu0 0.0
        %920 = vmatpush.msra.mxu0 0.0
        %921 = vmatpush.msra.mxu0 0.0
        %922 = vmatpush.msra.mxu0 0.0
        %923 = vmatpush.msra.mxu0 0.0
        %924 = vmatpush.msra.mxu0 0.0
        %925 = vmatpush.msra.mxu0 0.0
        %926 = vmatpush.msra.mxu0 0.0
        %927 = vmatpush.msra.mxu0 0.0
        %928 = vmatpush.msra.mxu0 %v911
        %929 = vmatmul.f32.gmra.mxu0 %v672
        %v930 = vpop.f32.mrf.mxu0
        %v931 = vadd.f32 0.0, %v930
        %932 = vmatmul.f32.gmra.mxu0 %v675
        %v933 = vpop.f32.mrf.mxu0
        %v934 = vadd.f32 0.0, %v933
        %935 = vmatmul.f32.gmra.mxu0 %v678
        %v936 = vpop.f32.mrf.mxu0
        %v937 = vadd.f32 0.0, %v936
        %938 = vmatmul.f32.gmra.mxu0 %v681
        %v939 = vpop.f32.mrf.mxu0
        %v940 = vadd.f32 0.0, %v939
        %941 = vmatmul.f32.gmra.mxu0 %v684
        %v942 = vpop.f32.mrf.mxu0
        %v943 = vadd.f32 0.0, %v942
        %944 = vmatmul.f32.gmra.mxu0 %v687
        %v945 = vpop.f32.mrf.mxu0
        %v946 = vadd.f32 0.0, %v945
        %947 = vmatmul.f32.gmra.mxu0 %v690
        %v948 = vpop.f32.mrf.mxu0
        %v949 = vadd.f32 0.0, %v948
        %950 = vmatmul.f32.gmra.mxu0 %v693
        %v951 = vpop.f32.mrf.mxu0
        %v952 = vadd.f32 0.0, %v951
        %953 = vmatmul.f32.gmra.mxu0 %v696
        %v954 = vpop.f32.mrf.mxu0
        %v955 = vadd.f32 0.0, %v954
        %956 = vdwg.mxu0
        %s957 = scalar_lea.vmem [#allocation2], 80
        %v958 = vld [vmem:[%s957] sm:$0xff]
        %v959 = vld [vmem:[%s957 + $0x8] sm:$0xff]
        %v960 = vld [vmem:[%s957 + $0x10] sm:$0xff]
        %v961 = vld [vmem:[%s957 + $0x18] sm:$0xff]
        %v962 = vld [vmem:[%s957 + $0x20] sm:$0x1]
        %v964 = vsel %vm806, %v958, 0
        %v967 = vsel %vm806, %v959, 0
        %v970 = vsel %vm806, %v960, 0
        %v973 = vsel %vm806, %v961, 0
        %v976 = vsel %vm806, %v962, 0
        %v979 = vsel %vm822, %v955, 0
        %981 = vmatpush.msra.mxu0 0.0
        %982 = vmatpush.msra.mxu0 0.0
        %983 = vmatpush.msra.mxu0 0.0
        %984 = vmatpush.msra.mxu0 0.0
        %985 = vmatpush.msra.mxu0 0.0
        %986 = vmatpush.msra.mxu0 0.0
        %987 = vmatpush.msra.mxu0 0.0
        %988 = vmatpush.msra.mxu0 %v979
        %989 = vmatpush.msra.mxu0 %v952
        %990 = vmatpush.msra.mxu0 %v949
        %991 = vmatpush.msra.mxu0 %v946
        %992 = vmatpush.msra.mxu0 %v943
        %993 = vmatpush.msra.mxu0 %v940
        %994 = vmatpush.msra.mxu0 %v937
        %995 = vmatpush.msra.mxu0 %v934
        %996 = vmatpush.msra.mxu0 %v931
        %997 = vmatmul.f32.gmra.mxu0 %v964
        %v998 = vpop.f32.mrf.mxu0
        %v999 = vadd.f32 0.0, %v998
        %1000 = vmatmul.f32.gmra.mxu0 %v967
        %v1001 = vpop.f32.mrf.mxu0
        %v1002 = vadd.f32 0.0, %v1001
        %1003 = vmatmul.f32.gmra.mxu0 %v970
        %v1004 = vpop.f32.mrf.mxu0
        %v1005 = vadd.f32 0.0, %v1004
        %1006 = vmatmul.f32.gmra.mxu0 %v973
        %v1007 = vpop.f32.mrf.mxu0
        %v1008 = vadd.f32 0.0, %v1007
        %1009 = vmatmul.f32.gmra.mxu0 %v976
        %v1010 = vpop.f32.mrf.mxu0
        %v1011 = vadd.f32 0.0, %v1010
        %1012 = vdwg.mxu0
        %v1013 = vadd.f32 %v894, %v999
        %v1014 = vadd.f32 %v897, %v1002
        %v1015 = vadd.f32 %v900, %v1005
        %v1016 = vadd.f32 %v903, %v1008
        %v1017 = vadd.f32 %v906, %v1011
        %v1018 = vld [vmem:[#allocation7] sm:$0x1]
        %v1020 = vperm.slane %v1018, 0
        %v1022 = vadd.f32 %v1013, %v1020
        %v1023 = vadd.f32 %v1014, %v1020
        %v1024 = vadd.f32 %v1015, %v1020
        %v1025 = vadd.f32 %v1016, %v1020
        %v1026 = vadd.f32 %v1017, %v1020
        %vm1027 = vcmask 64512
        %v1028 = vsel %vm1027, %v1022, 0.0
        %v1029 = vsel %vm1027, %v1023, 0.0
        %v1030 = vadd.f32 %v1028, %v1029
        %v1031 = vsel %vm1027, %v1024, 0.0
        %v1032 = vadd.f32 %v1030, %v1031
        %v1033 = vsel %vm1027, %v1025, 0.0
        %v1034 = vadd.f32 %v1032, %v1033
        %vm1035 = vcmask 57344
        %v1036 = vsel %vm1035, %v1026, 0.0
        %v1037 = vadd.f32 %v1034, %v1036
        %v1038 = vrot.slane %v1037, 4
        %v1039 = vadd.f32 %v1037, %v1038
        %v1040 = vrot.slane %v1039, 2
        %v1041 = vadd.f32 %v1039, %v1040
        %v1042 = vrot.slane %v1041, 1
        %v1043 = vadd.f32 %v1041, %v1042
        %v1044 = vrcp.pop 33.0
        %v1045 = vmul.f32 33.0, %v1044
        %v1046 = vsub.f32 1.0, %v1045
        %v1047 = vmul.f32 %v1044, %v1046
        %v1048 = vadd.f32 %v1044, %v1047
        %vm1049 = vweird.f32 %v1044
        %v1050 = vsel %vm1049, %v1044, %v1048
        %v1051 = vmul.f32 %v1043, %v1050
        %v1052 = vsub.f32 %v1022, %v1051
        %v1053 = vsub.f32 %v1023, %v1051
        %v1054 = vsub.f32 %v1024, %v1051
        %v1055 = vsub.f32 %v1025, %v1051
        %v1056 = vsub.f32 %v1026, %v1051
        %v1057 = vmul.f32 %v1052, %v1052
        %v1058 = vmul.f32 %v1053, %v1053
        %v1059 = vmul.f32 %v1054, %v1054
        %v1060 = vmul.f32 %v1055, %v1055
        %v1061 = vmul.f32 %v1056, %v1056
        %v1062 = vsel %vm1027, %v1057, 0.0
        %v1063 = vsel %vm1027, %v1058, 0.0
        %v1064 = vadd.f32 %v1062, %v1063
        %v1065 = vsel %vm1027, %v1059, 0.0
        %v1066 = vadd.f32 %v1064, %v1065
        %v1067 = vsel %vm1027, %v1060, 0.0
        %v1068 = vadd.f32 %v1066, %v1067
        %v1069 = vsel %vm1035, %v1061, 0.0
        %v1070 = vadd.f32 %v1068, %v1069
        %v1071 = vrot.slane %v1070, 4
        %v1072 = vadd.f32 %v1070, %v1071
        %v1073 = vrot.slane %v1072, 2
        %v1074 = vadd.f32 %v1072, %v1073
        %v1075 = vrot.slane %v1074, 1
        %v1076 = vadd.f32 %v1074, %v1075
        %v1077 = vmul.f32 %v1076, %v1050
        %v1078 = vadd.f32 %v1077, 1e-05
        %v1079 = vrsqrt.pop %v1078
        %v1080 = vmul.f32 %v1079, %v1078
        %v1081 = vmul.f32 %v1080, %v1079
        %v1082 = vmul.f32 0.5, %v1081
        %v1083 = vsub.f32 1.5, %v1082
        %v1084 = vmul.f32 %v1079, %v1083
        %vm1085 = vweird.f32 %v1078
        %vm1086 = vweird.f32 %v1079
        %vm1087 = vmor %vm1085, %vm1086
        %v1088 = vsel %vm1087, %v1079, %v1084
        %v1089 = vmul.f32 %v1052, %v1088
        %v1090 = vmul.f32 %v1053, %v1088
        %v1091 = vmul.f32 %v1054, %v1088
        %v1092 = vmul.f32 %v1055, %v1088
        %v1093 = vmul.f32 %v1056, %v1088
        %v1094 = vld [vmem:[#allocation8] sm:$0x1]
        %v1096 = vperm.slane %v1094, 0
        %v1098 = vmul.f32 %v1089, %v1096
        %v1099 = vmul.f32 %v1090, %v1096
        %v1100 = vmul.f32 %v1091, %v1096
        %v1101 = vmul.f32 %v1092, %v1096
        %v1102 = vmul.f32 %v1093, %v1096
        %v1103 = vld [vmem:[#allocation10] sm:$0x1]
        %v1105 = vperm.slane %v1103, 0
        %v1107 = vadd.f32 %v1098, %v1105
        %v1108 = vadd.f32 %v1099, %v1105
        %v1109 = vadd.f32 %v1100, %v1105
        %v1110 = vadd.f32 %v1101, %v1105
        %v1111 = vadd.f32 %v1102, %v1105
        %v1112 = vmul.f32 %v1107, 0.5
        %v1113 = vmul.f32 %v1108, 0.5
        %v1114 = vmul.f32 %v1109, 0.5
        %v1115 = vmul.f32 %v1110, 0.5
        %v1116 = vmul.f32 %v1111, 0.5
        %v1117 = vmul.f32 %v1107, 0.70710677
        %v1118 = vmul.f32 %v1108, 0.70710677
        %v1119 = vmul.f32 %v1109, 0.70710677
        %v1120 = vmul.f32 %v1110, 0.70710677
        %v1121 = vmul.f32 %v1111, 0.70710677
        %vm1122 = vcmp.ge.f32.partialorder %v1117, 0.0
        %vm1123 = vcmp.ge.f32.partialorder %v1118, 0.0
        %vm1124 = vcmp.ge.f32.partialorder %v1119, 0.0
        %vm1125 = vcmp.ge.f32.partialorder %v1120, 0.0
        %vm1126 = vcmp.ge.f32.partialorder %v1121, 0.0
        %v1127 = vsel %vm1122, 1.0, -1.0
        %v1128 = vsel %vm1123, 1.0, -1.0
        %v1129 = vsel %vm1124, 1.0, -1.0
        %v1130 = vsel %vm1125, 1.0, -1.0
        %v1131 = vsel %vm1126, 1.0, -1.0
        %v1132 = vand.u32 2147483647, %v1117
        %v1133 = vand.u32 2147483647, %v1118
        %v1134 = vand.u32 2147483647, %v1119
        %v1135 = vand.u32 2147483647, %v1120
        %v1136 = vand.u32 2147483647, %v1121
        %v1137 = vmul.f32 %v1132, 0.3275911
        %v1138 = vmul.f32 %v1133, 0.3275911
        %v1139 = vmul.f32 %v1134, 0.3275911
        %v1140 = vmul.f32 %v1135, 0.3275911
        %v1141 = vmul.f32 %v1136, 0.3275911
        %v1142 = vadd.f32 %v1137, 1.0
        %v1143 = vadd.f32 %v1138, 1.0
        %v1144 = vadd.f32 %v1139, 1.0
        %v1145 = vadd.f32 %v1140, 1.0
        %v1146 = vadd.f32 %v1141, 1.0
        %v1147 = vrcp.pop %v1142
        %v1148 = vmul.f32 %v1142, %v1147
        %v1149 = vsub.f32 1.0, %v1148
        %v1150 = vmul.f32 %v1147, %v1149
        %v1151 = vadd.f32 %v1147, %v1150
        %vm1152 = vweird.f32 %v1142
        %vm1153 = vweird.f32 %v1147
        %vm1154 = vmor %vm1152, %vm1153
        %v1155 = vsel %vm1154, %v1147, %v1151
        %v1156 = vand.u32 2147483647, %v1142
        %vm1157 = vcmp.eq.f32.partialorder %v1156, 8.507059e+37
        %v1158 = vand.u32 %v1142, 2147483648
        %v1159 = vor.u32 1.1754944e-38, %v1158
        %v1160 = vsel %vm1157, %v1159, %v1155
        %v1161 = vmul.f32 1.0, %v1160
        %v1162 = vrcp.pop %v1143
        %v1163 = vmul.f32 %v1143, %v1162
        %v1164 = vsub.f32 1.0, %v1163
        %v1165 = vmul.f32 %v1162, %v1164
        %v1166 = vadd.f32 %v1162, %v1165
        %vm1167 = vweird.f32 %v1143
        %vm1168 = vweird.f32 %v1162
        %vm1169 = vmor %vm1167, %vm1168
        %v1170 = vsel %vm1169, %v1162, %v1166
        %v1171 = vand.u32 2147483647, %v1143
        %vm1172 = vcmp.eq.f32.partialorder %v1171, 8.507059e+37
        %v1173 = vand.u32 %v1143, 2147483648
        %v1174 = vor.u32 1.1754944e-38, %v1173
        %v1175 = vsel %vm1172, %v1174, %v1170
        %v1176 = vmul.f32 1.0, %v1175
        %v1177 = vrcp.pop %v1144
        %v1178 = vmul.f32 %v1144, %v1177
        %v1179 = vsub.f32 1.0, %v1178
        %v1180 = vmul.f32 %v1177, %v1179
        %v1181 = vadd.f32 %v1177, %v1180
        %vm1182 = vweird.f32 %v1144
        %vm1183 = vweird.f32 %v1177
        %vm1184 = vmor %vm1182, %vm1183
        %v1185 = vsel %vm1184, %v1177, %v1181
        %v1186 = vand.u32 2147483647, %v1144
        %vm1187 = vcmp.eq.f32.partialorder %v1186, 8.507059e+37
        %v1188 = vand.u32 %v1144, 2147483648
        %v1189 = vor.u32 1.1754944e-38, %v1188
        %v1190 = vsel %vm1187, %v1189, %v1185
        %v1191 = vmul.f32 1.0, %v1190
        %v1192 = vrcp.pop %v1145
        %v1193 = vmul.f32 %v1145, %v1192
        %v1194 = vsub.f32 1.0, %v1193
        %v1195 = vmul.f32 %v1192, %v1194
        %v1196 = vadd.f32 %v1192, %v1195
        %vm1197 = vweird.f32 %v1145
        %vm1198 = vweird.f32 %v1192
        %vm1199 = vmor %vm1197, %vm1198
        %v1200 = vsel %vm1199, %v1192, %v1196
        %v1201 = vand.u32 2147483647, %v1145
        %vm1202 = vcmp.eq.f32.partialorder %v1201, 8.507059e+37
        %v1203 = vand.u32 %v1145, 2147483648
        %v1204 = vor.u32 1.1754944e-38, %v1203
        %v1205 = vsel %vm1202, %v1204, %v1200
        %v1206 = vmul.f32 1.0, %v1205
        %v1207 = vrcp.pop %v1146
        %v1208 = vmul.f32 %v1146, %v1207
        %v1209 = vsub.f32 1.0, %v1208
        %v1210 = vmul.f32 %v1207, %v1209
        %v1211 = vadd.f32 %v1207, %v1210
        %vm1212 = vweird.f32 %v1146
        %vm1213 = vweird.f32 %v1207
        %vm1214 = vmor %vm1212, %vm1213
        %v1215 = vsel %vm1214, %v1207, %v1211
        %v1216 = vand.u32 2147483647, %v1146
        %vm1217 = vcmp.eq.f32.partialorder %v1216, 8.507059e+37
        %v1218 = vand.u32 %v1146, 2147483648
        %v1219 = vor.u32 1.1754944e-38, %v1218
        %v1220 = vsel %vm1217, %v1219, %v1215
        %v1221 = vmul.f32 1.0, %v1220
        %v1222 = vmul.f32 %v1161, 1.0614054
        %v1223 = vmul.f32 %v1176, 1.0614054
        %v1224 = vmul.f32 %v1191, 1.0614054
        %v1225 = vmul.f32 %v1206, 1.0614054
        %v1226 = vmul.f32 %v1221, 1.0614054
        %v1227 = vadd.f32 %v1222, -1.4531521
        %v1228 = vadd.f32 %v1223, -1.4531521
        %v1229 = vadd.f32 %v1224, -1.4531521
        %v1230 = vadd.f32 %v1225, -1.4531521
        %v1231 = vadd.f32 %v1226, -1.4531521
        %v1232 = vmul.f32 %v1161, %v1227
        %v1233 = vmul.f32 %v1176, %v1228
        %v1234 = vmul.f32 %v1191, %v1229
        %v1235 = vmul.f32 %v1206, %v1230
        %v1236 = vmul.f32 %v1221, %v1231
        %v1237 = vadd.f32 %v1232, 1.4214138
        %v1238 = vadd.f32 %v1233, 1.4214138
        %v1239 = vadd.f32 %v1234, 1.4214138
        %v1240 = vadd.f32 %v1235, 1.4214138
        %v1241 = vadd.f32 %v1236, 1.4214138
        %v1242 = vmul.f32 %v1161, %v1237
        %v1243 = vmul.f32 %v1176, %v1238
        %v1244 = vmul.f32 %v1191, %v1239
        %v1245 = vmul.f32 %v1206, %v1240
        %v1246 = vmul.f32 %v1221, %v1241
        %v1247 = vadd.f32 %v1242, -0.28449672
        %v1248 = vadd.f32 %v1243, -0.28449672
        %v1249 = vadd.f32 %v1244, -0.28449672
        %v1250 = vadd.f32 %v1245, -0.28449672
        %v1251 = vadd.f32 %v1246, -0.28449672
        %v1252 = vmul.f32 %v1161, %v1247
        %v1253 = vmul.f32 %v1176, %v1248
        %v1254 = vmul.f32 %v1191, %v1249
        %v1255 = vmul.f32 %v1206, %v1250
        %v1256 = vmul.f32 %v1221, %v1251
        %v1257 = vadd.f32 %v1252, 0.2548296
        %v1258 = vadd.f32 %v1253, 0.2548296
        %v1259 = vadd.f32 %v1254, 0.2548296
        %v1260 = vadd.f32 %v1255, 0.2548296
        %v1261 = vadd.f32 %v1256, 0.2548296
        %v1262 = vmul.f32 %v1161, %v1257
        %v1263 = vmul.f32 %v1176, %v1258
        %v1264 = vmul.f32 %v1191, %v1259
        %v1265 = vmul.f32 %v1206, %v1260
        %v1266 = vmul.f32 %v1221, %v1261
        %v1267 = vsub.f32 0.0, %v1132
        %v1268 = vsub.f32 0.0, %v1133
        %v1269 = vsub.f32 0.0, %v1134
        %v1270 = vsub.f32 0.0, %v1135
        %v1271 = vsub.f32 0.0, %v1136
        %v1272 = vmul.f32 %v1267, %v1132
        %v1273 = vmul.f32 %v1268, %v1133
        %v1274 = vmul.f32 %v1269, %v1134
        %v1275 = vmul.f32 %v1270, %v1135
        %v1276 = vmul.f32 %v1271, %v1136
        %v1277 = vmul.f32 %v1272, 1.442695
        %v1278 = vpow.pop %v1277
        %v1279 = vmul.f32 %v1273, 1.442695
        %v1280 = vpow.pop %v1279
        %v1281 = vmul.f32 %v1274, 1.442695
        %v1282 = vpow.pop %v1281
        %v1283 = vmul.f32 %v1275, 1.442695
        %v1284 = vpow.pop %v1283
        %v1285 = vmul.f32 %v1276, 1.442695
        %v1286 = vpow.pop %v1285
        %v1287 = vmul.f32 %v1262, %v1278
        %v1288 = vmul.f32 %v1263, %v1280
        %v1289 = vmul.f32 %v1264, %v1282
        %v1290 = vmul.f32 %v1265, %v1284
        %v1291 = vmul.f32 %v1266, %v1286
        %v1292 = vsub.f32 1.0, %v1287
        %v1293 = vsub.f32 1.0, %v1288
        %v1294 = vsub.f32 1.0, %v1289
        %v1295 = vsub.f32 1.0, %v1290
        %v1296 = vsub.f32 1.0, %v1291
        %v1297 = vmul.f32 %v1127, %v1292
        %v1298 = vmul.f32 %v1128, %v1293
        %v1299 = vmul.f32 %v1129, %v1294
        %v1300 = vmul.f32 %v1130, %v1295
        %v1301 = vmul.f32 %v1131, %v1296
        %v1302 = vadd.f32 %v1297, 1.0
        %v1303 = vadd.f32 %v1298, 1.0
        %v1304 = vadd.f32 %v1299, 1.0
        %v1305 = vadd.f32 %v1300, 1.0
        %v1306 = vadd.f32 %v1301, 1.0
        %v1307 = vmul.f32 %v1112, %v1302
        %v1308 = vmul.f32 %v1113, %v1303
        %v1309 = vmul.f32 %v1114, %v1304
        %v1310 = vmul.f32 %v1115, %v1305
        %v1311 = vmul.f32 %v1116, %v1306
        %v1312 = vld [vmem:[%s7] sm:$0xff]
        %v1314 = vsel %vm1027, %v1307, 0
        %v1317 = vsel %vm1027, %v1308, 0
        %v1320 = vsel %vm1027, %v1309, 0
        %v1323 = vsel %vm1027, %v1310, 0
        %v1326 = vsel %vm1027, %v1311, 0
        %1328 = vmatpush.msra.mxu0 0.0
        %1329 = vmatpush.msra.mxu0 0.0
        %1330 = vmatpush.msra.mxu0 0.0
        %1331 = vmatpush.msra.mxu0 0.0
        %1332 = vmatpush.msra.mxu0 0.0
        %1333 = vmatpush.msra.mxu0 0.0
        %1334 = vmatpush.msra.mxu0 0.0
        %1335 = vmatpush.msra.mxu0 0.0
        %1336 = vmatpush.msra.mxu0 0.0
        %1337 = vmatpush.msra.mxu0 0.0
        %1338 = vmatpush.msra.mxu0 0.0
        %1339 = vmatpush.msra.mxu0 0.0
        %1340 = vmatpush.msra.mxu0 0.0
        %1341 = vmatpush.msra.mxu0 0.0
        %1342 = vmatpush.msra.mxu0 0.0
        %1343 = vmatpush.msra.mxu0 %v1312
        %1344 = vmatmul.f32.gmra.mxu0 %v1314
        %v1345 = vpop.f32.mrf.mxu0
        %v1346 = vadd.f32 0.0, %v1345
        %1347 = vmatmul.f32.gmra.mxu0 %v1317
        %v1348 = vpop.f32.mrf.mxu0
        %v1349 = vadd.f32 0.0, %v1348
        %1350 = vmatmul.f32.gmra.mxu0 %v1320
        %v1351 = vpop.f32.mrf.mxu0
        %v1352 = vadd.f32 0.0, %v1351
        %1353 = vmatmul.f32.gmra.mxu0 %v1323
        %v1354 = vpop.f32.mrf.mxu0
        %v1355 = vadd.f32 0.0, %v1354
        %1356 = vmatmul.f32.gmra.mxu0 %v1326
        %v1357 = vpop.f32.mrf.mxu0
        %v1358 = vadd.f32 0.0, %v1357
        %1359 = vdwg.mxu0
        %v1360 = vld [vmem:[#allocation11] sm:$0xff]
        %v1361 = vld [vmem:[#allocation11 + $0x8] sm:$0xff]
        %s1362 = scalar_lea.vmem %s7, 8
        %v1363 = vld [vmem:[%s1362] sm:$0xff]
        %1364 = vmatpush.msra.mxu0 0.0
        %1365 = vmatpush.msra.mxu0 0.0
        %1366 = vmatpush.msra.mxu0 0.0
        %1367 = vmatpush.msra.mxu0 0.0
        %1368 = vmatpush.msra.mxu0 0.0
        %1369 = vmatpush.msra.mxu0 0.0
        %1370 = vmatpush.msra.mxu0 0.0
        %1371 = vmatpush.msra.mxu0 0.0
        %1372 = vmatpush.msra.mxu0 0.0
        %1373 = vmatpush.msra.mxu0 0.0
        %1374 = vmatpush.msra.mxu0 0.0
        %1375 = vmatpush.msra.mxu0 0.0
        %1376 = vmatpush.msra.mxu0 0.0
        %1377 = vmatpush.msra.mxu0 0.0
        %1378 = vmatpush.msra.mxu0 0.0
        %1379 = vmatpush.msra.mxu0 %v1363
        %1380 = vmatmul.f32.gmra.mxu0 %v1314
        %v1381 = vpop.f32.mrf.mxu0
        %v1382 = vadd.f32 0.0, %v1381
        %1383 = vmatmul.f32.gmra.mxu0 %v1317
        %v1384 = vpop.f32.mrf.mxu0
        %v1385 = vadd.f32 0.0, %v1384
        %1386 = vmatmul.f32.gmra.mxu0 %v1320
        %v1387 = vpop.f32.mrf.mxu0
        %v1388 = vadd.f32 0.0, %v1387
        %1389 = vmatmul.f32.gmra.mxu0 %v1323
        %v1390 = vpop.f32.mrf.mxu0
        %v1391 = vadd.f32 0.0, %v1390
        %1392 = vmatmul.f32.gmra.mxu0 %v1326
        %v1393 = vpop.f32.mrf.mxu0
        %v1394 = vadd.f32 0.0, %v1393
        %1395 = vdwg.mxu0
        %s1396 = scalar_lea.vmem [#allocation11], 16
        %v1397 = vld [vmem:[%s1396] sm:$0xff]
        %v1398 = vld [vmem:[%s1396 + $0x8] sm:$0xff]
        %vm1399 = vcmask 269312
        %v1401 = vsel %vm1399, %v1397, 0
        %v1404 = vsel %vm1399, %v1398, 0
        %vm1406 = vcmask 1040384
        %v1408 = vsel %vm1406, %v1394, 0
        %1410 = vmatpush.msra.mxu0 0.0
        %1411 = vmatpush.msra.mxu0 0.0
        %1412 = vmatpush.msra.mxu0 0.0
        %1413 = vmatpush.msra.mxu0 0.0
        %1414 = vmatpush.msra.mxu0 0.0
        %1415 = vmatpush.msra.mxu0 0.0
        %1416 = vmatpush.msra.mxu0 0.0
        %1417 = vmatpush.msra.mxu0 0.0
        %1418 = vmatpush.msra.mxu0 0.0
        %1419 = vmatpush.msra.mxu0 0.0
        %1420 = vmatpush.msra.mxu0 0.0
        %1421 = vmatpush.msra.mxu0 %v1408
        %1422 = vmatpush.msra.mxu0 %v1391
        %1423 = vmatpush.msra.mxu0 %v1388
        %1424 = vmatpush.msra.mxu0 %v1385
        %1425 = vmatpush.msra.mxu0 %v1382
        %1426 = vmatmul.f32.gmra.mxu0 %v1401
        %v1427 = vpop.f32.mrf.mxu0
        %v1428 = vadd.f32 0.0, %v1427
        %1429 = vmatmul.f32.gmra.mxu0 %v1404
        %v1430 = vpop.f32.mrf.mxu0
        %v1431 = vadd.f32 0.0, %v1430
        %1432 = vdwg.mxu0
        %v1434 = vsel %vm1399, %v1360, 0
        %v1437 = vsel %vm1399, %v1361, 0
        %v1440 = vsel %vm1406, %v1358, 0
        %1442 = vmatpush.msra.mxu0 0.0
        %1443 = vmatpush.msra.mxu0 0.0
        %1444 = vmatpush.msra.mxu0 0.0
        %1445 = vmatpush.msra.mxu0 0.0
        %1446 = vmatpush.msra.mxu0 0.0
        %1447 = vmatpush.msra.mxu0 0.0
        %1448 = vmatpush.msra.mxu0 0.0
        %1449 = vmatpush.msra.mxu0 0.0
        %1450 = vmatpush.msra.mxu0 0.0
        %1451 = vmatpush.msra.mxu0 0.0
        %1452 = vmatpush.msra.mxu0 0.0
        %1453 = vmatpush.msra.mxu0 %v1440
        %1454 = vmatpush.msra.mxu0 %v1355
        %1455 = vmatpush.msra.mxu0 %v1352
        %1456 = vmatpush.msra.mxu0 %v1349
        %1457 = vmatpush.msra.mxu0 %v1346
        %1458 = vmatmul.f32.gmra.mxu0 %v1434
        %v1459 = vpop.f32.mrf.mxu0
        %v1460 = vadd.f32 %v1428, %v1459
        %1461 = vmatmul.f32.gmra.mxu0 %v1437
        %v1462 = vpop.f32.mrf.mxu0
        %v1463 = vadd.f32 %v1431, %v1462
        %1464 = vdwg.mxu0
        %s1465 = scalar_lea.vmem %s7, 16
        %v1466 = vld [vmem:[%s1465] sm:$0xff]
        %1467 = vmatpush.msra.mxu0 0.0
        %1468 = vmatpush.msra.mxu0 0.0
        %1469 = vmatpush.msra.mxu0 0.0
        %1470 = vmatpush.msra.mxu0 0.0
        %1471 = vmatpush.msra.mxu0 0.0
        %1472 = vmatpush.msra.mxu0 0.0
        %1473 = vmatpush.msra.mxu0 0.0
        %1474 = vmatpush.msra.mxu0 0.0
        %1475 = vmatpush.msra.mxu0 0.0
        %1476 = vmatpush.msra.mxu0 0.0
        %1477 = vmatpush.msra.mxu0 0.0
        %1478 = vmatpush.msra.mxu0 0.0
        %1479 = vmatpush.msra.mxu0 0.0
        %1480 = vmatpush.msra.mxu0 0.0
        %1481 = vmatpush.msra.mxu0 0.0
        %1482 = vmatpush.msra.mxu0 %v1466
        %1483 = vmatmul.f32.gmra.mxu0 %v1314
        %v1484 = vpop.f32.mrf.mxu0
        %v1485 = vadd.f32 0.0, %v1484
        %1486 = vmatmul.f32.gmra.mxu0 %v1317
        %v1487 = vpop.f32.mrf.mxu0
        %v1488 = vadd.f32 0.0, %v1487
        %1489 = vmatmul.f32.gmra.mxu0 %v1320
        %v1490 = vpop.f32.mrf.mxu0
        %v1491 = vadd.f32 0.0, %v1490
        %1492 = vmatmul.f32.gmra.mxu0 %v1323
        %v1493 = vpop.f32.mrf.mxu0
        %v1494 = vadd.f32 0.0, %v1493
        %1495 = vmatmul.f32.gmra.mxu0 %v1326
        %v1496 = vpop.f32.mrf.mxu0
        %v1497 = vadd.f32 0.0, %v1496
        %1498 = vdwg.mxu0
        %s1499 = scalar_lea.vmem [#allocation11], 32
        %v1500 = vld [vmem:[%s1499] sm:$0xff]
        %v1501 = vld [vmem:[%s1499 + $0x8] sm:$0xff]
        %v1503 = vsel %vm1399, %v1500, 0
        %v1506 = vsel %vm1399, %v1501, 0
        %v1509 = vsel %vm1406, %v1497, 0
        %1511 = vmatpush.msra.mxu0 0.0
        %1512 = vmatpush.msra.mxu0 0.0
        %1513 = vmatpush.msra.mxu0 0.0
        %1514 = vmatpush.msra.mxu0 0.0
        %1515 = vmatpush.msra.mxu0 0.0
        %1516 = vmatpush.msra.mxu0 0.0
        %1517 = vmatpush.msra.mxu0 0.0
        %1518 = vmatpush.msra.mxu0 0.0
        %1519 = vmatpush.msra.mxu0 0.0
        %1520 = vmatpush.msra.mxu0 0.0
        %1521 = vmatpush.msra.mxu0 0.0
        %1522 = vmatpush.msra.mxu0 %v1509
        %1523 = vmatpush.msra.mxu0 %v1494
        %1524 = vmatpush.msra.mxu0 %v1491
        %1525 = vmatpush.msra.mxu0 %v1488
        %1526 = vmatpush.msra.mxu0 %v1485
        %1527 = vmatmul.f32.gmra.mxu0 %v1503
        %v1528 = vpop.f32.mrf.mxu0
        %v1529 = vadd.f32 0.0, %v1528
        %1530 = vmatmul.f32.gmra.mxu0 %v1506
        %v1531 = vpop.f32.mrf.mxu0
        %v1532 = vadd.f32 0.0, %v1531
        %1533 = vdwg.mxu0
        %v1534 = vadd.f32 %v1460, %v1529
        %v1535 = vadd.f32 %v1463, %v1532
        %v1536 = vld [vmem:[#allocation13] sm:$0x1]
        %v1538 = vperm.slane %v1536, 0
        %v1540 = vadd.f32 %v1534, %v1538
        %v1541 = vadd.f32 %v1535, %v1538
        %v1542 = vmul.f32 %v1540, 0.5
        %v1543 = vmul.f32 %v1541, 0.5
        %v1544 = vmul.f32 %v1540, 0.70710677
        %v1545 = vmul.f32 %v1541, 0.70710677
        %vm1546 = vcmp.ge.f32.partialorder %v1544, 0.0
        %vm1547 = vcmp.ge.f32.partialorder %v1545, 0.0
        %v1548 = vsel %vm1546, 1.0, -1.0
        %v1549 = vsel %vm1547, 1.0, -1.0
        %v1550 = vand.u32 2147483647, %v1544
        %v1551 = vand.u32 2147483647, %v1545
        %v1552 = vmul.f32 %v1550, 0.3275911
        %v1553 = vmul.f32 %v1551, 0.3275911
        %v1554 = vadd.f32 %v1552, 1.0
        %v1555 = vadd.f32 %v1553, 1.0
        %v1556 = vrcp.pop %v1554
        %v1557 = vmul.f32 %v1554, %v1556
        %v1558 = vsub.f32 1.0, %v1557
        %v1559 = vmul.f32 %v1556, %v1558
        %v1560 = vadd.f32 %v1556, %v1559
        %vm1561 = vweird.f32 %v1554
        %vm1562 = vweird.f32 %v1556
        %vm1563 = vmor %vm1561, %vm1562
        %v1564 = vsel %vm1563, %v1556, %v1560
        %v1565 = vand.u32 2147483647, %v1554
        %vm1566 = vcmp.eq.f32.partialorder %v1565, 8.507059e+37
        %v1567 = vand.u32 %v1554, 2147483648
        %v1568 = vor.u32 1.1754944e-38, %v1567
        %v1569 = vsel %vm1566, %v1568, %v1564
        %v1570 = vmul.f32 1.0, %v1569
        %v1571 = vrcp.pop %v1555
        %v1572 = vmul.f32 %v1555, %v1571
        %v1573 = vsub.f32 1.0, %v1572
        %v1574 = vmul.f32 %v1571, %v1573
        %v1575 = vadd.f32 %v1571, %v1574
        %vm1576 = vweird.f32 %v1555
        %vm1577 = vweird.f32 %v1571
        %vm1578 = vmor %vm1576, %vm1577
        %v1579 = vsel %vm1578, %v1571, %v1575
        %v1580 = vand.u32 2147483647, %v1555
        %vm1581 = vcmp.eq.f32.partialorder %v1580, 8.507059e+37
        %v1582 = vand.u32 %v1555, 2147483648
        %v1583 = vor.u32 1.1754944e-38, %v1582
        %v1584 = vsel %vm1581, %v1583, %v1579
        %v1585 = vmul.f32 1.0, %v1584
        %v1586 = vmul.f32 %v1570, 1.0614054
        %v1587 = vmul.f32 %v1585, 1.0614054
        %v1588 = vadd.f32 %v1586, -1.4531521
        %v1589 = vadd.f32 %v1587, -1.4531521
        %v1590 = vmul.f32 %v1570, %v1588
        %v1591 = vmul.f32 %v1585, %v1589
        %v1592 = vadd.f32 %v1590, 1.4214138
        %v1593 = vadd.f32 %v1591, 1.4214138
        %v1594 = vmul.f32 %v1570, %v1592
        %v1595 = vmul.f32 %v1585, %v1593
        %v1596 = vadd.f32 %v1594, -0.28449672
        %v1597 = vadd.f32 %v1595, -0.28449672
        %v1598 = vmul.f32 %v1570, %v1596
        %v1599 = vmul.f32 %v1585, %v1597
        %v1600 = vadd.f32 %v1598, 0.2548296
        %v1601 = vadd.f32 %v1599, 0.2548296
        %v1602 = vmul.f32 %v1570, %v1600
        %v1603 = vmul.f32 %v1585, %v1601
        %v1604 = vsub.f32 0.0, %v1550
        %v1605 = vsub.f32 0.0, %v1551
        %v1606 = vmul.f32 %v1604, %v1550
        %v1607 = vmul.f32 %v1605, %v1551
        %v1608 = vmul.f32 %v1606, 1.442695
        %v1609 = vpow.pop %v1608
        %v1610 = vmul.f32 %v1607, 1.442695
        %v1611 = vpow.pop %v1610
        %v1612 = vmul.f32 %v1602, %v1609
        %v1613 = vmul.f32 %v1603, %v1611
        %v1614 = vsub.f32 1.0, %v1612
        %v1615 = vsub.f32 1.0, %v1613
        %v1616 = vmul.f32 %v1548, %v1614
        %v1617 = vmul.f32 %v1549, %v1615
        %v1618 = vadd.f32 %v1616, 1.0
        %v1619 = vadd.f32 %v1617, 1.0
        %v1620 = vmul.f32 %v1542, %v1618
        %v1621 = vmul.f32 %v1543, %v1619
        %v1622 = vld [vmem:[%s9] sm:$0x1]
        %v1623 = vld [vmem:[%s10] sm:$0x1]
        %vm1624 = vcmask 130048
        %v1625 = vsel %vm1624, %v1620, 0.0
        %1626 = vadd.xlane.f32.xlu0 %v1625
        %v1627 = vpop.xlane.xlu0 %1626
        %v1628 = vsel %vm1624, %v1621, 0.0
        %1629 = vadd.xlane.f32.xlu0 %v1628
        %v1630 = vpop.xlane.xlu0 %1629
        %v1631 = vrcp.pop 16.0
        %v1632 = vmul.f32 16.0, %v1631
        %v1633 = vsub.f32 1.0, %v1632
        %v1634 = vmul.f32 %v1631, %v1633
        %v1635 = vadd.f32 %v1631, %v1634
        %vm1636 = vweird.f32 %v1631
        %v1637 = vsel %vm1636, %v1631, %v1635
        %v1638 = vmul.f32 %v1627, %v1637
        %v1639 = vmul.f32 %v1630, %v1637
        %v1640 = vsub.f32 %v1620, %v1638
        %v1641 = vsub.f32 %v1621, %v1639
        %v1642 = vmul.f32 %v1640, %v1640
        %v1643 = vmul.f32 %v1641, %v1641
        %v1644 = vsel %vm1624, %v1642, 0.0
        %1645 = vadd.xlane.f32.xlu0 %v1644
        %v1646 = vpop.xlane.xlu0 %1645
        %v1647 = vsel %vm1624, %v1643, 0.0
        %1648 = vadd.xlane.f32.xlu0 %v1647
        %v1649 = vpop.xlane.xlu0 %1648
        %v1650 = vmul.f32 %v1646, %v1637
        %v1651 = vmul.f32 %v1649, %v1637
        %v1652 = vadd.f32 %v1650, 1e-05
        %v1653 = vadd.f32 %v1651, 1e-05
        %v1654 = vrsqrt.pop %v1652
        %v1655 = vmul.f32 %v1654, %v1652
        %v1656 = vmul.f32 %v1655, %v1654
        %v1657 = vmul.f32 0.5, %v1656
        %v1658 = vsub.f32 1.5, %v1657
        %v1659 = vmul.f32 %v1654, %v1658
        %vm1660 = vweird.f32 %v1652
        %vm1661 = vweird.f32 %v1654
        %vm1662 = vmor %vm1660, %vm1661
        %v1663 = vsel %vm1662, %v1654, %v1659
        %v1664 = vrsqrt.pop %v1653
        %v1665 = vmul.f32 %v1664, %v1653
        %v1666 = vmul.f32 %v1665, %v1664
        %v1667 = vmul.f32 0.5, %v1666
        %v1668 = vsub.f32 1.5, %v1667
        %v1669 = vmul.f32 %v1664, %v1668
        %vm1670 = vweird.f32 %v1653
        %vm1671 = vweird.f32 %v1664
        %vm1672 = vmor %vm1670, %vm1671
        %v1673 = vsel %vm1672, %v1664, %v1669
        %v1674 = vmul.f32 %v1640, %v1663
        %v1675 = vmul.f32 %v1641, %v1673
        %v1677 = vperm.slane %v1622, 0
        %v1679 = vmul.f32 %v1674, %v1677
        %v1680 = vmul.f32 %v1675, %v1677
        %v1682 = vperm.slane %v1623, 0
        %v1684 = vadd.f32 %v1679, %v1682
        %v1685 = vadd.f32 %v1680, %v1682
        %1686 = vst.msk [vmem:[%s647] sm:$0xff] %vm1624, %v1684
        %1687 = vst.msk [vmem:[%s647 + $0x8] sm:$0xff] %vm1624, %v1685
        %v1688 = vld [vmem:[#allocation14] sm:$0xff]
        %v1689 = vld [vmem:[#allocation14 + $0x8] sm:$0xff]
        %v1690 = vld [vmem:[%s12] sm:$0xff]
        %v1691 = vld [vmem:[%s12 + $0x8] sm:$0xff]
        %v1693 = vsel %vm1624, %v1684, 0
        %v1696 = vsel %vm1624, %v1685, 0
        %1698 = vmatpush.msra.mxu0 0.0
        %1699 = vmatpush.msra.mxu0 0.0
        %1700 = vmatpush.msra.mxu0 0.0
        %1701 = vmatpush.msra.mxu0 0.0
        %1702 = vmatpush.msra.mxu0 0.0
        %1703 = vmatpush.msra.mxu0 0.0
        %1704 = vmatpush.msra.mxu0 0.0
        %1705 = vmatpush.msra.mxu0 0.0
        %1706 = vmatpush.msra.mxu0 0.0
        %1707 = vmatpush.msra.mxu0 0.0
        %1708 = vmatpush.msra.mxu0 0.0
        %1709 = vmatpush.msra.mxu0 0.0
        %1710 = vmatpush.msra.mxu0 0.0
        %1711 = vmatpush.msra.mxu0 0.0
        %1712 = vmatpush.msra.mxu0 %v1689
        %1713 = vmatpush.msra.mxu0 %v1688
        %1714 = vmatmul.f32.gmra.mxu0 %v1693
        %v1715 = vpop.f32.mrf.mxu0
        %v1716 = vadd.f32 %v1690, %v1715
        %1717 = vmatmul.f32.gmra.mxu0 %v1696
        %v1718 = vpop.f32.mrf.mxu0
        %v1719 = vadd.f32 %v1691, %v1718
        %1720 = vdwg.mxu0
        %v1721 = vld [vmem:[%s13] sm:$0x1]
        %v1722 = vld [vmem:[%s14] sm:$0x1]
        %vm1723 = vcmask 261120
        %v1724 = vsel %vm1723, %v1716, 0.0
        %1725 = vadd.xlane.f32.xlu0 %v1724
        %v1726 = vpop.xlane.xlu0 %1725
        %v1727 = vsel %vm1723, %v1719, 0.0
        %1728 = vadd.xlane.f32.xlu0 %v1727
        %v1729 = vpop.xlane.xlu0 %1728
        %v1730 = vrcp.pop 32.0
        %v1731 = vmul.f32 32.0, %v1730
        %v1732 = vsub.f32 1.0, %v1731
        %v1733 = vmul.f32 %v1730, %v1732
        %v1734 = vadd.f32 %v1730, %v1733
        %vm1735 = vweird.f32 %v1730
        %v1736 = vsel %vm1735, %v1730, %v1734
        %v1737 = vmul.f32 %v1726, %v1736
        %v1738 = vmul.f32 %v1729, %v1736
        %v1739 = vsub.f32 %v1716, %v1737
        %v1740 = vsub.f32 %v1719, %v1738
        %v1741 = vmul.f32 %v1739, %v1739
        %v1742 = vmul.f32 %v1740, %v1740
        %v1743 = vsel %vm1723, %v1741, 0.0
        %1744 = vadd.xlane.f32.xlu0 %v1743
        %v1745 = vpop.xlane.xlu0 %1744
        %v1746 = vsel %vm1723, %v1742, 0.0
        %1747 = vadd.xlane.f32.xlu0 %v1746
        %v1748 = vpop.xlane.xlu0 %1747
        %v1749 = vmul.f32 %v1745, %v1736
        %v1750 = vmul.f32 %v1748, %v1736
        %v1751 = vadd.f32 %v1749, 1e-05
        %v1752 = vadd.f32 %v1750, 1e-05
        %v1753 = vrsqrt.pop %v1751
        %v1754 = vmul.f32 %v1753, %v1751
        %v1755 = vmul.f32 %v1754, %v1753
        %v1756 = vmul.f32 0.5, %v1755
        %v1757 = vsub.f32 1.5, %v1756
        %v1758 = vmul.f32 %v1753, %v1757
        %vm1759 = vweird.f32 %v1751
        %vm1760 = vweird.f32 %v1753
        %vm1761 = vmor %vm1759, %vm1760
        %v1762 = vsel %vm1761, %v1753, %v1758
        %v1763 = vrsqrt.pop %v1752
        %v1764 = vmul.f32 %v1763, %v1752
        %v1765 = vmul.f32 %v1764, %v1763
        %v1766 = vmul.f32 0.5, %v1765
        %v1767 = vsub.f32 1.5, %v1766
        %v1768 = vmul.f32 %v1763, %v1767
        %vm1769 = vweird.f32 %v1752
        %vm1770 = vweird.f32 %v1763
        %vm1771 = vmor %vm1769, %vm1770
        %v1772 = vsel %vm1771, %v1763, %v1768
        %v1773 = vmul.f32 %v1739, %v1762
        %v1774 = vmul.f32 %v1740, %v1772
        %v1776 = vperm.slane %v1721, 0
        %v1778 = vmul.f32 %v1773, %v1776
        %v1779 = vmul.f32 %v1774, %v1776
        %v1781 = vperm.slane %v1722, 0
        %v1783 = vadd.f32 %v1778, %v1781
        %v1784 = vadd.f32 %v1779, %v1781
        %1785 = vst.msk [vmem:[%s657] sm:$0xff] %vm1723, %v1783
        %1786 = vst.msk [vmem:[%s657 + $0x8] sm:$0xff] %vm1723, %v1784
        %s1787 = smul.u32 2, %s36
        %p1788 = scmp.lt.s32.totalorder %s1787, 3
        %s1789 = scalar_select %p1788, %s1787, 3
        %s1790 = smul.addr %s1789, 8
        %s1791 = scalar_lea.vmem %s15, %s1790
        %s1792 = sand.u32 %s390, 1
        %s1793 = scalar_lea.sflag [#allocation4], %s1792
        %s1794 = sand.u32 %s390, 1
        %s1795 = smul.addr %s1794, 16
        %s1796 = scalar_lea.vmem [#allocation16], %s1795
        // Predicated region
        $region113: #{wav2vec2_forward.2} parent=79 // pred_check
          %p1797 = pneg %p374
        $region114: #{wav2vec2_forward.2} parent=79 // pred_check_branch
          %1799 = sbr.rel (%p1797) target = $region116
        $region115: #{wav2vec2_forward.2} parent=79 // pred_region
          %s1800 = smul.u32 2, %s36
        $region116: #{wav2vec2_forward.2} parent=79 // pred_fallthru
          _
        // Predicated region
        $region117: #{wav2vec2_forward.2} parent=79 // pred_check
          %p1801 = pneg %p400
        $region118: #{wav2vec2_forward.2} parent=79 // pred_check_branch
          %1803 = sbr.rel (%p1801) target = $region120
        $region119: #{wav2vec2_forward.2} parent=79 // pred_region
          %s1804 = smul.u32 2, %s36
          %1806 = vsyncadd %s1793, 0
          %s1807 = smul.addr %s1804, 8
          %s1808 = scalar_lea.hbm %s16, %s1807
          %s1809 = sshll.u32 %s1796, 4
          %s1810 = int_to_ptr.vmem [resolvable:$true] %s1809
          %s1811 = sshll.u32 %s1808, 4
          %s1812 = int_to_ptr.hbm [resolvable:$true] %s1811
          %1817 = dma.vmem_to_hbm [thread:$0]  %s1810, 256, %s1812, %s1793, 128, 128, 8
        $region120: #{wav2vec2_forward.2} parent=79 // pred_fallthru
          _
      $region80: #{wav2vec2_forward.2} parent=5 // pred_fallthru
        _
      %p1818 = scmp.le.s32.totalorder 2, %s31
      // Predicated region
      $region121: #{wav2vec2_forward.2} parent=5 // pred_check
        %p1819 = pneg %p1818
      $region122: #{wav2vec2_forward.2} parent=5 // pred_check_branch
        %1821 = sbr.rel (%p1819) target = $region124
      $region123: #{wav2vec2_forward.2} parent=5 // pred_region
        %s1822 = ssub.s32 %s31, 2
        // Predicated region
        $region125: #{wav2vec2_forward.2} parent=123 // pred_check
          %p1823 = pneg %p380
        $region126: #{wav2vec2_forward.2} parent=123 // pred_check_branch
          %1825 = sbr.rel (%p1823) target = $region128
        $region127: #{wav2vec2_forward.2} parent=123 // pred_region
          %s1826 = smul.u32 2, %s37
          %p1827 = scmp.lt.s32.totalorder %s1826, 3
          %s1828 = scalar_select %p1827, %s1826, 3
          %s1829 = smul.addr %s1828, 8
          %s1830 = scalar_lea.vmem %s15, %s1829
        $region128: #{wav2vec2_forward.2} parent=123 // pred_fallthru
          _
        // Predicated region
        $region129: #{wav2vec2_forward.2} parent=123 // pred_check
          %p1831 = pneg %p406
        $region130: #{wav2vec2_forward.2} parent=123 // pred_check_branch
          %1833 = sbr.rel (%p1831) target = $region132
        $region131: #{wav2vec2_forward.2} parent=123 // pred_region
          %s1834 = sand.u32 %s391, 1
          %s1835 = scalar_lea.sflag [#allocation4], %s1834
          %s1836 = sand.u32 %s391, 1
          %s1837 = smul.addr %s1836, 16
          %s1838 = scalar_lea.vmem [#allocation16], %s1837
          %1840 = dma.done %s1835, 256
        $region132: #{wav2vec2_forward.2} parent=123 // pred_fallthru
          _
      $region124: #{wav2vec2_forward.2} parent=5 // pred_fallthru
        _
    $region6: #{wav2vec2_forward.2} parent=1 // loop_footer
      %s35 = sadd.s32 1, %s31
    $region7: #{wav2vec2_forward.2} parent=1 // loop_footer_branch
      %30 = sbr.rel target = $region3
    $region8: #{wav2vec2_forward.2} parent=1 // loop_exit
      _
    %1841 = vsyncpa [#allocation3], 1
    %s1842 = scalar_lea.sflag [#allocation3], 1
    %1843 = vsyncpa %s1842, 1
    %1844 = vsyncpa [#allocation6], 1
    %1845 = vsyncpa [#allocation9], 1
    %1846 = vsyncpa [#allocation12], 1
    %1847 = vsyncpa [#allocation15], 1
    %1848 = vsyncpa [#allocation4], 1
    %s1849 = scalar_lea.sflag [#allocation4], 1
    %1850 = vsyncpa %s1849, 1

// kernel: wav2vec2_forward.3
$region0: #{wav2vec2_forward.3}
  #allocation0 [shape = 'u32[]', space=smem, size = 0x4, offset = 0x4, fixed_abs, tag = 'smem constant byte address 0x4 - core index']
  #allocation1 [shape = 'u32[72,128]{1,0:T(1,128)}', space=vmem, size = 0x9000, scoped, tag = 'internal scratch']
  #allocation2 [shape = 'f32[32,32]{1,0:T(8,128)}', space=vmem, size = 0x4000, scoped, tag = 'scratch operand']
  %s0 = inlined_call_operand.vmem [shape: f32[32,32], index: 0, kind: input, shape index: {}]
  %s1 = inlined_call_operand.hbm [shape: f32[2,32,96], index: 1, kind: input, shape index: {}]
  %s2 = inlined_call_operand.hbm [shape: f32[2,1,96], index: 2, kind: input, shape index: {}]
  %s3 = inlined_call_operand.hbm [shape: f32[2,32,32], index: 3, kind: input, shape index: {}]
  %s4 = inlined_call_operand.hbm [shape: f32[2,1,32], index: 4, kind: input, shape index: {}]
  %s5 = inlined_call_operand.hbm [shape: f32[2,1,32], index: 5, kind: input, shape index: {}]
  %s6 = inlined_call_operand.hbm [shape: f32[2,1,32], index: 6, kind: input, shape index: {}]
  %s7 = inlined_call_operand.hbm [shape: f32[2,32,64], index: 7, kind: input, shape index: {}]
  %s8 = inlined_call_operand.hbm [shape: f32[2,1,64], index: 8, kind: input, shape index: {}]
  %s9 = inlined_call_operand.vmem [shape: f32[2,64,32], index: 9, kind: input, shape index: {}]
  %s10 = inlined_call_operand.hbm [shape: f32[2,1,32], index: 10, kind: input, shape index: {}]
  %s11 = inlined_call_operand.hbm [shape: f32[2,1,32], index: 11, kind: input, shape index: {}]
  %s12 = inlined_call_operand.vmem [shape: f32[2,1,32], index: 12, kind: input, shape index: {}]
  %s13 = inlined_call_operand.hbm [shape: f32[32,32], index: 13, kind: output, shape index: {}]
  %s14 = sld [smem:[#allocation0]]
  $region129: #{wav2vec2_forward.3} parent=0
    _
  %s16 = ssub.s32 1, %s14
  %s17 = scalar_select 0, %s16, %s14
  $region1: #{wav2vec2_forward.3} parent=0
    #allocation3 [shape = 'u8[32768]{0}', space=vmem, size = 0x8000, scoped, tag = 'input window, operand 1']
    #allocation4 [shape = 's32[2]{0}', space=sflag, size = 0x8, scoped, tag = 'scoped memory for wav2vec2_forward.3']
    #allocation5 [shape = 's32[2]{0}', space=sflag, size = 0x8, scoped, tag = 'scoped memory for wav2vec2_forward.3']
    #allocation6 [shape = 'u8[1024]{0}', space=vmem, size = 0x400, scoped, tag = 'input window, operand 2']
    #allocation7 [shape = 's32[2]{0}', space=sflag, size = 0x8, scoped, tag = 'scoped memory for wav2vec2_forward.3']
    #allocation8 [shape = 'u8[32768]{0}', space=vmem, size = 0x8000, scoped, tag = 'input window, operand 3']
    #allocation9 [shape = 'u8[1024]{0}', space=vmem, size = 0x400, scoped, tag = 'input window, operand 4']
    #allocation10 [shape = 's32[2]{0}', space=sflag, size = 0x8, scoped, tag = 'scoped memory for wav2vec2_forward.3']
    #allocation11 [shape = 'u8[1024]{0}', space=vmem, size = 0x400, scoped, tag = 'input window, operand 5']
    #allocation12 [shape = 'u8[1024]{0}', space=vmem, size = 0x400, scoped, tag = 'input window, operand 6']
    #allocation13 [shape = 's32[2]{0}', space=sflag, size = 0x8, scoped, tag = 'scoped memory for wav2vec2_forward.3']
    #allocation14 [shape = 'u8[32768]{0}', space=vmem, size = 0x8000, scoped, tag = 'input window, operand 7']
    #allocation15 [shape = 'u8[1024]{0}', space=vmem, size = 0x400, scoped, tag = 'input window, operand 8']
    #allocation16 [shape = 's32[2]{0}', space=sflag, size = 0x8, scoped, tag = 'scoped memory for wav2vec2_forward.3']
    #allocation17 [shape = 'u8[1024]{0}', space=vmem, size = 0x400, scoped, tag = 'input window, operand 10']
    #allocation18 [shape = 'u8[1024]{0}', space=vmem, size = 0x400, scoped, tag = 'input window, operand 11']
    #allocation19 [shape = 's32[2]{0}', space=sflag, size = 0x8, scoped, tag = 'scoped memory for wav2vec2_forward.3']
    #allocation20 [shape = 'u8[16384]{0}', space=vmem, size = 0x4000, scoped, tag = 'output window, operand 0, single buffered']
    %18 = vsyncpa [#allocation4], 0
    %s19 = scalar_lea.sflag [#allocation4], 1
    %20 = vsyncpa %s19, 0
    %21 = vsyncpa [#allocation7], 0
    %s22 = scalar_lea.sflag [#allocation7], 1
    %23 = vsyncpa %s22, 0
    %24 = vsyncpa [#allocation10], 0
    %s25 = scalar_lea.sflag [#allocation10], 1
    %26 = vsyncpa %s25, 0
    %27 = vsyncpa [#allocation13], 0
    %s28 = scalar_lea.sflag [#allocation13], 1
    %29 = vsyncpa %s28, 0
    %30 = vsyncpa [#allocation16], 0
    %s31 = scalar_lea.sflag [#allocation16], 1
    %32 = vsyncpa %s31, 0
    %33 = vsyncpa [#allocation19], 0
    %s34 = scalar_lea.sflag [#allocation19], 1
    %35 = vsyncpa %s34, 0
    %36 = vsyncpa [#allocation5], 0
    loop: start=0, step=1, limit=4
    $region2: #{wav2vec2_forward.3} parent=1 // loop_pre_header
      _
    $region3: #{wav2vec2_forward.3} parent=1 // loop_header
      %s38 = sphi 0, %s42
      %p39 = scmp.ge.s32.totalorder %s38, 4
      %s46 = sphi 0, %s46
      %s48 = sphi 0, %s46
      %s49 = sphi 0, %s48
      %s63 = sphi 0, %s49
      %s69 = sphi 0, %s71
      %s72 = sphi 0, %s69
      %s73 = sphi 0, %s72
      %s89 = sphi 0, %s73
      %s95 = sphi 0, %s97
      %s98 = sphi 0, %s95
      %s99 = sphi 0, %s98
      %s115 = sphi 0, %s99
      %s121 = sphi 0, %s123
      %s124 = sphi 0, %s121
      %s125 = sphi 0, %s124
      %s141 = sphi 0, %s125
      %s147 = sphi 0, %s149
      %s150 = sphi 0, %s147
      %s151 = sphi 0, %s150
      %s167 = sphi 0, %s151
      %s173 = sphi 0, %s175
      %s176 = sphi 0, %s173
      %s177 = sphi 0, %s176
      %s193 = sphi 0, %s177
      %s199 = sphi 0, %s201
      %s202 = sphi 0, %s199
      %s203 = sphi 0, %s202
      %s219 = sphi 0, %s203
      %s225 = sphi 0, %s227
      %s228 = sphi 0, %s225
      %s229 = sphi 0, %s228
      %s245 = sphi 0, %s229
      %s251 = sphi 0, %s253
      %s254 = sphi 0, %s251
      %s255 = sphi 0, %s254
      %s271 = sphi 0, %s255
      %s277 = sphi 0, %s279
      %s280 = sphi 0, %s277
      %s281 = sphi 0, %s280
      %s297 = sphi 0, %s281
      %s303 = sphi 0, %s305
      %s306 = sphi 0, %s303
      %s307 = sphi 0, %s306
      %s323 = sphi 0, %s307
      %s329 = sphi 0, %s331
      %s332 = sphi 0, %s329
      %s333 = sphi 0, %s332
      %s349 = sphi 0, %s333
      %s355 = sphi 0, %s357
      %s358 = sphi 0, %s355
      %s359 = sphi 0, %s358
      %s375 = sphi 0, %s359
      %s379 = sphi 0, %s379
      %s381 = sphi 0, %s379
      %s382 = sphi 0, %s381
      %s396 = sphi 0, %s382
    $region4: #{wav2vec2_forward.3} parent=1 // loop_header_branch
      %41 = sbr.rel (%p39) target = $region8
    $region5: #{wav2vec2_forward.3} parent=1 // loop_body
      %s43 = ssub.s32 %s38, 1
      %s44 = ssub.s32 %s38, 2
      %s45 = sadd.s32 %s38, 1
      %s47 = sadd.s32 %s46, 1
      %p50 = scmp.eq.s32.totalorder %s38, 1
      %p51 = scmp.ne.s32.totalorder %s46, %s48
      %p52 = scmp.eq.s32.totalorder %s38, 0
      %p53 = por %p51, %p52
      %p54 = scmp.ne.s32.totalorder %s46, %s48
      %p55 = scmp.eq.s32.totalorder %s43, 1
      %p56 = por %p54, %p55
      %p57 = scmp.ne.s32.totalorder %s48, %s49
      %p58 = scmp.eq.s32.totalorder %s43, 0
      %p59 = por %p57, %p58
      %p60 = scmp.ne.s32.totalorder %s48, %s49
      %p61 = scmp.eq.s32.totalorder %s44, 1
      %p62 = por %p60, %p61
      %p64 = scmp.ne.s32.totalorder %s49, %s63
      %p65 = scmp.eq.s32.totalorder %s44, 0
      %p66 = por %p64, %p65
      %s67 = ssub.s32 %s38, %s45
      %p68 = scmp.eq.s32.totalorder %s67, 0
      %s70 = sadd.s32 %s69, 1
      %s71 = scalar_select %p68, %s69, %s70
      %p74 = pneg %p68
      %p75 = scmp.eq.s32.totalorder %s38, 1
      %p76 = por %p74, %p75
      %p77 = scmp.ne.s32.totalorder %s69, %s72
      %p78 = scmp.eq.s32.totalorder %s38, 0
      %p79 = por %p77, %p78
      %p80 = scmp.ne.s32.totalorder %s69, %s72
      %p81 = scmp.eq.s32.totalorder %s43, 1
      %p82 = por %p80, %p81
      %p83 = scmp.ne.s32.totalorder %s72, %s73
      %p84 = scmp.eq.s32.totalorder %s43, 0
      %p85 = por %p83, %p84
      %p86 = scmp.ne.s32.totalorder %s72, %s73
      %p87 = scmp.eq.s32.totalorder %s44, 1
      %p88 = por %p86, %p87
      %p90 = scmp.ne.s32.totalorder %s73, %s89
      %p91 = scmp.eq.s32.totalorder %s44, 0
      %p92 = por %p90, %p91
      %s93 = ssub.s32 %s38, %s45
      %p94 = scmp.eq.s32.totalorder %s93, 0
      %s96 = sadd.s32 %s95, 1
      %s97 = scalar_select %p94, %s95, %s96
      %p100 = pneg %p94
      %p101 = scmp.eq.s32.totalorder %s38, 1
      %p102 = por %p100, %p101
      %p103 = scmp.ne.s32.totalorder %s95, %s98
      %p104 = scmp.eq.s32.totalorder %s38, 0
      %p105 = por %p103, %p104
      %p106 = scmp.ne.s32.totalorder %s95, %s98
      %p107 = scmp.eq.s32.totalorder %s43, 1
      %p108 = por %p106, %p107
      %p109 = scmp.ne.s32.totalorder %s98, %s99
      %p110 = scmp.eq.s32.totalorder %s43, 0
      %p111 = por %p109, %p110
      %p112 = scmp.ne.s32.totalorder %s98, %s99
      %p113 = scmp.eq.s32.totalorder %s44, 1
      %p114 = por %p112, %p113
      %p116 = scmp.ne.s32.totalorder %s99, %s115
      %p117 = scmp.eq.s32.totalorder %s44, 0
      %p118 = por %p116, %p117
      %s119 = ssub.s32 %s38, %s45
      %p120 = scmp.eq.s32.totalorder %s119, 0
      %s122 = sadd.s32 %s121, 1
      %s123 = scalar_select %p120, %s121, %s122
      %p126 = pneg %p120
      %p127 = scmp.eq.s32.totalorder %s38, 1
      %p128 = por %p126, %p127
      %p129 = scmp.ne.s32.totalorder %s121, %s124
      %p130 = scmp.eq.s32.totalorder %s38, 0
      %p131 = por %p129, %p130
      %p132 = scmp.ne.s32.totalorder %s121, %s124
      %p133 = scmp.eq.s32.totalorder %s43, 1
      %p134 = por %p132, %p133
      %p135 = scmp.ne.s32.totalorder %s124, %s125
      %p136 = scmp.eq.s32.totalorder %s43, 0
      %p137 = por %p135, %p136
      %p138 = scmp.ne.s32.totalorder %s124, %s125
      %p139 = scmp.eq.s32.totalorder %s44, 1
      %p140 = por %p138, %p139
      %p142 = scmp.ne.s32.totalorder %s125, %s141
      %p143 = scmp.eq.s32.totalorder %s44, 0
      %p144 = por %p142, %p143
      %s145 = ssub.s32 %s38, %s45
      %p146 = scmp.eq.s32.totalorder %s145, 0
      %s148 = sadd.s32 %s147, 1
      %s149 = scalar_select %p146, %s147, %s148
      %p152 = pneg %p146
      %p153 = scmp.eq.s32.totalorder %s38, 1
      %p154 = por %p152, %p153
      %p155 = scmp.ne.s32.totalorder %s147, %s150
      %p156 = scmp.eq.s32.totalorder %s38, 0
      %p157 = por %p155, %p156
      %p158 = scmp.ne.s32.totalorder %s147, %s150
      %p159 = scmp.eq.s32.totalorder %s43, 1
      %p160 = por %p158, %p159
      %p161 = scmp.ne.s32.totalorder %s150, %s151
      %p162 = scmp.eq.s32.totalorder %s43, 0
      %p163 = por %p161, %p162
      %p164 = scmp.ne.s32.totalorder %s150, %s151
      %p165 = scmp.eq.s32.totalorder %s44, 1
      %p166 = por %p164, %p165
      %p168 = scmp.ne.s32.totalorder %s151, %s167
      %p169 = scmp.eq.s32.totalorder %s44, 0
      %p170 = por %p168, %p169
      %s171 = ssub.s32 %s38, %s45
      %p172 = scmp.eq.s32.totalorder %s171, 0
      %s174 = sadd.s32 %s173, 1
      %s175 = scalar_select %p172, %s173, %s174
      %p178 = pneg %p172
      %p179 = scmp.eq.s32.totalorder %s38, 1
      %p180 = por %p178, %p179
      %p181 = scmp.ne.s32.totalorder %s173, %s176
      %p182 = scmp.eq.s32.totalorder %s38, 0
      %p183 = por %p181, %p182
      %p184 = scmp.ne.s32.totalorder %s173, %s176
      %p185 = scmp.eq.s32.totalorder %s43, 1
      %p186 = por %p184, %p185
      %p187 = scmp.ne.s32.totalorder %s176, %s177
      %p188 = scmp.eq.s32.totalorder %s43, 0
      %p189 = por %p187, %p188
      %p190 = scmp.ne.s32.totalorder %s176, %s177
      %p191 = scmp.eq.s32.totalorder %s44, 1
      %p192 = por %p190, %p191
      %p194 = scmp.ne.s32.totalorder %s177, %s193
      %p195 = scmp.eq.s32.totalorder %s44, 0
      %p196 = por %p194, %p195
      %s197 = ssub.s32 %s38, %s45
      %p198 = scmp.eq.s32.totalorder %s197, 0
      %s200 = sadd.s32 %s199, 1
      %s201 = scalar_select %p198, %s199, %s200
      %p204 = pneg %p198
      %p205 = scmp.eq.s32.totalorder %s38, 1
      %p206 = por %p204, %p205
      %p207 = scmp.ne.s32.totalorder %s199, %s202
      %p208 = scmp.eq.s32.totalorder %s38, 0
      %p209 = por %p207, %p208
      %p210 = scmp.ne.s32.totalorder %s199, %s202
      %p211 = scmp.eq.s32.totalorder %s43, 1
      %p212 = por %p210, %p211
      %p213 = scmp.ne.s32.totalorder %s202, %s203
      %p214 = scmp.eq.s32.totalorder %s43, 0
      %p215 = por %p213, %p214
      %p216 = scmp.ne.s32.totalorder %s202, %s203
      %p217 = scmp.eq.s32.totalorder %s44, 1
      %p218 = por %p216, %p217
      %p220 = scmp.ne.s32.totalorder %s203, %s219
      %p221 = scmp.eq.s32.totalorder %s44, 0
      %p222 = por %p220, %p221
      %s223 = ssub.s32 %s38, %s45
      %p224 = scmp.eq.s32.totalorder %s223, 0
      %s226 = sadd.s32 %s225, 1
      %s227 = scalar_select %p224, %s225, %s226
      %p230 = pneg %p224
      %p231 = scmp.eq.s32.totalorder %s38, 1
      %p232 = por %p230, %p231
      %p233 = scmp.ne.s32.totalorder %s225, %s228
      %p234 = scmp.eq.s32.totalorder %s38, 0
      %p235 = por %p233, %p234
      %p236 = scmp.ne.s32.totalorder %s225, %s228
      %p237 = scmp.eq.s32.totalorder %s43, 1
      %p238 = por %p236, %p237
      %p239 = scmp.ne.s32.totalorder %s228, %s229
      %p240 = scmp.eq.s32.totalorder %s43, 0
      %p241 = por %p239, %p240
      %p242 = scmp.ne.s32.totalorder %s228, %s229
      %p243 = scmp.eq.s32.totalorder %s44, 1
      %p244 = por %p242, %p243
      %p246 = scmp.ne.s32.totalorder %s229, %s245
      %p247 = scmp.eq.s32.totalorder %s44, 0
      %p248 = por %p246, %p247
      %s249 = ssub.s32 %s38, %s45
      %p250 = scmp.eq.s32.totalorder %s249, 0
      %s252 = sadd.s32 %s251, 1
      %s253 = scalar_select %p250, %s251, %s252
      %p256 = pneg %p250
      %p257 = scmp.eq.s32.totalorder %s38, 1
      %p258 = por %p256, %p257
      %p259 = scmp.ne.s32.totalorder %s251, %s254
      %p260 = scmp.eq.s32.totalorder %s38, 0
      %p261 = por %p259, %p260
      %p262 = scmp.ne.s32.totalorder %s251, %s254
      %p263 = scmp.eq.s32.totalorder %s43, 1
      %p264 = por %p262, %p263
      %p265 = scmp.ne.s32.totalorder %s254, %s255
      %p266 = scmp.eq.s32.totalorder %s43, 0
      %p267 = por %p265, %p266
      %p268 = scmp.ne.s32.totalorder %s254, %s255
      %p269 = scmp.eq.s32.totalorder %s44, 1
      %p270 = por %p268, %p269
      %p272 = scmp.ne.s32.totalorder %s255, %s271
      %p273 = scmp.eq.s32.totalorder %s44, 0
      %p274 = por %p272, %p273
      %s275 = ssub.s32 %s38, %s45
      %p276 = scmp.eq.s32.totalorder %s275, 0
      %s278 = sadd.s32 %s277, 1
      %s279 = scalar_select %p276, %s277, %s278
      %p282 = pneg %p276
      %p283 = scmp.eq.s32.totalorder %s38, 1
      %p284 = por %p282, %p283
      %p285 = scmp.ne.s32.totalorder %s277, %s280
      %p286 = scmp.eq.s32.totalorder %s38, 0
      %p287 = por %p285, %p286
      %p288 = scmp.ne.s32.totalorder %s277, %s280
      %p289 = scmp.eq.s32.totalorder %s43, 1
      %p290 = por %p288, %p289
      %p291 = scmp.ne.s32.totalorder %s280, %s281
      %p292 = scmp.eq.s32.totalorder %s43, 0
      %p293 = por %p291, %p292
      %p294 = scmp.ne.s32.totalorder %s280, %s281
      %p295 = scmp.eq.s32.totalorder %s44, 1
      %p296 = por %p294, %p295
      %p298 = scmp.ne.s32.totalorder %s281, %s297
      %p299 = scmp.eq.s32.totalorder %s44, 0
      %p300 = por %p298, %p299
      %s301 = ssub.s32 %s38, %s45
      %p302 = scmp.eq.s32.totalorder %s301, 0
      %s304 = sadd.s32 %s303, 1
      %s305 = scalar_select %p302, %s303, %s304
      %p308 = pneg %p302
      %p309 = scmp.eq.s32.totalorder %s38, 1
      %p310 = por %p308, %p309
      %p311 = scmp.ne.s32.totalorder %s303, %s306
      %p312 = scmp.eq.s32.totalorder %s38, 0
      %p313 = por %p311, %p312
      %p314 = scmp.ne.s32.totalorder %s303, %s306
      %p315 = scmp.eq.s32.totalorder %s43, 1
      %p316 = por %p314, %p315
      %p317 = scmp.ne.s32.totalorder %s306, %s307
      %p318 = scmp.eq.s32.totalorder %s43, 0
      %p319 = por %p317, %p318
      %p320 = scmp.ne.s32.totalorder %s306, %s307
      %p321 = scmp.eq.s32.totalorder %s44, 1
      %p322 = por %p320, %p321
      %p324 = scmp.ne.s32.totalorder %s307, %s323
      %p325 = scmp.eq.s32.totalorder %s44, 0
      %p326 = por %p324, %p325
      %s327 = ssub.s32 %s38, %s45
      %p328 = scmp.eq.s32.totalorder %s327, 0
      %s330 = sadd.s32 %s329, 1
      %s331 = scalar_select %p328, %s329, %s330
      %p334 = pneg %p328
      %p335 = scmp.eq.s32.totalorder %s38, 1
      %p336 = por %p334, %p335
      %p337 = scmp.ne.s32.totalorder %s329, %s332
      %p338 = scmp.eq.s32.totalorder %s38, 0
      %p339 = por %p337, %p338
      %p340 = scmp.ne.s32.totalorder %s329, %s332
      %p341 = scmp.eq.s32.totalorder %s43, 1
      %p342 = por %p340, %p341
      %p343 = scmp.ne.s32.totalorder %s332, %s333
      %p344 = scmp.eq.s32.totalorder %s43, 0
      %p345 = por %p343, %p344
      %p346 = scmp.ne.s32.totalorder %s332, %s333
      %p347 = scmp.eq.s32.totalorder %s44, 1
      %p348 = por %p346, %p347
      %p350 = scmp.ne.s32.totalorder %s333, %s349
      %p351 = scmp.eq.s32.totalorder %s44, 0
      %p352 = por %p350, %p351
      %s353 = ssub.s32 %s38, %s45
      %p354 = scmp.eq.s32.totalorder %s353, 0
      %s356 = sadd.s32 %s355, 1
      %s357 = scalar_select %p354, %s355, %s356
      %p360 = pneg %p354
      %p361 = scmp.eq.s32.totalorder %s38, 1
      %p362 = por %p360, %p361
      %p363 = scmp.ne.s32.totalorder %s355, %s358
      %p364 = scmp.eq.s32.totalorder %s38, 0
      %p365 = por %p363, %p364
      %p366 = scmp.ne.s32.totalorder %s355, %s358
      %p367 = scmp.eq.s32.totalorder %s43, 1
      %p368 = por %p366, %p367
      %p369 = scmp.ne.s32.totalorder %s358, %s359
      %p370 = scmp.eq.s32.totalorder %s43, 0
      %p371 = por %p369, %p370
      %p372 = scmp.ne.s32.totalorder %s358, %s359
      %p373 = scmp.eq.s32.totalorder %s44, 1
      %p374 = por %p372, %p373
      %p376 = scmp.ne.s32.totalorder %s359, %s375
      %p377 = scmp.eq.s32.totalorder %s44, 0
      %p378 = por %p376, %p377
      %s380 = sadd.s32 %s379, 1
      %p383 = scmp.eq.s32.totalorder %s38, 1
      %p384 = scmp.ne.s32.totalorder %s379, %s381
      %p385 = scmp.eq.s32.totalorder %s38, 0
      %p386 = por %p384, %p385
      %p387 = scmp.ne.s32.totalorder %s379, %s381
      %p388 = scmp.eq.s32.totalorder %s43, 1
      %p389 = por %p387, %p388
      %p390 = scmp.ne.s32.totalorder %s381, %s382
      %p391 = scmp.eq.s32.totalorder %s43, 0
      %p392 = por %p390, %p391
      %p393 = scmp.ne.s32.totalorder %s381, %s382
      %p394 = scmp.eq.s32.totalorder %s44, 1
      %p395 = por %p393, %p394
      %p397 = scmp.ne.s32.totalorder %s382, %s396
      %p398 = scmp.eq.s32.totalorder %s44, 0
      %p399 = por %p397, %p398
      %p400 = scmp.le.s32.totalorder 1, %s38
      %p401 = scmp.lt.s32.totalorder %s38, 3
      %p402 = pnand %p400, %p401
      %p403 = pneg %p402
      // Predicated region
      $region9: #{wav2vec2_forward.3} parent=5 // pred_check
        _
      $region10: #{wav2vec2_forward.3} parent=5 // pred_check_branch
        %405 = sbr.rel (%p402) target = $region12
      $region11: #{wav2vec2_forward.3} parent=5 // pred_region
        %s406 = ssub.s32 %s38, 1
        // Predicated region
        $region13: #{wav2vec2_forward.3} parent=11 // pred_check
          %p407 = pneg %p59
        $region14: #{wav2vec2_forward.3} parent=11 // pred_check_branch
          %409 = sbr.rel (%p407) target = $region16
        $region15: #{wav2vec2_forward.3} parent=11 // pred_region
          _
        $region16: #{wav2vec2_forward.3} parent=11 // pred_fallthru
          _
      $region12: #{wav2vec2_forward.3} parent=5 // pred_fallthru
        _
      %p410 = scmp.lt.s32.totalorder %s38, 2
      // Predicated region
      $region17: #{wav2vec2_forward.3} parent=5 // pred_check
        %p411 = pneg %p410
      $region18: #{wav2vec2_forward.3} parent=5 // pred_check_branch
        %413 = sbr.rel (%p411) target = $region20
      $region19: #{wav2vec2_forward.3} parent=5 // pred_region
        // Predicated region
        $region21: #{wav2vec2_forward.3} parent=19 // pred_check
          %p414 = pneg %p79
        $region22: #{wav2vec2_forward.3} parent=19 // pred_check_branch
          %416 = sbr.rel (%p414) target = $region24
        $region23: #{wav2vec2_forward.3} parent=19 // pred_region
          %s417 = sand.u32 %s69, 1
          %s418 = scalar_lea.sflag [#allocation4], %s417
          %s419 = sand.u32 %s69, 1
          %s420 = smul.addr %s419, 32
          %s421 = scalar_lea.vmem [#allocation3], %s420
          %423 = vsyncadd %s418, 0
          %s424 = smul.addr %s38, 4
          %s425 = smul.addr %s424, 8
          %s426 = scalar_lea.hbm %s1, %s425
          %s427 = sshll.u32 %s426, 4
          %s428 = int_to_ptr.hbm [resolvable:$true] %s427
          %s429 = sshll.u32 %s421, 4
          %s430 = int_to_ptr.vmem [resolvable:$true] %s429
          %435 = dma.hbm_to_vmem [thread:$0]  %s428, 512, %s430, %s418, 128, 128, 8
        $region24: #{wav2vec2_forward.3} parent=19 // pred_fallthru
          _
        // Predicated region
        $region25: #{wav2vec2_forward.3} parent=19 // pred_check
          %p436 = pneg %p105
        $region26: #{wav2vec2_forward.3} parent=19 // pred_check_branch
          %438 = sbr.rel (%p436) target = $region28
        $region27: #{wav2vec2_forward.3} parent=19 // pred_region
          %s439 = sand.u32 %s38, 1
          %s440 = scalar_lea.sflag [#allocation7], %s439
          %s441 = sand.u32 %s95, 1
          %s442 = scalar_lea.vmem [#allocation6], %s441
          %444 = vsyncadd %s440, 0
          %s445 = scalar_lea.hbm %s2, %s38
          %s447 = sshll.u32 %s445, 4
          %s448 = int_to_ptr.hbm [resolvable:$true] %s447
          %s449 = sshll.u32 %s442, 4
          %s450 = int_to_ptr.vmem [resolvable:$true] %s449
          %452 = dma.hbm_to_vmem [thread:$0]  %s448, 16, %s450, %s440
        $region28: #{wav2vec2_forward.3} parent=19 // pred_fallthru
          _
        // Predicated region
        $region29: #{wav2vec2_forward.3} parent=19 // pred_check
          %p453 = pneg %p131
        $region30: #{wav2vec2_forward.3} parent=19 // pred_check_branch
          %455 = sbr.rel (%p453) target = $region32
        $region31: #{wav2vec2_forward.3} parent=19 // pred_region
          %s456 = sand.u32 %s38, 1
          %s457 = scalar_lea.sflag [#allocation7], %s456
          %s458 = sand.u32 %s121, 1
          %s459 = smul.addr %s458, 32
          %s460 = scalar_lea.vmem [#allocation8], %s459
          %462 = vsyncadd %s457, 0
          %s463 = smul.addr %s38, 4
          %s464 = smul.addr %s463, 8
          %s465 = scalar_lea.hbm %s3, %s464
          %s466 = sshll.u32 %s465, 4
          %s467 = int_to_ptr.hbm [resolvable:$true] %s466
          %s468 = sshll.u32 %s460, 4
          %s469 = int_to_ptr.vmem [resolvable:$true] %s468
          %474 = dma.hbm_to_vmem [thread:$0]  %s467, 512, %s469, %s457, 128, 128, 8
        $region32: #{wav2vec2_forward.3} parent=19 // pred_fallthru
          _
        // Predicated region
        $region33: #{wav2vec2_forward.3} parent=19 // pred_check
          %p475 = pneg %p157
        $region34: #{wav2vec2_forward.3} parent=19 // pred_check_branch
          %477 = sbr.rel (%p475) target = $region36
        $region35: #{wav2vec2_forward.3} parent=19 // pred_region
          %s478 = sand.u32 %s38, 1
          %s479 = scalar_lea.sflag [#allocation10], %s478
          %s480 = sand.u32 %s147, 1
          %s481 = scalar_lea.vmem [#allocation9], %s480
          %483 = vsyncadd %s479, 0
          %s484 = scalar_lea.hbm %s4, %s38
          %s486 = sshll.u32 %s484, 4
          %s487 = int_to_ptr.hbm [resolvable:$true] %s486
          %s488 = sshll.u32 %s481, 4
          %s489 = int_to_ptr.vmem [resolvable:$true] %s488
          %491 = dma.hbm_to_vmem [thread:$0]  %s487, 16, %s489, %s479
        $region36: #{wav2vec2_forward.3} parent=19 // pred_fallthru
          _
        // Predicated region
        $region37: #{wav2vec2_forward.3} parent=19 // pred_check
          %p492 = pneg %p183
        $region38: #{wav2vec2_forward.3} parent=19 // pred_check_branch
          %494 = sbr.rel (%p492) target = $region40
        $region39: #{wav2vec2_forward.3} parent=19 // pred_region
          %s495 = sand.u32 %s38, 1
          %s496 = scalar_lea.sflag [#allocation10], %s495
          %s497 = sand.u32 %s173, 1
          %s498 = scalar_lea.vmem [#allocation11], %s497
          %500 = vsyncadd %s496, 0
          %s501 = scalar_lea.hbm %s5, %s38
          %s503 = sshll.u32 %s501, 4
          %s504 = int_to_ptr.hbm [resolvable:$true] %s503
          %s505 = sshll.u32 %s498, 4
          %s506 = int_to_ptr.vmem [resolvable:$true] %s505
          %508 = dma.hbm_to_vmem [thread:$0]  %s504, 16, %s506, %s496
        $region40: #{wav2vec2_forward.3} parent=19 // pred_fallthru
          _
        // Predicated region
        $region41: #{wav2vec2_forward.3} parent=19 // pred_check
          %p509 = pneg %p209
        $region42: #{wav2vec2_forward.3} parent=19 // pred_check_branch
          %511 = sbr.rel (%p509) target = $region44
        $region43: #{wav2vec2_forward.3} parent=19 // pred_region
          %s512 = sand.u32 %s38, 1
          %s513 = scalar_lea.sflag [#allocation13], %s512
          %s514 = sand.u32 %s199, 1
          %s515 = scalar_lea.vmem [#allocation12], %s514
          %517 = vsyncadd %s513, 0
          %s518 = scalar_lea.hbm %s6, %s38
          %s520 = sshll.u32 %s518, 4
          %s521 = int_to_ptr.hbm [resolvable:$true] %s520
          %s522 = sshll.u32 %s515, 4
          %s523 = int_to_ptr.vmem [resolvable:$true] %s522
          %525 = dma.hbm_to_vmem [thread:$0]  %s521, 16, %s523, %s513
        $region44: #{wav2vec2_forward.3} parent=19 // pred_fallthru
          _
        // Predicated region
        $region45: #{wav2vec2_forward.3} parent=19 // pred_check
          %p526 = pneg %p235
        $region46: #{wav2vec2_forward.3} parent=19 // pred_check_branch
          %528 = sbr.rel (%p526) target = $region48
        $region47: #{wav2vec2_forward.3} parent=19 // pred_region
          %s529 = sand.u32 %s38, 1
          %s530 = scalar_lea.sflag [#allocation13], %s529
          %s531 = sand.u32 %s225, 1
          %s532 = smul.addr %s531, 32
          %s533 = scalar_lea.vmem [#allocation14], %s532
          %535 = vsyncadd %s530, 0
          %s536 = smul.addr %s38, 4
          %s537 = smul.addr %s536, 8
          %s538 = scalar_lea.hbm %s7, %s537
          %s539 = sshll.u32 %s538, 4
          %s540 = int_to_ptr.hbm [resolvable:$true] %s539
          %s541 = sshll.u32 %s533, 4
          %s542 = int_to_ptr.vmem [resolvable:$true] %s541
          %547 = dma.hbm_to_vmem [thread:$0]  %s540, 512, %s542, %s530, 128, 128, 8
        $region48: #{wav2vec2_forward.3} parent=19 // pred_fallthru
          _
        // Predicated region
        $region49: #{wav2vec2_forward.3} parent=19 // pred_check
          %p548 = pneg %p261
        $region50: #{wav2vec2_forward.3} parent=19 // pred_check_branch
          %550 = sbr.rel (%p548) target = $region52
        $region51: #{wav2vec2_forward.3} parent=19 // pred_region
          %s551 = sand.u32 %s38, 1
          %s552 = scalar_lea.sflag [#allocation16], %s551
          %s553 = sand.u32 %s251, 1
          %s554 = scalar_lea.vmem [#allocation15], %s553
          %556 = vsyncadd %s552, 0
          %s557 = scalar_lea.hbm %s8, %s38
          %s559 = sshll.u32 %s557, 4
          %s560 = int_to_ptr.hbm [resolvable:$true] %s559
          %s561 = sshll.u32 %s554, 4
          %s562 = int_to_ptr.vmem [resolvable:$true] %s561
          %564 = dma.hbm_to_vmem [thread:$0]  %s560, 16, %s562, %s552
        $region52: #{wav2vec2_forward.3} parent=19 // pred_fallthru
          _
        // Predicated region
        $region53: #{wav2vec2_forward.3} parent=19 // pred_check
          %p565 = pneg %p287
        $region54: #{wav2vec2_forward.3} parent=19 // pred_check_branch
          %567 = sbr.rel (%p565) target = $region56
        $region55: #{wav2vec2_forward.3} parent=19 // pred_region
          %p568 = scmp.lt.s32.totalorder %s38, 1
          %s569 = scalar_select %p568, %s38, 1
          %s570 = smul.addr %s569, 8
          %s571 = smul.addr %s570, 8
          %s572 = scalar_lea.vmem %s9, %s571
        $region56: #{wav2vec2_forward.3} parent=19 // pred_fallthru
          _
        // Predicated region
        $region57: #{wav2vec2_forward.3} parent=19 // pred_check
          %p573 = pneg %p313
        $region58: #{wav2vec2_forward.3} parent=19 // pred_check_branch
          %575 = sbr.rel (%p573) target = $region60
        $region59: #{wav2vec2_forward.3} parent=19 // pred_region
          %s576 = sand.u32 %s38, 1
          %s577 = scalar_lea.sflag [#allocation16], %s576
          %s578 = sand.u32 %s303, 1
          %s579 = scalar_lea.vmem [#allocation17], %s578
          %581 = vsyncadd %s577, 0
          %s582 = scalar_lea.hbm %s10, %s38
          %s584 = sshll.u32 %s582, 4
          %s585 = int_to_ptr.hbm [resolvable:$true] %s584
          %s586 = sshll.u32 %s579, 4
          %s587 = int_to_ptr.vmem [resolvable:$true] %s586
          %589 = dma.hbm_to_vmem [thread:$0]  %s585, 16, %s587, %s577
        $region60: #{wav2vec2_forward.3} parent=19 // pred_fallthru
          _
        // Predicated region
        $region61: #{wav2vec2_forward.3} parent=19 // pred_check
          %p590 = pneg %p339
        $region62: #{wav2vec2_forward.3} parent=19 // pred_check_branch
          %592 = sbr.rel (%p590) target = $region64
        $region63: #{wav2vec2_forward.3} parent=19 // pred_region
          %s593 = sand.u32 %s329, 1
          %s594 = scalar_lea.sflag [#allocation19], %s593
          %s595 = sand.u32 %s329, 1
          %s596 = scalar_lea.vmem [#allocation18], %s595
          %598 = vsyncadd %s594, 0
          %s599 = scalar_lea.hbm %s11, %s38
          %s601 = sshll.u32 %s599, 4
          %s602 = int_to_ptr.hbm [resolvable:$true] %s601
          %s603 = sshll.u32 %s596, 4
          %s604 = int_to_ptr.vmem [resolvable:$true] %s603
          %606 = dma.hbm_to_vmem [thread:$0]  %s602, 16, %s604, %s594
        $region64: #{wav2vec2_forward.3} parent=19 // pred_fallthru
          _
        // Predicated region
        $region65: #{wav2vec2_forward.3} parent=19 // pred_check
          %p607 = pneg %p365
        $region66: #{wav2vec2_forward.3} parent=19 // pred_check_branch
          %609 = sbr.rel (%p607) target = $region68
        $region67: #{wav2vec2_forward.3} parent=19 // pred_region
          %p610 = scmp.lt.s32.totalorder %s38, 1
          %s611 = scalar_select %p610, %s38, 1
          %s612 = scalar_lea.vmem %s12, %s611
        $region68: #{wav2vec2_forward.3} parent=19 // pred_fallthru
          _
      $region20: #{wav2vec2_forward.3} parent=5 // pred_fallthru
        _
      %p613 = scmp.le.s32.totalorder 1, %s38
      %p614 = scmp.lt.s32.totalorder %s38, 3
      %p615 = pnand %p613, %p614
      %p616 = pneg %p615
      // Predicated region
      $region69: #{wav2vec2_forward.3} parent=5 // pred_check
        _
      $region70: #{wav2vec2_forward.3} parent=5 // pred_check_branch
        %618 = sbr.rel (%p615) target = $region72
      $region71: #{wav2vec2_forward.3} parent=5 // pred_region
        %s619 = ssub.s32 %s38, 1
        %s620 = sand.u32 %s72, 1
        %s621 = scalar_lea.sflag [#allocation4], %s620
        %s622 = sand.u32 %s72, 1
        %s623 = smul.addr %s622, 32
        %s624 = scalar_lea.vmem [#allocation3], %s623
        // Predicated region
        $region73: #{wav2vec2_forward.3} parent=71 // pred_check
          %p625 = pneg %p85
        $region74: #{wav2vec2_forward.3} parent=71 // pred_check_branch
          %627 = sbr.rel (%p625) target = $region76
        $region75: #{wav2vec2_forward.3} parent=71 // pred_region
          %629 = dma.done %s621, 512
        $region76: #{wav2vec2_forward.3} parent=71 // pred_fallthru
          _
        %s630 = sand.u32 %s43, 1
        %s631 = scalar_lea.sflag [#allocation7], %s630
        %s632 = sand.u32 %s98, 1
        %s633 = scalar_lea.vmem [#allocation6], %s632
        // Predicated region
        $region77: #{wav2vec2_forward.3} parent=71 // pred_check
          %p634 = pneg %p111
        $region78: #{wav2vec2_forward.3} parent=71 // pred_check_branch
          %636 = sbr.rel (%p634) target = $region80
        $region79: #{wav2vec2_forward.3} parent=71 // pred_region
          %638 = dma.done %s631, 16
        $region80: #{wav2vec2_forward.3} parent=71 // pred_fallthru
          _
        %s639 = sand.u32 %s43, 1
        %s640 = scalar_lea.sflag [#allocation7], %s639
        %s641 = sand.u32 %s124, 1
        %s642 = smul.addr %s641, 32
        %s643 = scalar_lea.vmem [#allocation8], %s642
        // Predicated region
        $region81: #{wav2vec2_forward.3} parent=71 // pred_check
          %p644 = pneg %p137
        $region82: #{wav2vec2_forward.3} parent=71 // pred_check_branch
          %646 = sbr.rel (%p644) target = $region84
        $region83: #{wav2vec2_forward.3} parent=71 // pred_region
          %648 = dma.done %s640, 512
        $region84: #{wav2vec2_forward.3} parent=71 // pred_fallthru
          _
        %s649 = sand.u32 %s43, 1
        %s650 = scalar_lea.sflag [#allocation10], %s649
        %s651 = sand.u32 %s150, 1
        %s652 = scalar_lea.vmem [#allocation9], %s651
        // Predicated region
        $region85: #{wav2vec2_forward.3} parent=71 // pred_check
          %p653 = pneg %p163
        $region86: #{wav2vec2_forward.3} parent=71 // pred_check_branch
          %655 = sbr.rel (%p653) target = $region88
        $region87: #{wav2vec2_forward.3} parent=71 // pred_region
          %657 = dma.done %s650, 16
        $region88: #{wav2vec2_forward.3} parent=71 // pred_fallthru
          _
        %s658 = sand.u32 %s43, 1
        %s659 = scalar_lea.sflag [#allocation10], %s658
        %s660 = sand.u32 %s176, 1
        %s661 = scalar_lea.vmem [#allocation11], %s660
        // Predicated region
        $region89: #{wav2vec2_forward.3} parent=71 // pred_check
          %p662 = pneg %p189
        $region90: #{wav2vec2_forward.3} parent=71 // pred_check_branch
          %664 = sbr.rel (%p662) target = $region92
        $region91: #{wav2vec2_forward.3} parent=71 // pred_region
          %666 = dma.done %s659, 16
        $region92: #{wav2vec2_forward.3} parent=71 // pred_fallthru
          _
        %s667 = sand.u32 %s43, 1
        %s668 = scalar_lea.sflag [#allocation13], %s667
        %s669 = sand.u32 %s202, 1
        %s670 = scalar_lea.vmem [#allocation12], %s669
        // Predicated region
        $region93: #{wav2vec2_forward.3} parent=71 // pred_check
          %p671 = pneg %p215
        $region94: #{wav2vec2_forward.3} parent=71 // pred_check_branch
          %673 = sbr.rel (%p671) target = $region96
        $region95: #{wav2vec2_forward.3} parent=71 // pred_region
          %675 = dma.done %s668, 16
        $region96: #{wav2vec2_forward.3} parent=71 // pred_fallthru
          _
        %s676 = sand.u32 %s43, 1
        %s677 = scalar_lea.sflag [#allocation13], %s676
        %s678 = sand.u32 %s228, 1
        %s679 = smul.addr %s678, 32
        %s680 = scalar_lea.vmem [#allocation14], %s679
        // Predicated region
        $region97: #{wav2vec2_forward.3} parent=71 // pred_check
          %p681 = pneg %p241
        $region98: #{wav2vec2_forward.3} parent=71 // pred_check_branch
          %683 = sbr.rel (%p681) target = $region100
        $region99: #{wav2vec2_forward.3} parent=71 // pred_region
          %685 = dma.done %s677, 512
        $region100: #{wav2vec2_forward.3} parent=71 // pred_fallthru
          _
        %s686 = sand.u32 %s43, 1
        %s687 = scalar_lea.sflag [#allocation16], %s686
        %s688 = sand.u32 %s254, 1
        %s689 = scalar_lea.vmem [#allocation15], %s688
        // Predicated region
        $region101: #{wav2vec2_forward.3} parent=71 // pred_check
          %p690 = pneg %p267
        $region102: #{wav2vec2_forward.3} parent=71 // pred_check_branch
          %692 = sbr.rel (%p690) target = $region104
        $region103: #{wav2vec2_forward.3} parent=71 // pred_region
          %694 = dma.done %s687, 16
        $region104: #{wav2vec2_forward.3} parent=71 // pred_fallthru
          _
        %s695 = sand.u32 %s43, 1
        %s696 = scalar_lea.sflag [#allocation16], %s695
        %s697 = sand.u32 %s306, 1
        %s698 = scalar_lea.vmem [#allocation17], %s697
        // Predicated region
        $region105: #{wav2vec2_forward.3} parent=71 // pred_check
          %p699 = pneg %p319
        $region106: #{wav2vec2_forward.3} parent=71 // pred_check_branch
          %701 = sbr.rel (%p699) target = $region108
        $region107: #{wav2vec2_forward.3} parent=71 // pred_region
          %703 = dma.done %s696, 16
        $region108: #{wav2vec2_forward.3} parent=71 // pred_fallthru
          _
        %s704 = sand.u32 %s332, 1
        %s705 = scalar_lea.sflag [#allocation19], %s704
        %s706 = sand.u32 %s332, 1
        %s707 = scalar_lea.vmem [#allocation18], %s706
        // Predicated region
        $region109: #{wav2vec2_forward.3} parent=71 // pred_check
          %p708 = pneg %p345
        $region110: #{wav2vec2_forward.3} parent=71 // pred_check_branch
          %710 = sbr.rel (%p708) target = $region112
        $region111: #{wav2vec2_forward.3} parent=71 // pred_region
          %712 = dma.done %s705, 16
        $region112: #{wav2vec2_forward.3} parent=71 // pred_fallthru
          _
        %p713 = pneg %p59
        %p714 = pneg %p56
        %s715 = sand.u32 %s72, 1
        %s716 = scalar_lea.sflag [#allocation4], %s715
        %s717 = sand.u32 %s72, 1
        %s718 = smul.addr %s717, 32
        %s719 = scalar_lea.vmem [#allocation3], %s718
        %p720 = pneg %p85
        %p721 = pneg %p82
        %s722 = sand.u32 %s43, 1
        %s723 = scalar_lea.sflag [#allocation7], %s722
        %s724 = sand.u32 %s98, 1
        %s725 = scalar_lea.vmem [#allocation6], %s724
        %p726 = pneg %p111
        %p727 = pneg %p108
        %s728 = sand.u32 %s43, 1
        %s729 = scalar_lea.sflag [#allocation7], %s728
        %s730 = sand.u32 %s124, 1
        %s731 = smul.addr %s730, 32
        %s732 = scalar_lea.vmem [#allocation8], %s731
        %p733 = pneg %p137
        %p734 = pneg %p134
        %s735 = sand.u32 %s43, 1
        %s736 = scalar_lea.sflag [#allocation10], %s735
        %s737 = sand.u32 %s150, 1
        %s738 = scalar_lea.vmem [#allocation9], %s737
        %p739 = pneg %p163
        %p740 = pneg %p160
        %s741 = sand.u32 %s43, 1
        %s742 = scalar_lea.sflag [#allocation10], %s741
        %s743 = sand.u32 %s176, 1
        %s744 = scalar_lea.vmem [#allocation11], %s743
        %p745 = pneg %p189
        %p746 = pneg %p186
        %s747 = sand.u32 %s43, 1
        %s748 = scalar_lea.sflag [#allocation13], %s747
        %s749 = sand.u32 %s202, 1
        %s750 = scalar_lea.vmem [#allocation12], %s749
        %p751 = pneg %p215
        %p752 = pneg %p212
        %s753 = sand.u32 %s43, 1
        %s754 = scalar_lea.sflag [#allocation13], %s753
        %s755 = sand.u32 %s228, 1
        %s756 = smul.addr %s755, 32
        %s757 = scalar_lea.vmem [#allocation14], %s756
        %p758 = pneg %p241
        %p759 = pneg %p238
        %s760 = sand.u32 %s43, 1
        %s761 = scalar_lea.sflag [#allocation16], %s760
        %s762 = sand.u32 %s254, 1
        %s763 = scalar_lea.vmem [#allocation15], %s762
        %p764 = pneg %p267
        %p765 = pneg %p264
        %p766 = scmp.lt.s32.totalorder %s43, 1
        %s767 = scalar_select %p766, %s43, 1
        %s768 = smul.addr %s767, 8
        %s769 = smul.addr %s768, 8
        %s770 = scalar_lea.vmem %s9, %s769
        %p771 = pneg %p293
        %p772 = pneg %p290
        %s773 = sand.u32 %s43, 1
        %s774 = scalar_lea.sflag [#allocation16], %s773
        %s775 = sand.u32 %s306, 1
        %s776 = scalar_lea.vmem [#allocation17], %s775
        %p777 = pneg %p319
        %p778 = pneg %p316
        %s779 = sand.u32 %s332, 1
        %s780 = scalar_lea.sflag [#allocation19], %s779
        %s781 = sand.u32 %s332, 1
        %s782 = scalar_lea.vmem [#allocation18], %s781
        %p783 = pneg %p345
        %p784 = pneg %p342
        %p785 = scmp.lt.s32.totalorder %s43, 1
        %s786 = scalar_select %p785, %s43, 1
        %s787 = scalar_lea.vmem %s12, %s786
        %p788 = pneg %p371
        %p789 = pneg %p368
        %p790 = pneg %p392
        %p791 = pneg %p389
        %p792 = scmp.lt.s32.totalorder %s43, 1
        %s793 = scalar_select %p792, %s43, 1
        %s794 = smul.addr %s793, 8
        %s795 = smul.addr %s794, 8
        %s796 = scalar_lea.vmem %s9, %s795
        %p797 = scmp.lt.s32.totalorder %s43, 1
        %s798 = scalar_select %p797, %s43, 1
        %s799 = scalar_lea.vmem %s12, %s798
        %p800 = scmp.eq.s32.totalorder %s43, 0
        // Predicated region
        $region113: #{wav2vec2_forward.3} parent=71 // pred_check
          %p801 = pneg %p800
        $region114: #{wav2vec2_forward.3} parent=71 // pred_check_branch
          %803 = sbr.rel (%p801) target = $region116
        $region115: #{wav2vec2_forward.3} parent=71 // pred_region
          %v804 = vld [vmem:[%s0] sm:$0xff]
          %v805 = vld [vmem:[%s0 + $0x8] sm:$0xff]
          %v806 = vld [vmem:[%s0 + $0x10] sm:$0xff]
          %v807 = vld [vmem:[%s0 + $0x18] sm:$0xff]
          %vm808 = vcmask 261120
          %809 = vst.msk [vmem:[#allocation20] sm:$0xff] %vm808, %v804
          %810 = vst.msk [vmem:[#allocation20 + $0x8] sm:$0xff] %vm808, %v805
          %811 = vst.msk [vmem:[#allocation20 + $0x10] sm:$0xff] %vm808, %v806
          %812 = vst.msk [vmem:[#allocation20 + $0x18] sm:$0xff] %vm808, %v807
        $region116: #{wav2vec2_forward.3} parent=71 // pred_fallthru
          _
        %v813 = vld [vmem:[#allocation20] sm:$0xff]
        %v814 = vld [vmem:[#allocation20 + $0x8] sm:$0xff]
        %v815 = vld [vmem:[#allocation20 + $0x10] sm:$0xff]
        %v816 = vld [vmem:[#allocation20 + $0x18] sm:$0xff]
        %v817 = vld [vmem:[%s624] sm:$0xff]
        %v818 = vld [vmem:[%s624 + $0x8] sm:$0xff]
        %v819 = vld [vmem:[%s624 + $0x10] sm:$0xff]
        %v820 = vld [vmem:[%s624 + $0x18] sm:$0xff]
        %v821 = vld [vmem:[%s633] sm:$0x1]
        %v823 = vperm.slane %v821, 0
        %vm825 = vcmask 261120
        %v827 = vsel %vm825, %v813, 0
        %v830 = vsel %vm825, %v814, 0
        %v833 = vsel %vm825, %v815, 0
        %v836 = vsel %vm825, %v816, 0
        %838 = vmatpush.msra.mxu0 0.0
        %839 = vmatpush.msra.mxu0 0.0
        %840 = vmatpush.msra.mxu0 0.0
        %841 = vmatpush.msra.mxu0 0.0
        %842 = vmatpush.msra.mxu0 0.0
        %843 = vmatpush.msra.mxu0 0.0
        %844 = vmatpush.msra.mxu0 0.0
        %845 = vmatpush.msra.mxu0 0.0
        %846 = vmatpush.msra.mxu0 0.0
        %847 = vmatpush.msra.mxu0 0.0
        %848 = vmatpush.msra.mxu0 0.0
        %849 = vmatpush.msra.mxu0 0.0
        %850 = vmatpush.msra.mxu0 %v820
        %851 = vmatpush.msra.mxu0 %v819
        %852 = vmatpush.msra.mxu0 %v818
        %853 = vmatpush.msra.mxu0 %v817
        %854 = vmatmul.f32.gmra.mxu0 %v827
        %v855 = vpop.f32.mrf.mxu0
        %v856 = vadd.f32 %v823, %v855
        %857 = vmatmul.f32.gmra.mxu0 %v830
        %v858 = vpop.f32.mrf.mxu0
        %v859 = vadd.f32 %v823, %v858
        %860 = vmatmul.f32.gmra.mxu0 %v833
        %v861 = vpop.f32.mrf.mxu0
        %v862 = vadd.f32 %v823, %v861
        %863 = vmatmul.f32.gmra.mxu0 %v836
        %v864 = vpop.f32.mrf.mxu0
        %v865 = vadd.f32 %v823, %v864
        %866 = vdwg.mxu0
        %v867 = vld [vmem:[%s643] sm:$0xff]
        %v868 = vld [vmem:[%s643 + $0x8] sm:$0xff]
        %v869 = vld [vmem:[%s643 + $0x10] sm:$0xff]
        %v870 = vld [vmem:[%s643 + $0x18] sm:$0xff]
        %873 = vrot.lane.b32.xlu0 %v856, 96
        %v874 = vpop.permute.xlu0 %873
        %875 = vrot.lane.b32.xlu0 %v859, 96
        %v876 = vpop.permute.xlu0 %875
        %vm877 = vcmask 64512
        %v878 = vsel %vm877, %v856, 0
        %v880 = vsel %vm877, %v859, 0
        %v882 = vsel %vm877, %v874, 0
        %v884 = vsel %vm877, %v876, 0
        %886 = vmatpush.xpose.msra.mxu0 0.0
        %887 = vmatpush.xpose.msra.mxu0 0.0
        %888 = vmatpush.xpose.msra.mxu0 0.0
        %889 = vmatpush.xpose.msra.mxu0 0.0
        %890 = vmatpush.xpose.msra.mxu0 0.0
        %891 = vmatpush.xpose.msra.mxu0 0.0
        %892 = vmatpush.xpose.msra.mxu0 0.0
        %893 = vmatpush.xpose.msra.mxu0 0.0
        %894 = vmatpush.xpose.msra.mxu0 0.0
        %895 = vmatpush.xpose.msra.mxu0 0.0
        %896 = vmatpush.xpose.msra.mxu0 0.0
        %897 = vmatpush.xpose.msra.mxu0 0.0
        %898 = vmatpush.xpose.msra.mxu0 0.0
        %899 = vmatpush.xpose.msra.mxu0 0.0
        %900 = vmatpush.xpose.msra.mxu0 %v884
        %901 = vmatpush.xpose.msra.mxu0 %v882
        %902 = vmatmul.f32.gmra.mxu0 %v878
        %v903 = vpop.f32.mrf.mxu0
        %v904 = vadd.f32 0.0, %v903
        %905 = vmatmul.f32.gmra.mxu0 %v880
        %v906 = vpop.f32.mrf.mxu0
        %v907 = vadd.f32 0.0, %v906
        %908 = vdwg.mxu0
        %vm909 = vcmask 130048
        %v910 = vsel %vm909, %v904, -inf
        %911 = vmax.xlane.f32.xlu0 %v910
        %v912 = vpop.xlane.xlu0 %911
        %v913 = vsel %vm909, %v907, -inf
        %914 = vmax.xlane.f32.xlu0 %v913
        %v915 = vpop.xlane.xlu0 %914
        %v916 = vsub.f32 %v904, %v912
        %v917 = vsub.f32 %v907, %v915
        %v918 = vmul.f32 %v916, 1.442695
        %v919 = vpow.pop %v918
        %v920 = vmul.f32 %v917, 1.442695
        %v921 = vpow.pop %v920
        %v922 = vsel %vm909, %v919, 0.0
        %923 = vadd.xlane.f32.xlu0 %v922
        %v924 = vpop.xlane.xlu0 %923
        %v925 = vsel %vm909, %v921, 0.0
        %926 = vadd.xlane.f32.xlu0 %v925
        %v927 = vpop.xlane.xlu0 %926
        %v928 = vrcp.pop %v924
        %v929 = vmul.f32 %v924, %v928
        %v930 = vsub.f32 1.0, %v929
        %v931 = vmul.f32 %v928, %v930
        %v932 = vadd.f32 %v928, %v931
        %vm933 = vweird.f32 %v924
        %vm934 = vweird.f32 %v928
        %vm935 = vmor %vm933, %vm934
        %v936 = vsel %vm935, %v928, %v932
        %v937 = vand.u32 2147483647, %v924
        %vm938 = vcmp.eq.f32.partialorder %v937, 8.507059e+37
        %v939 = vand.u32 %v924, 2147483648
        %v940 = vor.u32 1.1754944e-38, %v939
        %v941 = vsel %vm938, %v940, %v936
        %v942 = vmul.f32 %v919, %v941
        %v943 = vrcp.pop %v927
        %v944 = vmul.f32 %v927, %v943
        %v945 = vsub.f32 1.0, %v944
        %v946 = vmul.f32 %v943, %v945
        %v947 = vadd.f32 %v943, %v946
        %vm948 = vweird.f32 %v927
        %vm949 = vweird.f32 %v943
        %vm950 = vmor %vm948, %vm949
        %v951 = vsel %vm950, %v943, %v947
        %v952 = vand.u32 2147483647, %v927
        %vm953 = vcmp.eq.f32.partialorder %v952, 8.507059e+37
        %v954 = vand.u32 %v927, 2147483648
        %v955 = vor.u32 1.1754944e-38, %v954
        %v956 = vsel %vm953, %v955, %v951
        %v957 = vmul.f32 %v921, %v956
        %958 = vrot.lane.b32.xlu0 %v856, 64
        %v959 = vpop.permute.xlu0 %958
        %960 = vrot.lane.b32.xlu0 %v859, 64
        %v961 = vpop.permute.xlu0 %960
        %v965 = vsel %vm909, %v942, 0
        %v968 = vsel %vm909, %v957, 0
        %970 = vmatpush.msra.mxu0 0.0
        %971 = vmatpush.msra.mxu0 0.0
        %972 = vmatpush.msra.mxu0 0.0
        %973 = vmatpush.msra.mxu0 0.0
        %974 = vmatpush.msra.mxu0 0.0
        %975 = vmatpush.msra.mxu0 0.0
        %976 = vmatpush.msra.mxu0 0.0
        %977 = vmatpush.msra.mxu0 0.0
        %978 = vmatpush.msra.mxu0 0.0
        %979 = vmatpush.msra.mxu0 0.0
        %980 = vmatpush.msra.mxu0 0.0
        %981 = vmatpush.msra.mxu0 0.0
        %982 = vmatpush.msra.mxu0 0.0
        %983 = vmatpush.msra.mxu0 0.0
        %984 = vmatpush.msra.mxu0 %v961
        %985 = vmatpush.msra.mxu0 %v959
        %986 = vmatmul.f32.gmra.mxu0 %v965
        %v987 = vpop.f32.mrf.mxu0
        %v988 = vadd.f32 0.0, %v987
        %989 = vmatmul.f32.gmra.mxu0 %v968
        %v990 = vpop.f32.mrf.mxu0
        %v991 = vadd.f32 0.0, %v990
        %992 = vdwg.mxu0
        %993 = vrot.lane.b32.xlu0 %v856, 120
        %v994 = vpop.permute.xlu0 %993
        %995 = vrot.lane.b32.xlu0 %v859, 120
        %v996 = vpop.permute.xlu0 %995
        %997 = vrot.lane.b32.xlu0 %v856, 88
        %v998 = vpop.permute.xlu0 %997
        %999 = vrot.lane.b32.xlu0 %v859, 88
        %v1000 = vpop.permute.xlu0 %999
        %v1001 = vsel %vm877, %v994, 0
        %v1003 = vsel %vm877, %v996, 0
        %v1005 = vsel %vm877, %v998, 0
        %v1007 = vsel %vm877, %v1000, 0
        %1009 = vmatpush.xpose.msra.mxu0 0.0
        %1010 = vmatpush.xpose.msra.mxu0 0.0
        %1011 = vmatpush.xpose.msra.mxu0 0.0
        %1012 = vmatpush.xpose.msra.mxu0 0.0
        %1013 = vmatpush.xpose.msra.mxu0 0.0
        %1014 = vmatpush.xpose.msra.mxu0 0.0
        %1015 = vmatpush.xpose.msra.mxu0 0.0
        %1016 = vmatpush.xpose.msra.mxu0 0.0
        %1017 = vmatpush.xpose.msra.mxu0 0.0
        %1018 = vmatpush.xpose.msra.mxu0 0.0
        %1019 = vmatpush.xpose.msra.mxu0 0.0
        %1020 = vmatpush.xpose.msra.mxu0 0.0
        %1021 = vmatpush.xpose.msra.mxu0 0.0
        %1022 = vmatpush.xpose.msra.mxu0 0.0
        %1023 = vmatpush.xpose.msra.mxu0 %v1007
        %1024 = vmatpush.xpose.msra.mxu0 %v1005
        %1025 = vmatmul.f32.gmra.mxu0 %v1001
        %v1026 = vpop.f32.mrf.mxu0
        %v1027 = vadd.f32 0.0, %v1026
        %1028 = vmatmul.f32.gmra.mxu0 %v1003
        %v1029 = vpop.f32.mrf.mxu0
        %v1030 = vadd.f32 0.0, %v1029
        %1031 = vdwg.mxu0
        %v1032 = vsel %vm909, %v1027, -inf
        %1033 = vmax.xlane.f32.xlu0 %v1032
        %v1034 = vpop.xlane.xlu0 %1033
        %v1035 = vsel %vm909, %v1030, -inf
        %1036 = vmax.xlane.f32.xlu0 %v1035
        %v1037 = vpop.xlane.xlu0 %1036
        %v1038 = vsub.f32 %v1027, %v1034
        %v1039 = vsub.f32 %v1030, %v1037
        %v1040 = vmul.f32 %v1038, 1.442695
        %v1041 = vpow.pop %v1040
        %v1042 = vmul.f32 %v1039, 1.442695
        %v1043 = vpow.pop %v1042
        %v1044 = vsel %vm909, %v1041, 0.0
        %1045 = vadd.xlane.f32.xlu0 %v1044
        %v1046 = vpop.xlane.xlu0 %1045
        %v1047 = vsel %vm909, %v1043, 0.0
        %1048 = vadd.xlane.f32.xlu0 %v1047
        %v1049 = vpop.xlane.xlu0 %1048
        %v1050 = vrcp.pop %v1046
        %v1051 = vmul.f32 %v1046, %v1050
        %v1052 = vsub.f32 1.0, %v1051
        %v1053 = vmul.f32 %v1050, %v1052
        %v1054 = vadd.f32 %v1050, %v1053
        %vm1055 = vweird.f32 %v1046
        %vm1056 = vweird.f32 %v1050
        %vm1057 = vmor %vm1055, %vm1056
        %v1058 = vsel %vm1057, %v1050, %v1054
        %v1059 = vand.u32 2147483647, %v1046
        %vm1060 = vcmp.eq.f32.partialorder %v1059, 8.507059e+37
        %v1061 = vand.u32 %v1046, 2147483648
        %v1062 = vor.u32 1.1754944e-38, %v1061
        %v1063 = vsel %vm1060, %v1062, %v1058
        %v1064 = vmul.f32 %v1041, %v1063
        %v1065 = vrcp.pop %v1049
        %v1066 = vmul.f32 %v1049, %v1065
        %v1067 = vsub.f32 1.0, %v1066
        %v1068 = vmul.f32 %v1065, %v1067
        %v1069 = vadd.f32 %v1065, %v1068
        %vm1070 = vweird.f32 %v1049
        %vm1071 = vweird.f32 %v1065
        %vm1072 = vmor %vm1070, %vm1071
        %v1073 = vsel %vm1072, %v1065, %v1069
        %v1074 = vand.u32 2147483647, %v1049
        %vm1075 = vcmp.eq.f32.partialorder %v1074, 8.507059e+37
        %v1076 = vand.u32 %v1049, 2147483648
        %v1077 = vor.u32 1.1754944e-38, %v1076
        %v1078 = vsel %vm1075, %v1077, %v1073
        %v1079 = vmul.f32 %v1043, %v1078
        %1080 = vrot.lane.b32.xlu0 %v856, 56
        %v1081 = vpop.permute.xlu0 %1080
        %1082 = vrot.lane.b32.xlu0 %v859, 56
        %v1083 = vpop.permute.xlu0 %1082
        %v1087 = vsel %vm909, %v1064, 0
        %v1090 = vsel %vm909, %v1079, 0
        %1092 = vmatpush.msra.mxu0 0.0
        %1093 = vmatpush.msra.mxu0 0.0
        %1094 = vmatpush.msra.mxu0 0.0
        %1095 = vmatpush.msra.mxu0 0.0
        %1096 = vmatpush.msra.mxu0 0.0
        %1097 = vmatpush.msra.mxu0 0.0
        %1098 = vmatpush.msra.mxu0 0.0
        %1099 = vmatpush.msra.mxu0 0.0
        %1100 = vmatpush.msra.mxu0 0.0
        %1101 = vmatpush.msra.mxu0 0.0
        %1102 = vmatpush.msra.mxu0 0.0
        %1103 = vmatpush.msra.mxu0 0.0
        %1104 = vmatpush.msra.mxu0 0.0
        %1105 = vmatpush.msra.mxu0 0.0
        %1106 = vmatpush.msra.mxu0 %v1083
        %1107 = vmatpush.msra.mxu0 %v1081
        %1108 = vmatmul.f32.gmra.mxu0 %v1087
        %v1109 = vpop.f32.mrf.mxu0
        %v1110 = vadd.f32 0.0, %v1109
        %1111 = vmatmul.f32.gmra.mxu0 %v1090
        %v1112 = vpop.f32.mrf.mxu0
        %v1113 = vadd.f32 0.0, %v1112
        %1114 = vdwg.mxu0
        %v1116 = vsel %vm877, %v1110, 0
        %v1119 = vsel %vm877, %v1113, 0
        %1121 = vmatpush.msra.mxu0 0.0
        %1122 = vmatpush.msra.mxu0 0.0
        %1123 = vmatpush.msra.mxu0 0.0
        %1124 = vmatpush.msra.mxu0 0.0
        %1125 = vmatpush.msra.mxu0 0.0
        %1126 = vmatpush.msra.mxu0 0.0
        %1127 = vmatpush.msra.mxu0 0.0
        %1128 = vmatpush.msra.mxu0 0.0
        %1129 = vmatpush.msra.mxu0 0.0
        %1130 = vmatpush.msra.mxu0 0.0
        %1131 = vmatpush.msra.mxu0 0.0
        %1132 = vmatpush.msra.mxu0 0.0
        %1133 = vmatpush.msra.mxu0 0.0
        %1134 = vmatpush.msra.mxu0 0.0
        %1135 = vmatpush.msra.mxu0 0.0
        %1136 = vmatpush.msra.mxu0 %v868
        %1137 = vmatmul.f32.gmra.mxu0 %v1116
        %v1138 = vpop.f32.mrf.mxu0
        %v1139 = vadd.f32 0.0, %v1138
        %1140 = vmatmul.f32.gmra.mxu0 %v1119
        %v1141 = vpop.f32.mrf.mxu0
        %v1142 = vadd.f32 0.0, %v1141
        %1143 = vdwg.mxu0
        %v1145 = vsel %vm877, %v988, 0
        %v1148 = vsel %vm877, %v991, 0
        %1150 = vmatpush.msra.mxu0 0.0
        %1151 = vmatpush.msra.mxu0 0.0
        %1152 = vmatpush.msra.mxu0 0.0
        %1153 = vmatpush.msra.mxu0 0.0
        %1154 = vmatpush.msra.mxu0 0.0
        %1155 = vmatpush.msra.mxu0 0.0
        %1156 = vmatpush.msra.mxu0 0.0
        %1157 = vmatpush.msra.mxu0 0.0
        %1158 = vmatpush.msra.mxu0 0.0
        %1159 = vmatpush.msra.mxu0 0.0
        %1160 = vmatpush.msra.mxu0 0.0
        %1161 = vmatpush.msra.mxu0 0.0
        %1162 = vmatpush.msra.mxu0 0.0
        %1163 = vmatpush.msra.mxu0 0.0
        %1164 = vmatpush.msra.mxu0 0.0
        %1165 = vmatpush.msra.mxu0 %v867
        %1166 = vmatmul.f32.gmra.mxu0 %v1145
        %v1167 = vpop.f32.mrf.mxu0
        %v1168 = vadd.f32 %v1139, %v1167
        %1169 = vmatmul.f32.gmra.mxu0 %v1148
        %v1170 = vpop.f32.mrf.mxu0
        %v1171 = vadd.f32 %v1142, %v1170
        %1172 = vdwg.mxu0
        %1173 = vrot.lane.b32.xlu0 %v856, 112
        %v1174 = vpop.permute.xlu0 %1173
        %1175 = vrot.lane.b32.xlu0 %v859, 112
        %v1176 = vpop.permute.xlu0 %1175
        %1177 = vrot.lane.b32.xlu0 %v856, 80
        %v1178 = vpop.permute.xlu0 %1177
        %1179 = vrot.lane.b32.xlu0 %v859, 80
        %v1180 = vpop.permute.xlu0 %1179
        %v1181 = vsel %vm877, %v1174, 0
        %v1183 = vsel %vm877, %v1176, 0
        %v1185 = vsel %vm877, %v1178, 0
        %v1187 = vsel %vm877, %v1180, 0
        %1189 = vmatpush.xpose.msra.mxu0 0.0
        %1190 = vmatpush.xpose.msra.mxu0 0.0
        %1191 = vmatpush.xpose.msra.mxu0 0.0
        %1192 = vmatpush.xpose.msra.mxu0 0.0
        %1193 = vmatpush.xpose.msra.mxu0 0.0
        %1194 = vmatpush.xpose.msra.mxu0 0.0
        %1195 = vmatpush.xpose.msra.mxu0 0.0
        %1196 = vmatpush.xpose.msra.mxu0 0.0
        %1197 = vmatpush.xpose.msra.mxu0 0.0
        %1198 = vmatpush.xpose.msra.mxu0 0.0
        %1199 = vmatpush.xpose.msra.mxu0 0.0
        %1200 = vmatpush.xpose.msra.mxu0 0.0
        %1201 = vmatpush.xpose.msra.mxu0 0.0
        %1202 = vmatpush.xpose.msra.mxu0 0.0
        %1203 = vmatpush.xpose.msra.mxu0 %v1187
        %1204 = vmatpush.xpose.msra.mxu0 %v1185
        %1205 = vmatmul.f32.gmra.mxu0 %v1181
        %v1206 = vpop.f32.mrf.mxu0
        %v1207 = vadd.f32 0.0, %v1206
        %1208 = vmatmul.f32.gmra.mxu0 %v1183
        %v1209 = vpop.f32.mrf.mxu0
        %v1210 = vadd.f32 0.0, %v1209
        %1211 = vdwg.mxu0
        %v1212 = vsel %vm909, %v1207, -inf
        %1213 = vmax.xlane.f32.xlu0 %v1212
        %v1214 = vpop.xlane.xlu0 %1213
        %v1215 = vsel %vm909, %v1210, -inf
        %1216 = vmax.xlane.f32.xlu0 %v1215
        %v1217 = vpop.xlane.xlu0 %1216
        %v1218 = vsub.f32 %v1207, %v1214
        %v1219 = vsub.f32 %v1210, %v1217
        %v1220 = vmul.f32 %v1218, 1.442695
        %v1221 = vpow.pop %v1220
        %v1222 = vmul.f32 %v1219, 1.442695
        %v1223 = vpow.pop %v1222
        %v1224 = vsel %vm909, %v1221, 0.0
        %1225 = vadd.xlane.f32.xlu0 %v1224
        %v1226 = vpop.xlane.xlu0 %1225
        %v1227 = vsel %vm909, %v1223, 0.0
        %1228 = vadd.xlane.f32.xlu0 %v1227
        %v1229 = vpop.xlane.xlu0 %1228
        %v1230 = vrcp.pop %v1226
        %v1231 = vmul.f32 %v1226, %v1230
        %v1232 = vsub.f32 1.0, %v1231
        %v1233 = vmul.f32 %v1230, %v1232
        %v1234 = vadd.f32 %v1230, %v1233
        %vm1235 = vweird.f32 %v1226
        %vm1236 = vweird.f32 %v1230
        %vm1237 = vmor %vm1235, %vm1236
        %v1238 = vsel %vm1237, %v1230, %v1234
        %v1239 = vand.u32 2147483647, %v1226
        %vm1240 = vcmp.eq.f32.partialorder %v1239, 8.507059e+37
        %v1241 = vand.u32 %v1226, 2147483648
        %v1242 = vor.u32 1.1754944e-38, %v1241
        %v1243 = vsel %vm1240, %v1242, %v1238
        %v1244 = vmul.f32 %v1221, %v1243
        %v1245 = vrcp.pop %v1229
        %v1246 = vmul.f32 %v1229, %v1245
        %v1247 = vsub.f32 1.0, %v1246
        %v1248 = vmul.f32 %v1245, %v1247
        %v1249 = vadd.f32 %v1245, %v1248
        %vm1250 = vweird.f32 %v1229
        %vm1251 = vweird.f32 %v1245
        %vm1252 = vmor %vm1250, %vm1251
        %v1253 = vsel %vm1252, %v1245, %v1249
        %v1254 = vand.u32 2147483647, %v1229
        %vm1255 = vcmp.eq.f32.partialorder %v1254, 8.507059e+37
        %v1256 = vand.u32 %v1229, 2147483648
        %v1257 = vor.u32 1.1754944e-38, %v1256
        %v1258 = vsel %vm1255, %v1257, %v1253
        %v1259 = vmul.f32 %v1223, %v1258
        %1260 = vrot.lane.b32.xlu0 %v856, 48
        %v1261 = vpop.permute.xlu0 %1260
        %1262 = vrot.lane.b32.xlu0 %v859, 48
        %v1263 = vpop.permute.xlu0 %1262
        %v1267 = vsel %vm909, %v1244, 0
        %v1270 = vsel %vm909, %v1259, 0
        %1272 = vmatpush.msra.mxu0 0.0
        %1273 = vmatpush.msra.mxu0 0.0
        %1274 = vmatpush.msra.mxu0 0.0
        %1275 = vmatpush.msra.mxu0 0.0
        %1276 = vmatpush.msra.mxu0 0.0
        %1277 = vmatpush.msra.mxu0 0.0
        %1278 = vmatpush.msra.mxu0 0.0
        %1279 = vmatpush.msra.mxu0 0.0
        %1280 = vmatpush.msra.mxu0 0.0
        %1281 = vmatpush.msra.mxu0 0.0
        %1282 = vmatpush.msra.mxu0 0.0
        %1283 = vmatpush.msra.mxu0 0.0
        %1284 = vmatpush.msra.mxu0 0.0
        %1285 = vmatpush.msra.mxu0 0.0
        %1286 = vmatpush.msra.mxu0 %v1263
        %1287 = vmatpush.msra.mxu0 %v1261
        %1288 = vmatmul.f32.gmra.mxu0 %v1267
        %v1289 = vpop.f32.mrf.mxu0
        %v1290 = vadd.f32 0.0, %v1289
        %1291 = vmatmul.f32.gmra.mxu0 %v1270
        %v1292 = vpop.f32.mrf.mxu0
        %v1293 = vadd.f32 0.0, %v1292
        %1294 = vdwg.mxu0
        %v1296 = vsel %vm877, %v1290, 0
        %v1299 = vsel %vm877, %v1293, 0
        %1301 = vmatpush.msra.mxu0 0.0
        %1302 = vmatpush.msra.mxu0 0.0
        %1303 = vmatpush.msra.mxu0 0.0
        %1304 = vmatpush.msra.mxu0 0.0
        %1305 = vmatpush.msra.mxu0 0.0
        %1306 = vmatpush.msra.mxu0 0.0
        %1307 = vmatpush.msra.mxu0 0.0
        %1308 = vmatpush.msra.mxu0 0.0
        %1309 = vmatpush.msra.mxu0 0.0
        %1310 = vmatpush.msra.mxu0 0.0
        %1311 = vmatpush.msra.mxu0 0.0
        %1312 = vmatpush.msra.mxu0 0.0
        %1313 = vmatpush.msra.mxu0 0.0
        %1314 = vmatpush.msra.mxu0 0.0
        %1315 = vmatpush.msra.mxu0 0.0
        %1316 = vmatpush.msra.mxu0 %v869
        %1317 = vmatmul.f32.gmra.mxu0 %v1296
        %v1318 = vpop.f32.mrf.mxu0
        %v1319 = vadd.f32 0.0, %v1318
        %1320 = vmatmul.f32.gmra.mxu0 %v1299
        %v1321 = vpop.f32.mrf.mxu0
        %v1322 = vadd.f32 0.0, %v1321
        %1323 = vdwg.mxu0
        %v1324 = vadd.f32 %v1168, %v1319
        %v1325 = vadd.f32 %v1171, %v1322
        %1326 = vrot.lane.b32.xlu0 %v856, 104
        %v1327 = vpop.permute.xlu0 %1326
        %1328 = vrot.lane.b32.xlu0 %v859, 104
        %v1329 = vpop.permute.xlu0 %1328
        %1330 = vrot.lane.b32.xlu0 %v856, 72
        %v1331 = vpop.permute.xlu0 %1330
        %1332 = vrot.lane.b32.xlu0 %v859, 72
        %v1333 = vpop.permute.xlu0 %1332
        %v1334 = vsel %vm877, %v1327, 0
        %v1336 = vsel %vm877, %v1329, 0
        %v1338 = vsel %vm877, %v1331, 0
        %v1340 = vsel %vm877, %v1333, 0
        %1342 = vmatpush.xpose.msra.mxu0 0.0
        %1343 = vmatpush.xpose.msra.mxu0 0.0
        %1344 = vmatpush.xpose.msra.mxu0 0.0
        %1345 = vmatpush.xpose.msra.mxu0 0.0
        %1346 = vmatpush.xpose.msra.mxu0 0.0
        %1347 = vmatpush.xpose.msra.mxu0 0.0
        %1348 = vmatpush.xpose.msra.mxu0 0.0
        %1349 = vmatpush.xpose.msra.mxu0 0.0
        %1350 = vmatpush.xpose.msra.mxu0 0.0
        %1351 = vmatpush.xpose.msra.mxu0 0.0
        %1352 = vmatpush.xpose.msra.mxu0 0.0
        %1353 = vmatpush.xpose.msra.mxu0 0.0
        %1354 = vmatpush.xpose.msra.mxu0 0.0
        %1355 = vmatpush.xpose.msra.mxu0 0.0
        %1356 = vmatpush.xpose.msra.mxu0 %v1340
        %1357 = vmatpush.xpose.msra.mxu0 %v1338
        %1358 = vmatmul.f32.gmra.mxu0 %v1334
        %v1359 = vpop.f32.mrf.mxu0
        %v1360 = vadd.f32 0.0, %v1359
        %1361 = vmatmul.f32.gmra.mxu0 %v1336
        %v1362 = vpop.f32.mrf.mxu0
        %v1363 = vadd.f32 0.0, %v1362
        %1364 = vdwg.mxu0
        %v1365 = vsel %vm909, %v1360, -inf
        %1366 = vmax.xlane.f32.xlu0 %v1365
        %v1367 = vpop.xlane.xlu0 %1366
        %v1368 = vsel %vm909, %v1363, -inf
        %1369 = vmax.xlane.f32.xlu0 %v1368
        %v1370 = vpop.xlane.xlu0 %1369
        %v1371 = vsub.f32 %v1360, %v1367
        %v1372 = vsub.f32 %v1363, %v1370
        %v1373 = vmul.f32 %v1371, 1.442695
        %v1374 = vpow.pop %v1373
        %v1375 = vmul.f32 %v1372, 1.442695
        %v1376 = vpow.pop %v1375
        %v1377 = vsel %vm909, %v1374, 0.0
        %1378 = vadd.xlane.f32.xlu0 %v1377
        %v1379 = vpop.xlane.xlu0 %1378
        %v1380 = vsel %vm909, %v1376, 0.0
        %1381 = vadd.xlane.f32.xlu0 %v1380
        %v1382 = vpop.xlane.xlu0 %1381
        %v1383 = vrcp.pop %v1379
        %v1384 = vmul.f32 %v1379, %v1383
        %v1385 = vsub.f32 1.0, %v1384
        %v1386 = vmul.f32 %v1383, %v1385
        %v1387 = vadd.f32 %v1383, %v1386
        %vm1388 = vweird.f32 %v1379
        %vm1389 = vweird.f32 %v1383
        %vm1390 = vmor %vm1388, %vm1389
        %v1391 = vsel %vm1390, %v1383, %v1387
        %v1392 = vand.u32 2147483647, %v1379
        %vm1393 = vcmp.eq.f32.partialorder %v1392, 8.507059e+37
        %v1394 = vand.u32 %v1379, 2147483648
        %v1395 = vor.u32 1.1754944e-38, %v1394
        %v1396 = vsel %vm1393, %v1395, %v1391
        %v1397 = vmul.f32 %v1374, %v1396
        %v1398 = vrcp.pop %v1382
        %v1399 = vmul.f32 %v1382, %v1398
        %v1400 = vsub.f32 1.0, %v1399
        %v1401 = vmul.f32 %v1398, %v1400
        %v1402 = vadd.f32 %v1398, %v1401
        %vm1403 = vweird.f32 %v1382
        %vm1404 = vweird.f32 %v1398
        %vm1405 = vmor %vm1403, %vm1404
        %v1406 = vsel %vm1405, %v1398, %v1402
        %v1407 = vand.u32 2147483647, %v1382
        %vm1408 = vcmp.eq.f32.partialorder %v1407, 8.507059e+37
        %v1409 = vand.u32 %v1382, 2147483648
        %v1410 = vor.u32 1.1754944e-38, %v1409
        %v1411 = vsel %vm1408, %v1410, %v1406
        %v1412 = vmul.f32 %v1376, %v1411
        %1413 = vrot.lane.b32.xlu0 %v856, 40
        %v1414 = vpop.permute.xlu0 %1413
        %1415 = vrot.lane.b32.xlu0 %v859, 40
        %v1416 = vpop.permute.xlu0 %1415
        %v1420 = vsel %vm909, %v1397, 0
        %v1423 = vsel %vm909, %v1412, 0
        %1425 = vmatpush.msra.mxu0 0.0
        %1426 = vmatpush.msra.mxu0 0.0
        %1427 = vmatpush.msra.mxu0 0.0
        %1428 = vmatpush.msra.mxu0 0.0
        %1429 = vmatpush.msra.mxu0 0.0
        %1430 = vmatpush.msra.mxu0 0.0
        %1431 = vmatpush.msra.mxu0 0.0
        %1432 = vmatpush.msra.mxu0 0.0
        %1433 = vmatpush.msra.mxu0 0.0
        %1434 = vmatpush.msra.mxu0 0.0
        %1435 = vmatpush.msra.mxu0 0.0
        %1436 = vmatpush.msra.mxu0 0.0
        %1437 = vmatpush.msra.mxu0 0.0
        %1438 = vmatpush.msra.mxu0 0.0
        %1439 = vmatpush.msra.mxu0 %v1416
        %1440 = vmatpush.msra.mxu0 %v1414
        %1441 = vmatmul.f32.gmra.mxu0 %v1420
        %v1442 = vpop.f32.mrf.mxu0
        %v1443 = vadd.f32 0.0, %v1442
        %1444 = vmatmul.f32.gmra.mxu0 %v1423
        %v1445 = vpop.f32.mrf.mxu0
        %v1446 = vadd.f32 0.0, %v1445
        %1447 = vdwg.mxu0
        %v1449 = vsel %vm877, %v1443, 0
        %v1452 = vsel %vm877, %v1446, 0
        %1454 = vmatpush.msra.mxu0 0.0
        %1455 = vmatpush.msra.mxu0 0.0
        %1456 = vmatpush.msra.mxu0 0.0
        %1457 = vmatpush.msra.mxu0 0.0
        %1458 = vmatpush.msra.mxu0 0.0
        %1459 = vmatpush.msra.mxu0 0.0
        %1460 = vmatpush.msra.mxu0 0.0
        %1461 = vmatpush.msra.mxu0 0.0
        %1462 = vmatpush.msra.mxu0 0.0
        %1463 = vmatpush.msra.mxu0 0.0
        %1464 = vmatpush.msra.mxu0 0.0
        %1465 = vmatpush.msra.mxu0 0.0
        %1466 = vmatpush.msra.mxu0 0.0
        %1467 = vmatpush.msra.mxu0 0.0
        %1468 = vmatpush.msra.mxu0 0.0
        %1469 = vmatpush.msra.mxu0 %v870
        %1470 = vmatmul.f32.gmra.mxu0 %v1449
        %v1471 = vpop.f32.mrf.mxu0
        %v1472 = vadd.f32 0.0, %v1471
        %1473 = vmatmul.f32.gmra.mxu0 %v1452
        %v1474 = vpop.f32.mrf.mxu0
        %v1475 = vadd.f32 0.0, %v1474
        %1476 = vdwg.mxu0
        %v1477 = vadd.f32 %v1324, %v1472
        %v1478 = vadd.f32 %v1325, %v1475
        %1479 = vst.msk [vmem:[#allocation2] sm:$0xff] %vm825, %v1477
        %1480 = vst.msk [vmem:[#allocation2 + $0x8] sm:$0xff] %vm825, %v1478
        %1483 = vrot.lane.b32.xlu0 %v862, 96
        %v1484 = vpop.permute.xlu0 %1483
        %1485 = vrot.lane.b32.xlu0 %v865, 96
        %v1486 = vpop.permute.xlu0 %1485
        %v1487 = vsel %vm877, %v862, 0
        %v1489 = vsel %vm877, %v865, 0
        %v1491 = vsel %vm877, %v1484, 0
        %v1493 = vsel %vm877, %v1486, 0
        %1495 = vmatpush.xpose.msra.mxu0 0.0
        %1496 = vmatpush.xpose.msra.mxu0 0.0
        %1497 = vmatpush.xpose.msra.mxu0 0.0
        %1498 = vmatpush.xpose.msra.mxu0 0.0
        %1499 = vmatpush.xpose.msra.mxu0 0.0
        %1500 = vmatpush.xpose.msra.mxu0 0.0
        %1501 = vmatpush.xpose.msra.mxu0 0.0
        %1502 = vmatpush.xpose.msra.mxu0 0.0
        %1503 = vmatpush.xpose.msra.mxu0 0.0
        %1504 = vmatpush.xpose.msra.mxu0 0.0
        %1505 = vmatpush.xpose.msra.mxu0 0.0
        %1506 = vmatpush.xpose.msra.mxu0 0.0
        %1507 = vmatpush.xpose.msra.mxu0 0.0
        %1508 = vmatpush.xpose.msra.mxu0 0.0
        %1509 = vmatpush.xpose.msra.mxu0 %v1493
        %1510 = vmatpush.xpose.msra.mxu0 %v1491
        %1511 = vmatmul.f32.gmra.mxu0 %v1487
        %v1512 = vpop.f32.mrf.mxu0
        %v1513 = vadd.f32 0.0, %v1512
        %1514 = vmatmul.f32.gmra.mxu0 %v1489
        %v1515 = vpop.f32.mrf.mxu0
        %v1516 = vadd.f32 0.0, %v1515
        %1517 = vdwg.mxu0
        %v1518 = vsel %vm909, %v1513, -inf
        %1519 = vmax.xlane.f32.xlu0 %v1518
        %v1520 = vpop.xlane.xlu0 %1519
        %v1521 = vsel %vm909, %v1516, -inf
        %1522 = vmax.xlane.f32.xlu0 %v1521
        %v1523 = vpop.xlane.xlu0 %1522
        %v1524 = vsub.f32 %v1513, %v1520
        %v1525 = vsub.f32 %v1516, %v1523
        %v1526 = vmul.f32 %v1524, 1.442695
        %v1527 = vpow.pop %v1526
        %v1528 = vmul.f32 %v1525, 1.442695
        %v1529 = vpow.pop %v1528
        %v1530 = vsel %vm909, %v1527, 0.0
        %1531 = vadd.xlane.f32.xlu0 %v1530
        %v1532 = vpop.xlane.xlu0 %1531
        %v1533 = vsel %vm909, %v1529, 0.0
        %1534 = vadd.xlane.f32.xlu0 %v1533
        %v1535 = vpop.xlane.xlu0 %1534
        %v1536 = vrcp.pop %v1532
        %v1537 = vmul.f32 %v1532, %v1536
        %v1538 = vsub.f32 1.0, %v1537
        %v1539 = vmul.f32 %v1536, %v1538
        %v1540 = vadd.f32 %v1536, %v1539
        %vm1541 = vweird.f32 %v1532
        %vm1542 = vweird.f32 %v1536
        %vm1543 = vmor %vm1541, %vm1542
        %v1544 = vsel %vm1543, %v1536, %v1540
        %v1545 = vand.u32 2147483647, %v1532
        %vm1546 = vcmp.eq.f32.partialorder %v1545, 8.507059e+37
        %v1547 = vand.u32 %v1532, 2147483648
        %v1548 = vor.u32 1.1754944e-38, %v1547
        %v1549 = vsel %vm1546, %v1548, %v1544
        %v1550 = vmul.f32 %v1527, %v1549
        %v1551 = vrcp.pop %v1535
        %v1552 = vmul.f32 %v1535, %v1551
        %v1553 = vsub.f32 1.0, %v1552
        %v1554 = vmul.f32 %v1551, %v1553
        %v1555 = vadd.f32 %v1551, %v1554
        %vm1556 = vweird.f32 %v1535
        %vm1557 = vweird.f32 %v1551
        %vm1558 = vmor %vm1556, %vm1557
        %v1559 = vsel %vm1558, %v1551, %v1555
        %v1560 = vand.u32 2147483647, %v1535
        %vm1561 = vcmp.eq.f32.partialorder %v1560, 8.507059e+37
        %v1562 = vand.u32 %v1535, 2147483648
        %v1563 = vor.u32 1.1754944e-38, %v1562
        %v1564 = vsel %vm1561, %v1563, %v1559
        %v1565 = vmul.f32 %v1529, %v1564
        %1566 = vrot.lane.b32.xlu0 %v862, 64
        %v1567 = vpop.permute.xlu0 %1566
        %1568 = vrot.lane.b32.xlu0 %v865, 64
        %v1569 = vpop.permute.xlu0 %1568
        %v1573 = vsel %vm909, %v1550, 0
        %v1576 = vsel %vm909, %v1565, 0
        %1578 = vmatpush.msra.mxu0 0.0
        %1579 = vmatpush.msra.mxu0 0.0
        %1580 = vmatpush.msra.mxu0 0.0
        %1581 = vmatpush.msra.mxu0 0.0
        %1582 = vmatpush.msra.mxu0 0.0
        %1583 = vmatpush.msra.mxu0 0.0
        %1584 = vmatpush.msra.mxu0 0.0
        %1585 = vmatpush.msra.mxu0 0.0
        %1586 = vmatpush.msra.mxu0 0.0
        %1587 = vmatpush.msra.mxu0 0.0
        %1588 = vmatpush.msra.mxu0 0.0
        %1589 = vmatpush.msra.mxu0 0.0
        %1590 = vmatpush.msra.mxu0 0.0
        %1591 = vmatpush.msra.mxu0 0.0
        %1592 = vmatpush.msra.mxu0 %v1569
        %1593 = vmatpush.msra.mxu0 %v1567
        %1594 = vmatmul.f32.gmra.mxu0 %v1573
        %v1595 = vpop.f32.mrf.mxu0
        %v1596 = vadd.f32 0.0, %v1595
        %1597 = vmatmul.f32.gmra.mxu0 %v1576
        %v1598 = vpop.f32.mrf.mxu0
        %v1599 = vadd.f32 0.0, %v1598
        %1600 = vdwg.mxu0
        %1601 = vrot.lane.b32.xlu0 %v862, 120
        %v1602 = vpop.permute.xlu0 %1601
        %1603 = vrot.lane.b32.xlu0 %v865, 120
        %v1604 = vpop.permute.xlu0 %1603
        %1605 = vrot.lane.b32.xlu0 %v862, 88
        %v1606 = vpop.permute.xlu0 %1605
        %1607 = vrot.lane.b32.xlu0 %v865, 88
        %v1608 = vpop.permute.xlu0 %1607
        %v1609 = vsel %vm877, %v1602, 0
        %v1611 = vsel %vm877, %v1604, 0
        %v1613 = vsel %vm877, %v1606, 0
        %v1615 = vsel %vm877, %v1608, 0
        %1617 = vmatpush.xpose.msra.mxu0 0.0
        %1618 = vmatpush.xpose.msra.mxu0 0.0
        %1619 = vmatpush.xpose.msra.mxu0 0.0
        %1620 = vmatpush.xpose.msra.mxu0 0.0
        %1621 = vmatpush.xpose.msra.mxu0 0.0
        %1622 = vmatpush.xpose.msra.mxu0 0.0
        %1623 = vmatpush.xpose.msra.mxu0 0.0
        %1624 = vmatpush.xpose.msra.mxu0 0.0
        %1625 = vmatpush.xpose.msra.mxu0 0.0
        %1626 = vmatpush.xpose.msra.mxu0 0.0
        %1627 = vmatpush.xpose.msra.mxu0 0.0
        %1628 = vmatpush.xpose.msra.mxu0 0.0
        %1629 = vmatpush.xpose.msra.mxu0 0.0
        %1630 = vmatpush.xpose.msra.mxu0 0.0
        %1631 = vmatpush.xpose.msra.mxu0 %v1615
        %1632 = vmatpush.xpose.msra.mxu0 %v1613
        %1633 = vmatmul.f32.gmra.mxu0 %v1609
        %v1634 = vpop.f32.mrf.mxu0
        %v1635 = vadd.f32 0.0, %v1634
        %1636 = vmatmul.f32.gmra.mxu0 %v1611
        %v1637 = vpop.f32.mrf.mxu0
        %v1638 = vadd.f32 0.0, %v1637
        %1639 = vdwg.mxu0
        %v1640 = vsel %vm909, %v1635, -inf
        %1641 = vmax.xlane.f32.xlu0 %v1640
        %v1642 = vpop.xlane.xlu0 %1641
        %v1643 = vsel %vm909, %v1638, -inf
        %1644 = vmax.xlane.f32.xlu0 %v1643
        %v1645 = vpop.xlane.xlu0 %1644
        %v1646 = vsub.f32 %v1635, %v1642
        %v1647 = vsub.f32 %v1638, %v1645
        %v1648 = vmul.f32 %v1646, 1.442695
        %v1649 = vpow.pop %v1648
        %v1650 = vmul.f32 %v1647, 1.442695
        %v1651 = vpow.pop %v1650
        %v1652 = vsel %vm909, %v1649, 0.0
        %1653 = vadd.xlane.f32.xlu0 %v1652
        %v1654 = vpop.xlane.xlu0 %1653
        %v1655 = vsel %vm909, %v1651, 0.0
        %1656 = vadd.xlane.f32.xlu0 %v1655
        %v1657 = vpop.xlane.xlu0 %1656
        %v1658 = vrcp.pop %v1654
        %v1659 = vmul.f32 %v1654, %v1658
        %v1660 = vsub.f32 1.0, %v1659
        %v1661 = vmul.f32 %v1658, %v1660
        %v1662 = vadd.f32 %v1658, %v1661
        %vm1663 = vweird.f32 %v1654
        %vm1664 = vweird.f32 %v1658
        %vm1665 = vmor %vm1663, %vm1664
        %v1666 = vsel %vm1665, %v1658, %v1662
        %v1667 = vand.u32 2147483647, %v1654
        %vm1668 = vcmp.eq.f32.partialorder %v1667, 8.507059e+37
        %v1669 = vand.u32 %v1654, 2147483648
        %v1670 = vor.u32 1.1754944e-38, %v1669
        %v1671 = vsel %vm1668, %v1670, %v1666
        %v1672 = vmul.f32 %v1649, %v1671
        %v1673 = vrcp.pop %v1657
        %v1674 = vmul.f32 %v1657, %v1673
        %v1675 = vsub.f32 1.0, %v1674
        %v1676 = vmul.f32 %v1673, %v1675
        %v1677 = vadd.f32 %v1673, %v1676
        %vm1678 = vweird.f32 %v1657
        %vm1679 = vweird.f32 %v1673
        %vm1680 = vmor %vm1678, %vm1679
        %v1681 = vsel %vm1680, %v1673, %v1677
        %v1682 = vand.u32 2147483647, %v1657
        %vm1683 = vcmp.eq.f32.partialorder %v1682, 8.507059e+37
        %v1684 = vand.u32 %v1657, 2147483648
        %v1685 = vor.u32 1.1754944e-38, %v1684
        %v1686 = vsel %vm1683, %v1685, %v1681
        %v1687 = vmul.f32 %v1651, %v1686
        %1688 = vrot.lane.b32.xlu0 %v862, 56
        %v1689 = vpop.permute.xlu0 %1688
        %1690 = vrot.lane.b32.xlu0 %v865, 56
        %v1691 = vpop.permute.xlu0 %1690
        %v1695 = vsel %vm909, %v1672, 0
        %v1698 = vsel %vm909, %v1687, 0
        %1700 = vmatpush.msra.mxu0 0.0
        %1701 = vmatpush.msra.mxu0 0.0
        %1702 = vmatpush.msra.mxu0 0.0
        %1703 = vmatpush.msra.mxu0 0.0
        %1704 = vmatpush.msra.mxu0 0.0
        %1705 = vmatpush.msra.mxu0 0.0
        %1706 = vmatpush.msra.mxu0 0.0
        %1707 = vmatpush.msra.mxu0 0.0
        %1708 = vmatpush.msra.mxu0 0.0
        %1709 = vmatpush.msra.mxu0 0.0
        %1710 = vmatpush.msra.mxu0 0.0
        %1711 = vmatpush.msra.mxu0 0.0
        %1712 = vmatpush.msra.mxu0 0.0
        %1713 = vmatpush.msra.mxu0 0.0
        %1714 = vmatpush.msra.mxu0 %v1691
        %1715 = vmatpush.msra.mxu0 %v1689
        %1716 = vmatmul.f32.gmra.mxu0 %v1695
        %v1717 = vpop.f32.mrf.mxu0
        %v1718 = vadd.f32 0.0, %v1717
        %1719 = vmatmul.f32.gmra.mxu0 %v1698
        %v1720 = vpop.f32.mrf.mxu0
        %v1721 = vadd.f32 0.0, %v1720
        %1722 = vdwg.mxu0
        %v1724 = vsel %vm877, %v1718, 0
        %v1727 = vsel %vm877, %v1721, 0
        %1729 = vmatpush.msra.mxu0 0.0
        %1730 = vmatpush.msra.mxu0 0.0
        %1731 = vmatpush.msra.mxu0 0.0
        %1732 = vmatpush.msra.mxu0 0.0
        %1733 = vmatpush.msra.mxu0 0.0
        %1734 = vmatpush.msra.mxu0 0.0
        %1735 = vmatpush.msra.mxu0 0.0
        %1736 = vmatpush.msra.mxu0 0.0
        %1737 = vmatpush.msra.mxu0 0.0
        %1738 = vmatpush.msra.mxu0 0.0
        %1739 = vmatpush.msra.mxu0 0.0
        %1740 = vmatpush.msra.mxu0 0.0
        %1741 = vmatpush.msra.mxu0 0.0
        %1742 = vmatpush.msra.mxu0 0.0
        %1743 = vmatpush.msra.mxu0 0.0
        %1744 = vmatpush.msra.mxu0 %v868
        %1745 = vmatmul.f32.gmra.mxu0 %v1724
        %v1746 = vpop.f32.mrf.mxu0
        %v1747 = vadd.f32 0.0, %v1746
        %1748 = vmatmul.f32.gmra.mxu0 %v1727
        %v1749 = vpop.f32.mrf.mxu0
        %v1750 = vadd.f32 0.0, %v1749
        %1751 = vdwg.mxu0
        %v1753 = vsel %vm877, %v1596, 0
        %v1756 = vsel %vm877, %v1599, 0
        %1758 = vmatpush.msra.mxu0 0.0
        %1759 = vmatpush.msra.mxu0 0.0
        %1760 = vmatpush.msra.mxu0 0.0
        %1761 = vmatpush.msra.mxu0 0.0
        %1762 = vmatpush.msra.mxu0 0.0
        %1763 = vmatpush.msra.mxu0 0.0
        %1764 = vmatpush.msra.mxu0 0.0
        %1765 = vmatpush.msra.mxu0 0.0
        %1766 = vmatpush.msra.mxu0 0.0
        %1767 = vmatpush.msra.mxu0 0.0
        %1768 = vmatpush.msra.mxu0 0.0
        %1769 = vmatpush.msra.mxu0 0.0
        %1770 = vmatpush.msra.mxu0 0.0
        %1771 = vmatpush.msra.mxu0 0.0
        %1772 = vmatpush.msra.mxu0 0.0
        %1773 = vmatpush.msra.mxu0 %v867
        %1774 = vmatmul.f32.gmra.mxu0 %v1753
        %v1775 = vpop.f32.mrf.mxu0
        %v1776 = vadd.f32 %v1747, %v1775
        %1777 = vmatmul.f32.gmra.mxu0 %v1756
        %v1778 = vpop.f32.mrf.mxu0
        %v1779 = vadd.f32 %v1750, %v1778
        %1780 = vdwg.mxu0
        %1781 = vrot.lane.b32.xlu0 %v862, 112
        %v1782 = vpop.permute.xlu0 %1781
        %1783 = vrot.lane.b32.xlu0 %v865, 112
        %v1784 = vpop.permute.xlu0 %1783
        %1785 = vrot.lane.b32.xlu0 %v862, 80
        %v1786 = vpop.permute.xlu0 %1785
        %1787 = vrot.lane.b32.xlu0 %v865, 80
        %v1788 = vpop.permute.xlu0 %1787
        %v1789 = vsel %vm877, %v1782, 0
        %v1791 = vsel %vm877, %v1784, 0
        %v1793 = vsel %vm877, %v1786, 0
        %v1795 = vsel %vm877, %v1788, 0
        %1797 = vmatpush.xpose.msra.mxu0 0.0
        %1798 = vmatpush.xpose.msra.mxu0 0.0
        %1799 = vmatpush.xpose.msra.mxu0 0.0
        %1800 = vmatpush.xpose.msra.mxu0 0.0
        %1801 = vmatpush.xpose.msra.mxu0 0.0
        %1802 = vmatpush.xpose.msra.mxu0 0.0
        %1803 = vmatpush.xpose.msra.mxu0 0.0
        %1804 = vmatpush.xpose.msra.mxu0 0.0
        %1805 = vmatpush.xpose.msra.mxu0 0.0
        %1806 = vmatpush.xpose.msra.mxu0 0.0
        %1807 = vmatpush.xpose.msra.mxu0 0.0
        %1808 = vmatpush.xpose.msra.mxu0 0.0
        %1809 = vmatpush.xpose.msra.mxu0 0.0
        %1810 = vmatpush.xpose.msra.mxu0 0.0
        %1811 = vmatpush.xpose.msra.mxu0 %v1795
        %1812 = vmatpush.xpose.msra.mxu0 %v1793
        %1813 = vmatmul.f32.gmra.mxu0 %v1789
        %v1814 = vpop.f32.mrf.mxu0
        %v1815 = vadd.f32 0.0, %v1814
        %1816 = vmatmul.f32.gmra.mxu0 %v1791
        %v1817 = vpop.f32.mrf.mxu0
        %v1818 = vadd.f32 0.0, %v1817
        %1819 = vdwg.mxu0
        %v1820 = vsel %vm909, %v1815, -inf
        %1821 = vmax.xlane.f32.xlu0 %v1820
        %v1822 = vpop.xlane.xlu0 %1821
        %v1823 = vsel %vm909, %v1818, -inf
        %1824 = vmax.xlane.f32.xlu0 %v1823
        %v1825 = vpop.xlane.xlu0 %1824
        %v1826 = vsub.f32 %v1815, %v1822
        %v1827 = vsub.f32 %v1818, %v1825
        %v1828 = vmul.f32 %v1826, 1.442695
        %v1829 = vpow.pop %v1828
        %v1830 = vmul.f32 %v1827, 1.442695
        %v1831 = vpow.pop %v1830
        %v1832 = vsel %vm909, %v1829, 0.0
        %1833 = vadd.xlane.f32.xlu0 %v1832
        %v1834 = vpop.xlane.xlu0 %1833
        %v1835 = vsel %vm909, %v1831, 0.0
        %1836 = vadd.xlane.f32.xlu0 %v1835
        %v1837 = vpop.xlane.xlu0 %1836
        %v1838 = vrcp.pop %v1834
        %v1839 = vmul.f32 %v1834, %v1838
        %v1840 = vsub.f32 1.0, %v1839
        %v1841 = vmul.f32 %v1838, %v1840
        %v1842 = vadd.f32 %v1838, %v1841
        %vm1843 = vweird.f32 %v1834
        %vm1844 = vweird.f32 %v1838
        %vm1845 = vmor %vm1843, %vm1844
        %v1846 = vsel %vm1845, %v1838, %v1842
        %v1847 = vand.u32 2147483647, %v1834
        %vm1848 = vcmp.eq.f32.partialorder %v1847, 8.507059e+37
        %v1849 = vand.u32 %v1834, 2147483648
        %v1850 = vor.u32 1.1754944e-38, %v1849
        %v1851 = vsel %vm1848, %v1850, %v1846
        %v1852 = vmul.f32 %v1829, %v1851
        %v1853 = vrcp.pop %v1837
        %v1854 = vmul.f32 %v1837, %v1853
        %v1855 = vsub.f32 1.0, %v1854
        %v1856 = vmul.f32 %v1853, %v1855
        %v1857 = vadd.f32 %v1853, %v1856
        %vm1858 = vweird.f32 %v1837
        %vm1859 = vweird.f32 %v1853
        %vm1860 = vmor %vm1858, %vm1859
        %v1861 = vsel %vm1860, %v1853, %v1857
        %v1862 = vand.u32 2147483647, %v1837
        %vm1863 = vcmp.eq.f32.partialorder %v1862, 8.507059e+37
        %v1864 = vand.u32 %v1837, 2147483648
        %v1865 = vor.u32 1.1754944e-38, %v1864
        %v1866 = vsel %vm1863, %v1865, %v1861
        %v1867 = vmul.f32 %v1831, %v1866
        %1868 = vrot.lane.b32.xlu0 %v862, 48
        %v1869 = vpop.permute.xlu0 %1868
        %1870 = vrot.lane.b32.xlu0 %v865, 48
        %v1871 = vpop.permute.xlu0 %1870
        %v1875 = vsel %vm909, %v1852, 0
        %v1878 = vsel %vm909, %v1867, 0
        %1880 = vmatpush.msra.mxu0 0.0
        %1881 = vmatpush.msra.mxu0 0.0
        %1882 = vmatpush.msra.mxu0 0.0
        %1883 = vmatpush.msra.mxu0 0.0
        %1884 = vmatpush.msra.mxu0 0.0
        %1885 = vmatpush.msra.mxu0 0.0
        %1886 = vmatpush.msra.mxu0 0.0
        %1887 = vmatpush.msra.mxu0 0.0
        %1888 = vmatpush.msra.mxu0 0.0
        %1889 = vmatpush.msra.mxu0 0.0
        %1890 = vmatpush.msra.mxu0 0.0
        %1891 = vmatpush.msra.mxu0 0.0
        %1892 = vmatpush.msra.mxu0 0.0
        %1893 = vmatpush.msra.mxu0 0.0
        %1894 = vmatpush.msra.mxu0 %v1871
        %1895 = vmatpush.msra.mxu0 %v1869
        %1896 = vmatmul.f32.gmra.mxu0 %v1875
        %v1897 = vpop.f32.mrf.mxu0
        %v1898 = vadd.f32 0.0, %v1897
        %1899 = vmatmul.f32.gmra.mxu0 %v1878
        %v1900 = vpop.f32.mrf.mxu0
        %v1901 = vadd.f32 0.0, %v1900
        %1902 = vdwg.mxu0
        %v1904 = vsel %vm877, %v1898, 0
        %v1907 = vsel %vm877, %v1901, 0
        %1909 = vmatpush.msra.mxu0 0.0
        %1910 = vmatpush.msra.mxu0 0.0
        %1911 = vmatpush.msra.mxu0 0.0
        %1912 = vmatpush.msra.mxu0 0.0
        %1913 = vmatpush.msra.mxu0 0.0
        %1914 = vmatpush.msra.mxu0 0.0
        %1915 = vmatpush.msra.mxu0 0.0
        %1916 = vmatpush.msra.mxu0 0.0
        %1917 = vmatpush.msra.mxu0 0.0
        %1918 = vmatpush.msra.mxu0 0.0
        %1919 = vmatpush.msra.mxu0 0.0
        %1920 = vmatpush.msra.mxu0 0.0
        %1921 = vmatpush.msra.mxu0 0.0
        %1922 = vmatpush.msra.mxu0 0.0
        %1923 = vmatpush.msra.mxu0 0.0
        %1924 = vmatpush.msra.mxu0 %v869
        %1925 = vmatmul.f32.gmra.mxu0 %v1904
        %v1926 = vpop.f32.mrf.mxu0
        %v1927 = vadd.f32 0.0, %v1926
        %1928 = vmatmul.f32.gmra.mxu0 %v1907
        %v1929 = vpop.f32.mrf.mxu0
        %v1930 = vadd.f32 0.0, %v1929
        %1931 = vdwg.mxu0
        %v1932 = vadd.f32 %v1776, %v1927
        %v1933 = vadd.f32 %v1779, %v1930
        %1934 = vrot.lane.b32.xlu0 %v862, 104
        %v1935 = vpop.permute.xlu0 %1934
        %1936 = vrot.lane.b32.xlu0 %v865, 104
        %v1937 = vpop.permute.xlu0 %1936
        %1938 = vrot.lane.b32.xlu0 %v862, 72
        %v1939 = vpop.permute.xlu0 %1938
        %1940 = vrot.lane.b32.xlu0 %v865, 72
        %v1941 = vpop.permute.xlu0 %1940
        %v1942 = vsel %vm877, %v1935, 0
        %v1944 = vsel %vm877, %v1937, 0
        %v1946 = vsel %vm877, %v1939, 0
        %v1948 = vsel %vm877, %v1941, 0
        %1950 = vmatpush.xpose.msra.mxu0 0.0
        %1951 = vmatpush.xpose.msra.mxu0 0.0
        %1952 = vmatpush.xpose.msra.mxu0 0.0
        %1953 = vmatpush.xpose.msra.mxu0 0.0
        %1954 = vmatpush.xpose.msra.mxu0 0.0
        %1955 = vmatpush.xpose.msra.mxu0 0.0
        %1956 = vmatpush.xpose.msra.mxu0 0.0
        %1957 = vmatpush.xpose.msra.mxu0 0.0
        %1958 = vmatpush.xpose.msra.mxu0 0.0
        %1959 = vmatpush.xpose.msra.mxu0 0.0
        %1960 = vmatpush.xpose.msra.mxu0 0.0
        %1961 = vmatpush.xpose.msra.mxu0 0.0
        %1962 = vmatpush.xpose.msra.mxu0 0.0
        %1963 = vmatpush.xpose.msra.mxu0 0.0
        %1964 = vmatpush.xpose.msra.mxu0 %v1948
        %1965 = vmatpush.xpose.msra.mxu0 %v1946
        %1966 = vmatmul.f32.gmra.mxu0 %v1942
        %v1967 = vpop.f32.mrf.mxu0
        %v1968 = vadd.f32 0.0, %v1967
        %1969 = vmatmul.f32.gmra.mxu0 %v1944
        %v1970 = vpop.f32.mrf.mxu0
        %v1971 = vadd.f32 0.0, %v1970
        %1972 = vdwg.mxu0
        %v1973 = vsel %vm909, %v1968, -inf
        %1974 = vmax.xlane.f32.xlu0 %v1973
        %v1975 = vpop.xlane.xlu0 %1974
        %v1976 = vsel %vm909, %v1971, -inf
        %1977 = vmax.xlane.f32.xlu0 %v1976
        %v1978 = vpop.xlane.xlu0 %1977
        %v1979 = vsub.f32 %v1968, %v1975
        %v1980 = vsub.f32 %v1971, %v1978
        %v1981 = vmul.f32 %v1979, 1.442695
        %v1982 = vpow.pop %v1981
        %v1983 = vmul.f32 %v1980, 1.442695
        %v1984 = vpow.pop %v1983
        %v1985 = vsel %vm909, %v1982, 0.0
        %1986 = vadd.xlane.f32.xlu0 %v1985
        %v1987 = vpop.xlane.xlu0 %1986
        %v1988 = vsel %vm909, %v1984, 0.0
        %1989 = vadd.xlane.f32.xlu0 %v1988
        %v1990 = vpop.xlane.xlu0 %1989
        %v1991 = vrcp.pop %v1987
        %v1992 = vmul.f32 %v1987, %v1991
        %v1993 = vsub.f32 1.0, %v1992
        %v1994 = vmul.f32 %v1991, %v1993
        %v1995 = vadd.f32 %v1991, %v1994
        %vm1996 = vweird.f32 %v1987
        %vm1997 = vweird.f32 %v1991
        %vm1998 = vmor %vm1996, %vm1997
        %v1999 = vsel %vm1998, %v1991, %v1995
        %v2000 = vand.u32 2147483647, %v1987
        %vm2001 = vcmp.eq.f32.partialorder %v2000, 8.507059e+37
        %v2002 = vand.u32 %v1987, 2147483648
        %v2003 = vor.u32 1.1754944e-38, %v2002
        %v2004 = vsel %vm2001, %v2003, %v1999
        %v2005 = vmul.f32 %v1982, %v2004
        %v2006 = vrcp.pop %v1990
        %v2007 = vmul.f32 %v1990, %v2006
        %v2008 = vsub.f32 1.0, %v2007
        %v2009 = vmul.f32 %v2006, %v2008
        %v2010 = vadd.f32 %v2006, %v2009
        %vm2011 = vweird.f32 %v1990
        %vm2012 = vweird.f32 %v2006
        %vm2013 = vmor %vm2011, %vm2012
        %v2014 = vsel %vm2013, %v2006, %v2010
        %v2015 = vand.u32 2147483647, %v1990
        %vm2016 = vcmp.eq.f32.partialorder %v2015, 8.507059e+37
        %v2017 = vand.u32 %v1990, 2147483648
        %v2018 = vor.u32 1.1754944e-38, %v2017
        %v2019 = vsel %vm2016, %v2018, %v2014
        %v2020 = vmul.f32 %v1984, %v2019
        %2021 = vrot.lane.b32.xlu0 %v862, 40
        %v2022 = vpop.permute.xlu0 %2021
        %2023 = vrot.lane.b32.xlu0 %v865, 40
        %v2024 = vpop.permute.xlu0 %2023
        %v2028 = vsel %vm909, %v2005, 0
        %v2031 = vsel %vm909, %v2020, 0
        %2033 = vmatpush.msra.mxu0 0.0
        %2034 = vmatpush.msra.mxu0 0.0
        %2035 = vmatpush.msra.mxu0 0.0
        %2036 = vmatpush.msra.mxu0 0.0
        %2037 = vmatpush.msra.mxu0 0.0
        %2038 = vmatpush.msra.mxu0 0.0
        %2039 = vmatpush.msra.mxu0 0.0
        %2040 = vmatpush.msra.mxu0 0.0
        %2041 = vmatpush.msra.mxu0 0.0
        %2042 = vmatpush.msra.mxu0 0.0
        %2043 = vmatpush.msra.mxu0 0.0
        %2044 = vmatpush.msra.mxu0 0.0
        %2045 = vmatpush.msra.mxu0 0.0
        %2046 = vmatpush.msra.mxu0 0.0
        %2047 = vmatpush.msra.mxu0 %v2024
        %2048 = vmatpush.msra.mxu0 %v2022
        %2049 = vmatmul.f32.gmra.mxu0 %v2028
        %v2050 = vpop.f32.mrf.mxu0
        %v2051 = vadd.f32 0.0, %v2050
        %2052 = vmatmul.f32.gmra.mxu0 %v2031
        %v2053 = vpop.f32.mrf.mxu0
        %v2054 = vadd.f32 0.0, %v2053
        %2055 = vdwg.mxu0
        %v2057 = vsel %vm877, %v2051, 0
        %v2060 = vsel %vm877, %v2054, 0
        %2062 = vmatpush.msra.mxu0 0.0
        %2063 = vmatpush.msra.mxu0 0.0
        %2064 = vmatpush.msra.mxu0 0.0
        %2065 = vmatpush.msra.mxu0 0.0
        %2066 = vmatpush.msra.mxu0 0.0
        %2067 = vmatpush.msra.mxu0 0.0
        %2068 = vmatpush.msra.mxu0 0.0
        %2069 = vmatpush.msra.mxu0 0.0
        %2070 = vmatpush.msra.mxu0 0.0
        %2071 = vmatpush.msra.mxu0 0.0
        %2072 = vmatpush.msra.mxu0 0.0
        %2073 = vmatpush.msra.mxu0 0.0
        %2074 = vmatpush.msra.mxu0 0.0
        %2075 = vmatpush.msra.mxu0 0.0
        %2076 = vmatpush.msra.mxu0 0.0
        %2077 = vmatpush.msra.mxu0 %v870
        %2078 = vmatmul.f32.gmra.mxu0 %v2057
        %v2079 = vpop.f32.mrf.mxu0
        %v2080 = vadd.f32 0.0, %v2079
        %2081 = vmatmul.f32.gmra.mxu0 %v2060
        %v2082 = vpop.f32.mrf.mxu0
        %v2083 = vadd.f32 0.0, %v2082
        %2084 = vdwg.mxu0
        %v2085 = vadd.f32 %v1932, %v2080
        %v2086 = vadd.f32 %v1933, %v2083
        %2087 = vst.msk [vmem:[#allocation2 + $0x10] sm:$0xff] %vm825, %v2085
        %2088 = vst.msk [vmem:[#allocation2 + $0x18] sm:$0xff] %vm825, %v2086
        %v2089 = vld [vmem:[#allocation2] sm:$0xff]
        %v2090 = vld [vmem:[#allocation2 + $0x8] sm:$0xff]
        %v2091 = vld [vmem:[#allocation2 + $0x10] sm:$0xff]
        %v2092 = vld [vmem:[#allocation2 + $0x18] sm:$0xff]
        %v2093 = vld [vmem:[%s652] sm:$0x1]
        %v2095 = vperm.slane %v2093, 0
        %v2097 = vadd.f32 %v2089, %v2095
        %v2098 = vadd.f32 %v2090, %v2095
        %v2099 = vadd.f32 %v2091, %v2095
        %v2100 = vadd.f32 %v2092, %v2095
        %v2101 = vadd.f32 %v813, %v2097
        %v2102 = vadd.f32 %v814, %v2098
        %v2103 = vadd.f32 %v815, %v2099
        %v2104 = vadd.f32 %v816, %v2100
        %v2105 = vld [vmem:[%s661] sm:$0x1]
        %v2106 = vld [vmem:[%s670] sm:$0x1]
        %v2107 = vsel %vm825, %v2101, 0.0
        %2108 = vadd.xlane.f32.xlu0 %v2107
        %v2109 = vpop.xlane.xlu0 %2108
        %v2110 = vsel %vm825, %v2102, 0.0
        %2111 = vadd.xlane.f32.xlu0 %v2110
        %v2112 = vpop.xlane.xlu0 %2111
        %v2113 = vsel %vm825, %v2103, 0.0
        %2114 = vadd.xlane.f32.xlu0 %v2113
        %v2115 = vpop.xlane.xlu0 %2114
        %v2116 = vsel %vm825, %v2104, 0.0
        %2117 = vadd.xlane.f32.xlu0 %v2116
        %v2118 = vpop.xlane.xlu0 %2117
        %v2119 = vrcp.pop 32.0
        %v2120 = vmul.f32 32.0, %v2119
        %v2121 = vsub.f32 1.0, %v2120
        %v2122 = vmul.f32 %v2119, %v2121
        %v2123 = vadd.f32 %v2119, %v2122
        %vm2124 = vweird.f32 %v2119
        %v2125 = vsel %vm2124, %v2119, %v2123
        %v2126 = vmul.f32 %v2109, %v2125
        %v2127 = vmul.f32 %v2112, %v2125
        %v2128 = vmul.f32 %v2115, %v2125
        %v2129 = vmul.f32 %v2118, %v2125
        %v2130 = vsub.f32 %v2101, %v2126
        %v2131 = vsub.f32 %v2102, %v2127
        %v2132 = vsub.f32 %v2103, %v2128
        %v2133 = vsub.f32 %v2104, %v2129
        %v2134 = vmul.f32 %v2130, %v2130
        %v2135 = vmul.f32 %v2131, %v2131
        %v2136 = vmul.f32 %v2132, %v2132
        %v2137 = vmul.f32 %v2133, %v2133
        %v2138 = vsel %vm825, %v2134, 0.0
        %2139 = vadd.xlane.f32.xlu0 %v2138
        %v2140 = vpop.xlane.xlu0 %2139
        %v2141 = vsel %vm825, %v2135, 0.0
        %2142 = vadd.xlane.f32.xlu0 %v2141
        %v2143 = vpop.xlane.xlu0 %2142
        %v2144 = vsel %vm825, %v2136, 0.0
        %2145 = vadd.xlane.f32.xlu0 %v2144
        %v2146 = vpop.xlane.xlu0 %2145
        %v2147 = vsel %vm825, %v2137, 0.0
        %2148 = vadd.xlane.f32.xlu0 %v2147
        %v2149 = vpop.xlane.xlu0 %2148
        %v2150 = vmul.f32 %v2140, %v2125
        %v2151 = vmul.f32 %v2143, %v2125
        %v2152 = vmul.f32 %v2146, %v2125
        %v2153 = vmul.f32 %v2149, %v2125
        %v2154 = vadd.f32 %v2150, 1e-05
        %v2155 = vadd.f32 %v2151, 1e-05
        %v2156 = vadd.f32 %v2152, 1e-05
        %v2157 = vadd.f32 %v2153, 1e-05
        %v2158 = vrsqrt.pop %v2154
        %v2159 = vmul.f32 %v2158, %v2154
        %v2160 = vmul.f32 %v2159, %v2158
        %v2161 = vmul.f32 0.5, %v2160
        %v2162 = vsub.f32 1.5, %v2161
        %v2163 = vmul.f32 %v2158, %v2162
        %vm2164 = vweird.f32 %v2154
        %vm2165 = vweird.f32 %v2158
        %vm2166 = vmor %vm2164, %vm2165
        %v2167 = vsel %vm2166, %v2158, %v2163
        %v2168 = vrsqrt.pop %v2155
        %v2169 = vmul.f32 %v2168, %v2155
        %v2170 = vmul.f32 %v2169, %v2168
        %v2171 = vmul.f32 0.5, %v2170
        %v2172 = vsub.f32 1.5, %v2171
        %v2173 = vmul.f32 %v2168, %v2172
        %vm2174 = vweird.f32 %v2155
        %vm2175 = vweird.f32 %v2168
        %vm2176 = vmor %vm2174, %vm2175
        %v2177 = vsel %vm2176, %v2168, %v2173
        %v2178 = vrsqrt.pop %v2156
        %v2179 = vmul.f32 %v2178, %v2156
        %v2180 = vmul.f32 %v2179, %v2178
        %v2181 = vmul.f32 0.5, %v2180
        %v2182 = vsub.f32 1.5, %v2181
        %v2183 = vmul.f32 %v2178, %v2182
        %vm2184 = vweird.f32 %v2156
        %vm2185 = vweird.f32 %v2178
        %vm2186 = vmor %vm2184, %vm2185
        %v2187 = vsel %vm2186, %v2178, %v2183
        %v2188 = vrsqrt.pop %v2157
        %v2189 = vmul.f32 %v2188, %v2157
        %v2190 = vmul.f32 %v2189, %v2188
        %v2191 = vmul.f32 0.5, %v2190
        %v2192 = vsub.f32 1.5, %v2191
        %v2193 = vmul.f32 %v2188, %v2192
        %vm2194 = vweird.f32 %v2157
        %vm2195 = vweird.f32 %v2188
        %vm2196 = vmor %vm2194, %vm2195
        %v2197 = vsel %vm2196, %v2188, %v2193
        %v2198 = vmul.f32 %v2130, %v2167
        %v2199 = vmul.f32 %v2131, %v2177
        %v2200 = vmul.f32 %v2132, %v2187
        %v2201 = vmul.f32 %v2133, %v2197
        %v2203 = vperm.slane %v2105, 0
        %v2205 = vmul.f32 %v2198, %v2203
        %v2206 = vmul.f32 %v2199, %v2203
        %v2207 = vmul.f32 %v2200, %v2203
        %v2208 = vmul.f32 %v2201, %v2203
        %v2210 = vperm.slane %v2106, 0
        %v2212 = vadd.f32 %v2205, %v2210
        %v2213 = vadd.f32 %v2206, %v2210
        %v2214 = vadd.f32 %v2207, %v2210
        %v2215 = vadd.f32 %v2208, %v2210
        %v2216 = vld [vmem:[%s680] sm:$0xff]
        %v2217 = vld [vmem:[%s680 + $0x8] sm:$0xff]
        %v2218 = vld [vmem:[%s680 + $0x10] sm:$0xff]
        %v2219 = vld [vmem:[%s680 + $0x18] sm:$0xff]
        %v2220 = vld [vmem:[%s689] sm:$0x1]
        %v2222 = vperm.slane %v2220, 0
        %v2225 = vsel %vm825, %v2212, 0
        %v2228 = vsel %vm825, %v2213, 0
        %v2231 = vsel %vm825, %v2214, 0
        %v2234 = vsel %vm825, %v2215, 0
        %2236 = vmatpush.msra.mxu0 0.0
        %2237 = vmatpush.msra.mxu0 0.0
        %2238 = vmatpush.msra.mxu0 0.0
        %2239 = vmatpush.msra.mxu0 0.0
        %2240 = vmatpush.msra.mxu0 0.0
        %2241 = vmatpush.msra.mxu0 0.0
        %2242 = vmatpush.msra.mxu0 0.0
        %2243 = vmatpush.msra.mxu0 0.0
        %2244 = vmatpush.msra.mxu0 0.0
        %2245 = vmatpush.msra.mxu0 0.0
        %2246 = vmatpush.msra.mxu0 0.0
        %2247 = vmatpush.msra.mxu0 0.0
        %2248 = vmatpush.msra.mxu0 %v2219
        %2249 = vmatpush.msra.mxu0 %v2218
        %2250 = vmatpush.msra.mxu0 %v2217
        %2251 = vmatpush.msra.mxu0 %v2216
        %2252 = vmatmul.f32.gmra.mxu0 %v2225
        %v2253 = vpop.f32.mrf.mxu0
        %v2254 = vadd.f32 %v2222, %v2253
        %2255 = vmatmul.f32.gmra.mxu0 %v2228
        %v2256 = vpop.f32.mrf.mxu0
        %v2257 = vadd.f32 %v2222, %v2256
        %2258 = vmatmul.f32.gmra.mxu0 %v2231
        %v2259 = vpop.f32.mrf.mxu0
        %v2260 = vadd.f32 %v2222, %v2259
        %2261 = vmatmul.f32.gmra.mxu0 %v2234
        %v2262 = vpop.f32.mrf.mxu0
        %v2263 = vadd.f32 %v2222, %v2262
        %2264 = vdwg.mxu0
        %v2265 = vmul.f32 %v2254, 0.5
        %v2266 = vmul.f32 %v2257, 0.5
        %v2267 = vmul.f32 %v2260, 0.5
        %v2268 = vmul.f32 %v2263, 0.5
        %v2269 = vmul.f32 %v2254, 0.70710677
        %v2270 = vmul.f32 %v2257, 0.70710677
        %v2271 = vmul.f32 %v2260, 0.70710677
        %v2272 = vmul.f32 %v2263, 0.70710677
        %vm2273 = vcmp.ge.f32.partialorder %v2269, 0.0
        %vm2274 = vcmp.ge.f32.partialorder %v2270, 0.0
        %vm2275 = vcmp.ge.f32.partialorder %v2271, 0.0
        %vm2276 = vcmp.ge.f32.partialorder %v2272, 0.0
        %v2277 = vsel %vm2273, 1.0, -1.0
        %v2278 = vsel %vm2274, 1.0, -1.0
        %v2279 = vsel %vm2275, 1.0, -1.0
        %v2280 = vsel %vm2276, 1.0, -1.0
        %v2281 = vand.u32 2147483647, %v2269
        %v2282 = vand.u32 2147483647, %v2270
        %v2283 = vand.u32 2147483647, %v2271
        %v2284 = vand.u32 2147483647, %v2272
        %v2285 = vmul.f32 %v2281, 0.3275911
        %v2286 = vmul.f32 %v2282, 0.3275911
        %v2287 = vmul.f32 %v2283, 0.3275911
        %v2288 = vmul.f32 %v2284, 0.3275911
        %v2289 = vadd.f32 %v2285, 1.0
        %v2290 = vadd.f32 %v2286, 1.0
        %v2291 = vadd.f32 %v2287, 1.0
        %v2292 = vadd.f32 %v2288, 1.0
        %v2293 = vrcp.pop %v2289
        %v2294 = vmul.f32 %v2289, %v2293
        %v2295 = vsub.f32 1.0, %v2294
        %v2296 = vmul.f32 %v2293, %v2295
        %v2297 = vadd.f32 %v2293, %v2296
        %vm2298 = vweird.f32 %v2289
        %vm2299 = vweird.f32 %v2293
        %vm2300 = vmor %vm2298, %vm2299
        %v2301 = vsel %vm2300, %v2293, %v2297
        %v2302 = vand.u32 2147483647, %v2289
        %vm2303 = vcmp.eq.f32.partialorder %v2302, 8.507059e+37
        %v2304 = vand.u32 %v2289, 2147483648
        %v2305 = vor.u32 1.1754944e-38, %v2304
        %v2306 = vsel %vm2303, %v2305, %v2301
        %v2307 = vmul.f32 1.0, %v2306
        %v2308 = vrcp.pop %v2290
        %v2309 = vmul.f32 %v2290, %v2308
        %v2310 = vsub.f32 1.0, %v2309
        %v2311 = vmul.f32 %v2308, %v2310
        %v2312 = vadd.f32 %v2308, %v2311
        %vm2313 = vweird.f32 %v2290
        %vm2314 = vweird.f32 %v2308
        %vm2315 = vmor %vm2313, %vm2314
        %v2316 = vsel %vm2315, %v2308, %v2312
        %v2317 = vand.u32 2147483647, %v2290
        %vm2318 = vcmp.eq.f32.partialorder %v2317, 8.507059e+37
        %v2319 = vand.u32 %v2290, 2147483648
        %v2320 = vor.u32 1.1754944e-38, %v2319
        %v2321 = vsel %vm2318, %v2320, %v2316
        %v2322 = vmul.f32 1.0, %v2321
        %v2323 = vrcp.pop %v2291
        %v2324 = vmul.f32 %v2291, %v2323
        %v2325 = vsub.f32 1.0, %v2324
        %v2326 = vmul.f32 %v2323, %v2325
        %v2327 = vadd.f32 %v2323, %v2326
        %vm2328 = vweird.f32 %v2291
        %vm2329 = vweird.f32 %v2323
        %vm2330 = vmor %vm2328, %vm2329
        %v2331 = vsel %vm2330, %v2323, %v2327
        %v2332 = vand.u32 2147483647, %v2291
        %vm2333 = vcmp.eq.f32.partialorder %v2332, 8.507059e+37
        %v2334 = vand.u32 %v2291, 2147483648
        %v2335 = vor.u32 1.1754944e-38, %v2334
        %v2336 = vsel %vm2333, %v2335, %v2331
        %v2337 = vmul.f32 1.0, %v2336
        %v2338 = vrcp.pop %v2292
        %v2339 = vmul.f32 %v2292, %v2338
        %v2340 = vsub.f32 1.0, %v2339
        %v2341 = vmul.f32 %v2338, %v2340
        %v2342 = vadd.f32 %v2338, %v2341
        %vm2343 = vweird.f32 %v2292
        %vm2344 = vweird.f32 %v2338
        %vm2345 = vmor %vm2343, %vm2344
        %v2346 = vsel %vm2345, %v2338, %v2342
        %v2347 = vand.u32 2147483647, %v2292
        %vm2348 = vcmp.eq.f32.partialorder %v2347, 8.507059e+37
        %v2349 = vand.u32 %v2292, 2147483648
        %v2350 = vor.u32 1.1754944e-38, %v2349
        %v2351 = vsel %vm2348, %v2350, %v2346
        %v2352 = vmul.f32 1.0, %v2351
        %v2353 = vmul.f32 %v2307, 1.0614054
        %v2354 = vmul.f32 %v2322, 1.0614054
        %v2355 = vmul.f32 %v2337, 1.0614054
        %v2356 = vmul.f32 %v2352, 1.0614054
        %v2357 = vadd.f32 %v2353, -1.4531521
        %v2358 = vadd.f32 %v2354, -1.4531521
        %v2359 = vadd.f32 %v2355, -1.4531521
        %v2360 = vadd.f32 %v2356, -1.4531521
        %v2361 = vmul.f32 %v2307, %v2357
        %v2362 = vmul.f32 %v2322, %v2358
        %v2363 = vmul.f32 %v2337, %v2359
        %v2364 = vmul.f32 %v2352, %v2360
        %v2365 = vadd.f32 %v2361, 1.4214138
        %v2366 = vadd.f32 %v2362, 1.4214138
        %v2367 = vadd.f32 %v2363, 1.4214138
        %v2368 = vadd.f32 %v2364, 1.4214138
        %v2369 = vmul.f32 %v2307, %v2365
        %v2370 = vmul.f32 %v2322, %v2366
        %v2371 = vmul.f32 %v2337, %v2367
        %v2372 = vmul.f32 %v2352, %v2368
        %v2373 = vadd.f32 %v2369, -0.28449672
        %v2374 = vadd.f32 %v2370, -0.28449672
        %v2375 = vadd.f32 %v2371, -0.28449672
        %v2376 = vadd.f32 %v2372, -0.28449672
        %v2377 = vmul.f32 %v2307, %v2373
        %v2378 = vmul.f32 %v2322, %v2374
        %v2379 = vmul.f32 %v2337, %v2375
        %v2380 = vmul.f32 %v2352, %v2376
        %v2381 = vadd.f32 %v2377, 0.2548296
        %v2382 = vadd.f32 %v2378, 0.2548296
        %v2383 = vadd.f32 %v2379, 0.2548296
        %v2384 = vadd.f32 %v2380, 0.2548296
        %v2385 = vmul.f32 %v2307, %v2381
        %v2386 = vmul.f32 %v2322, %v2382
        %v2387 = vmul.f32 %v2337, %v2383
        %v2388 = vmul.f32 %v2352, %v2384
        %v2389 = vsub.f32 0.0, %v2281
        %v2390 = vsub.f32 0.0, %v2282
        %v2391 = vsub.f32 0.0, %v2283
        %v2392 = vsub.f32 0.0, %v2284
        %v2393 = vmul.f32 %v2389, %v2281
        %v2394 = vmul.f32 %v2390, %v2282
        %v2395 = vmul.f32 %v2391, %v2283
        %v2396 = vmul.f32 %v2392, %v2284
        %v2397 = vmul.f32 %v2393, 1.442695
        %v2398 = vpow.pop %v2397
        %v2399 = vmul.f32 %v2394, 1.442695
        %v2400 = vpow.pop %v2399
        %v2401 = vmul.f32 %v2395, 1.442695
        %v2402 = vpow.pop %v2401
        %v2403 = vmul.f32 %v2396, 1.442695
        %v2404 = vpow.pop %v2403
        %v2405 = vmul.f32 %v2385, %v2398
        %v2406 = vmul.f32 %v2386, %v2400
        %v2407 = vmul.f32 %v2387, %v2402
        %v2408 = vmul.f32 %v2388, %v2404
        %v2409 = vsub.f32 1.0, %v2405
        %v2410 = vsub.f32 1.0, %v2406
        %v2411 = vsub.f32 1.0, %v2407
        %v2412 = vsub.f32 1.0, %v2408
        %v2413 = vmul.f32 %v2277, %v2409
        %v2414 = vmul.f32 %v2278, %v2410
        %v2415 = vmul.f32 %v2279, %v2411
        %v2416 = vmul.f32 %v2280, %v2412
        %v2417 = vadd.f32 %v2413, 1.0
        %v2418 = vadd.f32 %v2414, 1.0
        %v2419 = vadd.f32 %v2415, 1.0
        %v2420 = vadd.f32 %v2416, 1.0
        %v2421 = vmul.f32 %v2265, %v2417
        %v2422 = vmul.f32 %v2266, %v2418
        %v2423 = vmul.f32 %v2267, %v2419
        %v2424 = vmul.f32 %v2268, %v2420
        %v2425 = vld [vmem:[%s796] sm:$0xff]
        %v2426 = vld [vmem:[%s796 + $0x8] sm:$0xff]
        %v2427 = vld [vmem:[%s796 + $0x10] sm:$0xff]
        %v2428 = vld [vmem:[%s796 + $0x18] sm:$0xff]
        %v2429 = vld [vmem:[%s796 + $0x20] sm:$0xff]
        %v2430 = vld [vmem:[%s796 + $0x28] sm:$0xff]
        %v2431 = vld [vmem:[%s796 + $0x30] sm:$0xff]
        %v2432 = vld [vmem:[%s796 + $0x38] sm:$0xff]
        %v2433 = vld [vmem:[%s698] sm:$0x1]
        %v2435 = vperm.slane %v2433, 0
        %vm2437 = vcmask 523264
        %v2439 = vsel %vm2437, %v2421, 0
        %v2442 = vsel %vm2437, %v2422, 0
        %v2445 = vsel %vm2437, %v2423, 0
        %v2448 = vsel %vm2437, %v2424, 0
        %2450 = vmatpush.msra.mxu0 0.0
        %2451 = vmatpush.msra.mxu0 0.0
        %2452 = vmatpush.msra.mxu0 0.0
        %2453 = vmatpush.msra.mxu0 0.0
        %2454 = vmatpush.msra.mxu0 0.0
        %2455 = vmatpush.msra.mxu0 0.0
        %2456 = vmatpush.msra.mxu0 0.0
        %2457 = vmatpush.msra.mxu0 0.0
        %2458 = vmatpush.msra.mxu0 %v2432
        %2459 = vmatpush.msra.mxu0 %v2431
        %2460 = vmatpush.msra.mxu0 %v2430
        %2461 = vmatpush.msra.mxu0 %v2429
        %2462 = vmatpush.msra.mxu0 %v2428
        %2463 = vmatpush.msra.mxu0 %v2427
        %2464 = vmatpush.msra.mxu0 %v2426
        %2465 = vmatpush.msra.mxu0 %v2425
        %2466 = vmatmul.f32.gmra.mxu0 %v2439
        %v2467 = vpop.f32.mrf.mxu0
        %v2468 = vadd.f32 %v2435, %v2467
        %2469 = vmatmul.f32.gmra.mxu0 %v2442
        %v2470 = vpop.f32.mrf.mxu0
        %v2471 = vadd.f32 %v2435, %v2470
        %2472 = vmatmul.f32.gmra.mxu0 %v2445
        %v2473 = vpop.f32.mrf.mxu0
        %v2474 = vadd.f32 %v2435, %v2473
        %2475 = vmatmul.f32.gmra.mxu0 %v2448
        %v2476 = vpop.f32.mrf.mxu0
        %v2477 = vadd.f32 %v2435, %v2476
        %2478 = vdwg.mxu0
        %v2479 = vadd.f32 %v2212, %v2468
        %v2480 = vadd.f32 %v2213, %v2471
        %v2481 = vadd.f32 %v2214, %v2474
        %v2482 = vadd.f32 %v2215, %v2477
        %v2483 = vld [vmem:[%s707] sm:$0x1]
        %v2484 = vld [vmem:[%s799] sm:$0x1]
        %v2485 = vsel %vm825, %v2479, 0.0
        %2486 = vadd.xlane.f32.xlu0 %v2485
        %v2487 = vpop.xlane.xlu0 %2486
        %v2488 = vsel %vm825, %v2480, 0.0
        %2489 = vadd.xlane.f32.xlu0 %v2488
        %v2490 = vpop.xlane.xlu0 %2489
        %v2491 = vsel %vm825, %v2481, 0.0
        %2492 = vadd.xlane.f32.xlu0 %v2491
        %v2493 = vpop.xlane.xlu0 %2492
        %v2494 = vsel %vm825, %v2482, 0.0
        %2495 = vadd.xlane.f32.xlu0 %v2494
        %v2496 = vpop.xlane.xlu0 %2495
        %v2497 = vmul.f32 %v2487, %v2125
        %v2498 = vmul.f32 %v2490, %v2125
        %v2499 = vmul.f32 %v2493, %v2125
        %v2500 = vmul.f32 %v2496, %v2125
        %v2501 = vsub.f32 %v2479, %v2497
        %v2502 = vsub.f32 %v2480, %v2498
        %v2503 = vsub.f32 %v2481, %v2499
        %v2504 = vsub.f32 %v2482, %v2500
        %v2505 = vmul.f32 %v2501, %v2501
        %v2506 = vmul.f32 %v2502, %v2502
        %v2507 = vmul.f32 %v2503, %v2503
        %v2508 = vmul.f32 %v2504, %v2504
        %v2509 = vsel %vm825, %v2505, 0.0
        %2510 = vadd.xlane.f32.xlu0 %v2509
        %v2511 = vpop.xlane.xlu0 %2510
        %v2512 = vsel %vm825, %v2506, 0.0
        %2513 = vadd.xlane.f32.xlu0 %v2512
        %v2514 = vpop.xlane.xlu0 %2513
        %v2515 = vsel %vm825, %v2507, 0.0
        %2516 = vadd.xlane.f32.xlu0 %v2515
        %v2517 = vpop.xlane.xlu0 %2516
        %v2518 = vsel %vm825, %v2508, 0.0
        %2519 = vadd.xlane.f32.xlu0 %v2518
        %v2520 = vpop.xlane.xlu0 %2519
        %v2521 = vmul.f32 %v2511, %v2125
        %v2522 = vmul.f32 %v2514, %v2125
        %v2523 = vmul.f32 %v2517, %v2125
        %v2524 = vmul.f32 %v2520, %v2125
        %v2525 = vadd.f32 %v2521, 1e-05
        %v2526 = vadd.f32 %v2522, 1e-05
        %v2527 = vadd.f32 %v2523, 1e-05
        %v2528 = vadd.f32 %v2524, 1e-05
        %v2529 = vrsqrt.pop %v2525
        %v2530 = vmul.f32 %v2529, %v2525
        %v2531 = vmul.f32 %v2530, %v2529
        %v2532 = vmul.f32 0.5, %v2531
        %v2533 = vsub.f32 1.5, %v2532
        %v2534 = vmul.f32 %v2529, %v2533
        %vm2535 = vweird.f32 %v2525
        %vm2536 = vweird.f32 %v2529
        %vm2537 = vmor %vm2535, %vm2536
        %v2538 = vsel %vm2537, %v2529, %v2534
        %v2539 = vrsqrt.pop %v2526
        %v2540 = vmul.f32 %v2539, %v2526
        %v2541 = vmul.f32 %v2540, %v2539
        %v2542 = vmul.f32 0.5, %v2541
        %v2543 = vsub.f32 1.5, %v2542
        %v2544 = vmul.f32 %v2539, %v2543
        %vm2545 = vweird.f32 %v2526
        %vm2546 = vweird.f32 %v2539
        %vm2547 = vmor %vm2545, %vm2546
        %v2548 = vsel %vm2547, %v2539, %v2544
        %v2549 = vrsqrt.pop %v2527
        %v2550 = vmul.f32 %v2549, %v2527
        %v2551 = vmul.f32 %v2550, %v2549
        %v2552 = vmul.f32 0.5, %v2551
        %v2553 = vsub.f32 1.5, %v2552
        %v2554 = vmul.f32 %v2549, %v2553
        %vm2555 = vweird.f32 %v2527
        %vm2556 = vweird.f32 %v2549
        %vm2557 = vmor %vm2555, %vm2556
        %v2558 = vsel %vm2557, %v2549, %v2554
        %v2559 = vrsqrt.pop %v2528
        %v2560 = vmul.f32 %v2559, %v2528
        %v2561 = vmul.f32 %v2560, %v2559
        %v2562 = vmul.f32 0.5, %v2561
        %v2563 = vsub.f32 1.5, %v2562
        %v2564 = vmul.f32 %v2559, %v2563
        %vm2565 = vweird.f32 %v2528
        %vm2566 = vweird.f32 %v2559
        %vm2567 = vmor %vm2565, %vm2566
        %v2568 = vsel %vm2567, %v2559, %v2564
        %v2569 = vmul.f32 %v2501, %v2538
        %v2570 = vmul.f32 %v2502, %v2548
        %v2571 = vmul.f32 %v2503, %v2558
        %v2572 = vmul.f32 %v2504, %v2568
        %v2574 = vperm.slane %v2483, 0
        %v2576 = vmul.f32 %v2569, %v2574
        %v2577 = vmul.f32 %v2570, %v2574
        %v2578 = vmul.f32 %v2571, %v2574
        %v2579 = vmul.f32 %v2572, %v2574
        %v2581 = vperm.slane %v2484, 0
        %v2583 = vadd.f32 %v2576, %v2581
        %v2584 = vadd.f32 %v2577, %v2581
        %v2585 = vadd.f32 %v2578, %v2581
        %v2586 = vadd.f32 %v2579, %v2581
        %2587 = vst.msk [vmem:[#allocation20] sm:$0xff] %vm825, %v2583
        %2588 = vst.msk [vmem:[#allocation20 + $0x8] sm:$0xff] %vm825, %v2584
        %2589 = vst.msk [vmem:[#allocation20 + $0x10] sm:$0xff] %vm825, %v2585
        %2590 = vst.msk [vmem:[#allocation20 + $0x18] sm:$0xff] %vm825, %v2586
        // Predicated region
        $region117: #{wav2vec2_forward.3} parent=71 // pred_check
          %p2591 = pneg %p389
        $region118: #{wav2vec2_forward.3} parent=71 // pred_check_branch
          %2593 = sbr.rel (%p2591) target = $region120
        $region119: #{wav2vec2_forward.3} parent=71 // pred_region
          %2595 = vsyncadd [#allocation5], 0
          %s2596 = sshll.u32 [#allocation20], 4
          %s2597 = int_to_ptr.vmem [resolvable:$true] %s2596
          %s2598 = sshll.u32 %s13, 4
          %s2599 = int_to_ptr.hbm [resolvable:$true] %s2598
          %2604 = dma.vmem_to_hbm [thread:$0]  %s2597, 512, %s2599, [#allocation5], 128, 128, 8
        $region120: #{wav2vec2_forward.3} parent=71 // pred_fallthru
          _
        // Predicated region
        $region121: #{wav2vec2_forward.3} parent=71 // pred_check
          %p2605 = pneg %p389
        $region122: #{wav2vec2_forward.3} parent=71 // pred_check_branch
          %2607 = sbr.rel (%p2605) target = $region124
        $region123: #{wav2vec2_forward.3} parent=71 // pred_region
          %2609 = dma.done [#allocation5], 512
        $region124: #{wav2vec2_forward.3} parent=71 // pred_fallthru
          _
      $region72: #{wav2vec2_forward.3} parent=5 // pred_fallthru
        _
      %p2610 = scmp.le.s32.totalorder 2, %s38
      // Predicated region
      $region125: #{wav2vec2_forward.3} parent=5 // pred_check
        %p2611 = pneg %p2610
      $region126: #{wav2vec2_forward.3} parent=5 // pred_check_branch
        %2613 = sbr.rel (%p2611) target = $region128
      $region127: #{wav2vec2_forward.3} parent=5 // pred_region
        %s2614 = ssub.s32 %s38, 2
      $region128: #{wav2vec2_forward.3} parent=5 // pred_fallthru
        _
    $region6: #{wav2vec2_forward.3} parent=1 // loop_footer
      %s42 = sadd.s32 1, %s38
    $region7: #{wav2vec2_forward.3} parent=1 // loop_footer_branch
      %37 = sbr.rel target = $region3
    $region8: #{wav2vec2_forward.3} parent=1 // loop_exit
      _
    %2615 = vsyncpa [#allocation4], 1
    %s2616 = scalar_lea.sflag [#allocation4], 1
    %2617 = vsyncpa %s2616, 1
    %2618 = vsyncpa [#allocation7], 1
    %s2619 = scalar_lea.sflag [#allocation7], 1
    %2620 = vsyncpa %s2619, 1
    %2621 = vsyncpa [#allocation10], 1
    %s2622 = scalar_lea.sflag [#allocation10], 1
    %2623 = vsyncpa %s2622, 1
    %2624 = vsyncpa [#allocation13], 1
    %s2625 = scalar_lea.sflag [#allocation13], 1
    %2626 = vsyncpa %s2625, 1
    %2627 = vsyncpa [#allocation16], 1
    %s2628 = scalar_lea.sflag [#allocation16], 1
    %2629 = vsyncpa %s2628, 1
    %2630 = vsyncpa [#allocation19], 1
    %s2631 = scalar_lea.sflag [#allocation19], 1
    %2632 = vsyncpa %s2631, 1
    %2633 = vsyncpa [#allocation5], 1
    %s2634 = scalar_lea.sflag [#allocation5], 1
    %2635 = vsyncpa %s2634, 1

</llo_original>
